<compile_context>
chip_gen: v7x
topology: tpu7x:2x2x1
jax: 0.10.0
libtpu: 0.0.40
codegen_flags: <defaults>
</compile_context>

<pallas_src>
import jax
import jax.numpy as jnp
from jax.experimental import pallas as pl
from jax.experimental.pallas import tpu as pltpu

LAYER_DIMS = [128, 128, 128, 64, 16, 1]   # MLP([input_dim, 128, 128, 64, 16, 1])
BN_EPS = 1e-5
MAX_TILE_B = 2048                         # cap on rows per grid step (mult. of 128)
LANES = 128


# --------------------------------------------------------------------------- #
# Kernel
# --------------------------------------------------------------------------- #
def predictor_kernel(scale_ref, x_ref,
                     w1, b1, w2, b2, w3, b3, w4, b4, w5, b5,
                     o_ref):
    x = x_ref[...]                                   # (TB, D) f32

    def layer(h, w_ref, b_ref):
        y = jnp.dot(h.astype(jnp.bfloat16), w_ref[...],
                    preferred_element_type=jnp.float32) + b_ref[...]
        return jnp.maximum(y, 0.2 * y)               # LeakyReLU(0.2): mul + max

    h = layer(x, w1, b1)                             # (TB, 128)  [alpha-BN folded]
    h = layer(h, w2, b2)                             # (TB, 128)
    h = layer(h, w3, b3)                             # (TB, 64)
    h = layer(h, w4, b4)                             # (TB, 16)

    # Last layer (16 -> 1) on the VPU/XLU: multiply + lane reduce (no N=1 MXU
    # pass).  BN shift and the "-1" of the tanh term are folded into b5
    # host-side, so only the scale * x[:, -1] FMA remains on the sparse path.
    z = (jnp.sum(h * w5[...], axis=-1, keepdims=True) + b5[...]
         + scale_ref[0] * x[:, -1:])                 # (TB, 1) f32 pre-tanh

    # Lane-dense tail: relayout the per-row column into a (TB//128, 128) slab so
    # tanh, the +1 and the output store operate on full vregs (unmasked stores).
    o_ref[...] = 1.0 + jnp.tanh(z.reshape(o_ref.shape))


# --------------------------------------------------------------------------- #
# Parameter construction (synthetic, deterministic; per-layer BN folded in)
# --------------------------------------------------------------------------- #
def init_params(key, dims=LAYER_DIMS):
    params = []
    for i in range(1, len(dims)):
        fan_in, fan_out = dims[i - 1], dims[i]
        key, kw, kb, kg, kbe, km, kv = jax.random.split(key, 7)
        bound = 1.0 / jnp.sqrt(fan_in)
        W = jax.random.uniform(kw, (fan_out, fan_in), jnp.float32, -bound, bound)
        b = jax.random.uniform(kb, (fan_out,), jnp.float32, -bound, bound)
        gamma = 1.0 + 0.1 * jax.random.normal(kg, (fan_out,))
        beta = 0.1 * jax.random.normal(kbe, (fan_out,))
        mean = 0.1 * jax.random.normal(km, (fan_out,))
        var = 0.9 + 0.1 * jnp.abs(jax.random.normal(kv, (fan_out,)))
        s = gamma / jnp.sqrt(var + BN_EPS)
        W_eff = (W.T * s[None, :]).astype(jnp.float32)                 # (in, out)
        b_eff = ((b - mean) * s + beta).reshape(1, fan_out).astype(jnp.float32)
        params.append((W_eff, b_eff))

    # bn_alpha_fit = BatchNorm1d(1), eval mode, folded to scale/shift scalars
    key, kg, kbe, km, kv = jax.random.split(key, 5)
    gamma = 1.0 + 0.1 * jax.random.normal(kg, ())
    beta = 0.1 * jax.random.normal(kbe, ())
    mean = 0.1 * jax.random.normal(km, ())
    var = 0.9 + 0.1 * jnp.abs(jax.random.normal(kv, ()))
    a_scale = gamma / jnp.sqrt(var + BN_EPS)
    a_shift = beta - mean * a_scale
    bn_alpha = jnp.stack([a_scale, a_shift]).astype(jnp.float32)       # (2,)
    return bn_alpha, params


def prepare_kernel_params(bn_alpha, params):
    """Fold alpha-BN into layer 1 and (shift-1) into the last bias; bf16 weights."""
    s, t = bn_alpha[0], bn_alpha[1]
    W1, b1 = params[0]
    W1f = W1.at[-1, :].multiply(s)               # scale last input row by BN scale
    b1f = b1 + t * W1[-1:, :]                    # absorb BN shift into the bias
    folded = [(W1f, b1f)] + [tuple(p) for p in params[1:]]

    flat = []
    for i, (W, b) in enumerate(folded):
        if i < len(folded) - 1:
            flat += [W.astype(jnp.bfloat16), b.astype(jnp.float32)]
        else:                                    # last layer (16,1) -> row (1,16), VPU
            b_last = b + (t - 1.0)               # fold BN shift and the "-1" of tanh()
            flat += [W.T.astype(jnp.float32), b_last.astype(jnp.float32)]
    scale = jnp.reshape(s, (1,)).astype(jnp.float32)
    return scale, flat


# --------------------------------------------------------------------------- #
# Wrapper
# --------------------------------------------------------------------------- #
def _choose_tiling(batch, max_tile=MAX_TILE_B):
    """Pick (tile_b, n_tiles): tiles are multiples of 128 (lane-dense tail),
    capped at max_tile, with an even number of >=2 grid steps so both v7x
    TensorCores get work while keeping batch padding minimal."""
    b128 = ((batch + LANES - 1) // LANES) * LANES
    n_tiles = max(2, pl.cdiv(b128, max_tile))
    if n_tiles % 2:
        n_tiles += 1
    tile_b = ((pl.cdiv(b128, n_tiles) + LANES - 1) // LANES) * LANES
    return tile_b, n_tiles


def predictor_forward(x, bn_alpha, params, max_tile=MAX_TILE_B):
    B, D = x.shape
    scale, flat = prepare_kernel_params(bn_alpha, params)

    tile_b, n_tiles = _choose_tiling(B, max_tile)
    groups = tile_b // LANES
    B_pad = n_tiles * tile_b
    if B_pad != B:
        # zero rows; no NaN risk through tanh, sliced off below
        x = jnp.pad(x, ((0, B_pad - B), (0, 0)))
    # NOTE: if the producer of x can emit bfloat16, the kernel accepts it as-is
    # (the in-kernel cast becomes a no-op) and halves the dominant HBM read;
    # we deliberately do NOT add a standalone wrapper-side astype.

    in_specs = (
        [pl.BlockSpec(memory_space=pltpu.MemorySpace.SMEM)]            # bn scale
        + [pl.BlockSpec((tile_b, D), lambda i: (i, 0))]                # x tile
        + [pl.BlockSpec(a.shape, lambda i: (0, 0)) for a in flat]      # resident weights
    )
    # Lane-dense output slab: (n_tiles, tile_b//128, 128); block = one tile's slab.
    out_specs = pl.BlockSpec((None, groups, LANES), lambda i: (i, 0, 0))

    flops = 2 * B_pad * (128 * 128 + 128 * 128 + 128 * 64 + 64 * 16 + 16)
    bytes_accessed = B_pad * (D * 4 + 4) + sum(a.size * a.dtype.itemsize for a in flat)
    cost = pl.CostEstimate(flops=int(flops),
                           transcendentals=int(B_pad),
                           bytes_accessed=int(bytes_accessed))

    out = pl.pallas_call(
        predictor_kernel,
        out_shape=jax.ShapeDtypeStruct((n_tiles, groups, LANES), jnp.float32),
        grid=(n_tiles,),
        in_specs=in_specs,
        out_specs=out_specs,
        compiler_params=pltpu.CompilerParams(
            dimension_semantics=("parallel",),
            vmem_limit_bytes=32 * 1024 * 1024),     # headroom on v5e/v6e/v7x
        cost_estimate=cost,
    )(scale, x, *flat)

    # Free row-major reshape back to the module's (B, 1) output.
    return out.reshape(B_pad, 1)[:B]


def predictor_reference(x, bn_alpha, params):
    """Plain-JAX f32 reference of the same eval-mode forward (un-folded alpha path)."""
    alpha_bn = x[:, -1:] * bn_alpha[0] + bn_alpha[1]
    h = x.at[:, -1:].set(alpha_bn)
    for i, (W, b) in enumerate(params):
        h = h @ W + b
        if i < len(params) - 1:
            h = jnp.where(h > 0, h, 0.2 * h)
    return 1.0 + jnp.tanh(h - 1.0 + alpha_bn)


if __name__ == "__main__":
    # TODO(synk): Dropout(p) and BatchNorm batch-statistics (training mode) are
    # intentionally realized in eval-mode semantics (identity / running stats).
    key = jax.random.PRNGKey(0)
    k_param, k_x = jax.random.split(key)
    bn_alpha, params = init_params(k_param)

    B, D = 1000, 128                     # input_dim=128 (module default); exercises
    x = jax.random.normal(k_x, (B, D), dtype=jnp.float32)   # 2 tiles + batch padding

    out = predictor_forward(x, bn_alpha, params)
    out = jax.block_until_ready(out)

    ref = predictor_reference(x, bn_alpha, params)
    assert out.shape == (B, 1)
    # bf16 matmuls with f32 accumulation: compare with a relaxed tolerance.
    assert jnp.allclose(out, ref, atol=3e-2, rtol=3e-2), "mismatch vs JAX reference"
    print("KERNEL_OK")
</pallas_src>

<mosaic_0001>
module attributes {stable_mosaic.version = 11 : i64} {
  func.func @predictor_kernel(%arg0: i32, %arg1: memref<1xf32, #tpu.memory_space<smem>>, %arg2: memref<512x128xf32, #tpu.memory_space<vmem>>, %arg3: memref<128x128xbf16, #tpu.memory_space<vmem>>, %arg4: memref<1x128xf32, #tpu.memory_space<vmem>>, %arg5: memref<128x128xbf16, #tpu.memory_space<vmem>>, %arg6: memref<1x128xf32, #tpu.memory_space<vmem>>, %arg7: memref<128x64xbf16, #tpu.memory_space<vmem>>, %arg8: memref<1x64xf32, #tpu.memory_space<vmem>>, %arg9: memref<64x16xbf16, #tpu.memory_space<vmem>>, %arg10: memref<1x16xf32, #tpu.memory_space<vmem>>, %arg11: memref<1x16xf32, #tpu.memory_space<vmem>>, %arg12: memref<1x1xf32, #tpu.memory_space<vmem>>, %arg13: memref<1x4x128xf32, #tpu.memory_space<vmem>>) attributes {dimension_semantics = [#tpu.dimension_semantics<parallel>], iteration_bounds = array<i64: 2>, scalar_prefetch = 0 : i64, scratch_operands = 0 : i64, tpu.core_type = #tpu.core_type<tc>, window_params = [{transform_indices = @transform_0, window_bounds = array<i64: 1>}, {transform_indices = @transform_1, window_bounds = array<i64: 512, 128>}, {pipeline_mode = #tpu.pipeline_mode<synchronous>, transform_indices = @transform_2, window_bounds = array<i64: 128, 128>}, {pipeline_mode = #tpu.pipeline_mode<synchronous>, transform_indices = @transform_3, window_bounds = array<i64: 1, 128>}, {pipeline_mode = #tpu.pipeline_mode<synchronous>, transform_indices = @transform_4, window_bounds = array<i64: 128, 128>}, {pipeline_mode = #tpu.pipeline_mode<synchronous>, transform_indices = @transform_5, window_bounds = array<i64: 1, 128>}, {pipeline_mode = #tpu.pipeline_mode<synchronous>, transform_indices = @transform_6, window_bounds = array<i64: 128, 64>}, {pipeline_mode = #tpu.pipeline_mode<synchronous>, transform_indices = @transform_7, window_bounds = array<i64: 1, 64>}, {pipeline_mode = #tpu.pipeline_mode<synchronous>, transform_indices = @transform_8, window_bounds = array<i64: 64, 16>}, {pipeline_mode = #tpu.pipeline_mode<synchronous>, transform_indices = @transform_9, window_bounds = array<i64: 1, 16>}, {pipeline_mode = #tpu.pipeline_mode<synchronous>, transform_indices = @transform_10, window_bounds = array<i64: 1, 16>}, {pipeline_mode = #tpu.pipeline_mode<synchronous>, transform_indices = @transform_11, window_bounds = array<i64: 1, 1>}, {transform_indices = @transform_12, window_bounds = array<i64: 1, 4, 128>}]} {
    %c0 = arith.constant 0 : index
    %c0_0 = arith.constant 0 : index
    %0 = vector.load %arg2[%c0, %c0_0] : memref<512x128xf32, #tpu.memory_space<vmem>>, vector<512x128xf32>
    %1 = arith.truncf %0 : vector<512x128xf32> to vector<512x128xbf16>
    %c0_1 = arith.constant 0 : index
    %c0_2 = arith.constant 0 : index
    %2 = vector.load %arg3[%c0_1, %c0_2] : memref<128x128xbf16, #tpu.memory_space<vmem>>, vector<128x128xbf16>
    %cst = arith.constant dense<0.000000e+00> : vector<512x128xf32>
    %3 = tpu.matmul %1, %2, %cst {dimension_numbers = #tpu.dot_dimension_numbers<[1], [0], [0], [1], [0, 0, 1, 1], [], []>} : vector<512x128xbf16>, vector<128x128xbf16>, vector<512x128xf32> -> vector<512x128xf32>
    %c0_3 = arith.constant 0 : index
    %c0_4 = arith.constant 0 : index
    %4 = vector.load %arg4[%c0_3, %c0_4] : memref<1x128xf32, #tpu.memory_space<vmem>>, vector<1x128xf32>
    %5 = vector.broadcast %4 : vector<1x128xf32> to vector<512x128xf32>
    %6 = arith.addf %3, %5 : vector<512x128xf32>
    %cst_5 = arith.constant 2.000000e-01 : f32
    %7 = vector.broadcast %cst_5 : f32 to vector<512x128xf32>
    %8 = arith.mulf %7, %6 : vector<512x128xf32>
    %9 = arith.maximumf %6, %8 : vector<512x128xf32>
    %10 = arith.truncf %9 : vector<512x128xf32> to vector<512x128xbf16>
    %c0_6 = arith.constant 0 : index
    %c0_7 = arith.constant 0 : index
    %11 = vector.load %arg5[%c0_6, %c0_7] : memref<128x128xbf16, #tpu.memory_space<vmem>>, vector<128x128xbf16>
    %cst_8 = arith.constant dense<0.000000e+00> : vector<512x128xf32>
    %12 = tpu.matmul %10, %11, %cst_8 {dimension_numbers = #tpu.dot_dimension_numbers<[1], [0], [0], [1], [0, 0, 1, 1], [], []>} : vector<512x128xbf16>, vector<128x128xbf16>, vector<512x128xf32> -> vector<512x128xf32>
    %c0_9 = arith.constant 0 : index
    %c0_10 = arith.constant 0 : index
    %13 = vector.load %arg6[%c0_9, %c0_10] : memref<1x128xf32, #tpu.memory_space<vmem>>, vector<1x128xf32>
    %14 = vector.broadcast %13 : vector<1x128xf32> to vector<512x128xf32>
    %15 = arith.addf %12, %14 : vector<512x128xf32>
    %cst_11 = arith.constant 2.000000e-01 : f32
    %16 = vector.broadcast %cst_11 : f32 to vector<512x128xf32>
    %17 = arith.mulf %16, %15 : vector<512x128xf32>
    %18 = arith.maximumf %15, %17 : vector<512x128xf32>
    %19 = arith.truncf %18 : vector<512x128xf32> to vector<512x128xbf16>
    %c0_12 = arith.constant 0 : index
    %c0_13 = arith.constant 0 : index
    %20 = vector.load %arg7[%c0_12, %c0_13] : memref<128x64xbf16, #tpu.memory_space<vmem>>, vector<128x64xbf16>
    %cst_14 = arith.constant dense<0.000000e+00> : vector<512x64xf32>
    %21 = tpu.matmul %19, %20, %cst_14 {dimension_numbers = #tpu.dot_dimension_numbers<[1], [0], [0], [1], [0, 0, 1, 1], [], []>} : vector<512x128xbf16>, vector<128x64xbf16>, vector<512x64xf32> -> vector<512x64xf32>
    %c0_15 = arith.constant 0 : index
    %c0_16 = arith.constant 0 : index
    %22 = vector.load %arg8[%c0_15, %c0_16] : memref<1x64xf32, #tpu.memory_space<vmem>>, vector<1x64xf32>
    %23 = vector.broadcast %22 : vector<1x64xf32> to vector<512x64xf32>
    %24 = arith.addf %21, %23 : vector<512x64xf32>
    %cst_17 = arith.constant 2.000000e-01 : f32
    %25 = vector.broadcast %cst_17 : f32 to vector<512x64xf32>
    %26 = arith.mulf %25, %24 : vector<512x64xf32>
    %27 = arith.maximumf %24, %26 : vector<512x64xf32>
    %28 = arith.truncf %27 : vector<512x64xf32> to vector<512x64xbf16>
    %c0_18 = arith.constant 0 : index
    %c0_19 = arith.constant 0 : index
    %29 = vector.load %arg9[%c0_18, %c0_19] : memref<64x16xbf16, #tpu.memory_space<vmem>>, vector<64x16xbf16>
    %cst_20 = arith.constant dense<0.000000e+00> : vector<512x16xf32>
    %30 = tpu.matmul %28, %29, %cst_20 {dimension_numbers = #tpu.dot_dimension_numbers<[1], [0], [0], [1], [0, 0, 1, 1], [], []>} : vector<512x64xbf16>, vector<64x16xbf16>, vector<512x16xf32> -> vector<512x16xf32>
    %c0_21 = arith.constant 0 : index
    %c0_22 = arith.constant 0 : index
    %31 = vector.load %arg10[%c0_21, %c0_22] : memref<1x16xf32, #tpu.memory_space<vmem>>, vector<1x16xf32>
    %32 = vector.broadcast %31 : vector<1x16xf32> to vector<512x16xf32>
    %33 = arith.addf %30, %32 : vector<512x16xf32>
    %cst_23 = arith.constant 2.000000e-01 : f32
    %34 = vector.broadcast %cst_23 : f32 to vector<512x16xf32>
    %35 = arith.mulf %34, %33 : vector<512x16xf32>
    %36 = arith.maximumf %33, %35 : vector<512x16xf32>
    %c0_24 = arith.constant 0 : index
    %c0_25 = arith.constant 0 : index
    %37 = vector.load %arg11[%c0_24, %c0_25] : memref<1x16xf32, #tpu.memory_space<vmem>>, vector<1x16xf32>
    %38 = vector.broadcast %37 : vector<1x16xf32> to vector<512x16xf32>
    %39 = arith.mulf %36, %38 : vector<512x16xf32>
    %cst_26 = arith.constant dense<0.000000e+00> : vector<512xf32>
    %40 = vector.multi_reduction <add>, %39, %cst_26 [1] : vector<512x16xf32> to vector<512xf32>
    %41 = vector.shape_cast %40 : vector<512xf32> to vector<512x1xf32>
    %c0_27 = arith.constant 0 : index
    %c0_28 = arith.constant 0 : index
    %42 = vector.load %arg12[%c0_27, %c0_28] : memref<1x1xf32, #tpu.memory_space<vmem>>, vector<1x1xf32>
    %43 = vector.broadcast %42 : vector<1x1xf32> to vector<512x1xf32>
    %44 = arith.addf %41, %43 : vector<512x1xf32>
    %c0_29 = arith.constant 0 : index
    %45 = memref.load %arg1[%c0_29] : memref<1xf32, #tpu.memory_space<smem>>
    %46 = vector.extract_strided_slice %0 {offsets = [0, 127], sizes = [512, 1], strides = [1, 1]} : vector<512x128xf32> to vector<512x1xf32>
    %47 = vector.broadcast %45 : f32 to vector<512x1xf32>
    %48 = arith.mulf %47, %46 : vector<512x1xf32>
    %49 = arith.addf %44, %48 : vector<512x1xf32>
    %50 = vector.shape_cast %49 : vector<512x1xf32> to vector<4x128xf32>
    %51 = math.tanh %50 : vector<4x128xf32>
    %cst_30 = arith.constant 1.000000e+00 : f32
    %52 = vector.broadcast %cst_30 : f32 to vector<4x128xf32>
    %53 = arith.addf %52, %51 : vector<4x128xf32>
    %c0_31 = arith.constant 0 : index
    %c0_32 = arith.constant 0 : index
    %c0_33 = arith.constant 0 : index
    %54 = vector.load %arg13[%c0_31, %c0_32, %c0_33] : memref<1x4x128xf32, #tpu.memory_space<vmem>>, vector<1x4x128xf32>
    %55 = vector.shape_cast %54 : vector<1x4x128xf32> to vector<4x128xf32>
    %56 = vector.shape_cast %53 : vector<4x128xf32> to vector<1x4x128xf32>
    tpu.vector_store %arg13[%c0_31, %c0_32, %c0_33], %56 {strides = array<i32>} : memref<1x4x128xf32, #tpu.memory_space<vmem>>, vector<1x4x128xf32>,
    return
  }
  func.func @transform_0(%arg0: i32) -> i32 {
    %c0_i32 = arith.constant 0 : i32
    %c0_i32_0 = arith.constant 0 : i32
    return %c0_i32 : i32
  }
  func.func @transform_1(%arg0: i32) -> (i32, i32) {
    %c0_i32 = arith.constant 0 : i32
    %c0_i32_0 = arith.constant 0 : i32
    return %arg0, %c0_i32 : i32, i32
  }
  func.func @transform_2(%arg0: i32) -> (i32, i32) {
    %c0_i32 = arith.constant 0 : i32
    %c0_i32_0 = arith.constant 0 : i32
    %c0_i32_1 = arith.constant 0 : i32
    return %c0_i32, %c0_i32_0 : i32, i32
  }
  func.func @transform_3(%arg0: i32) -> (i32, i32) {
    %c0_i32 = arith.constant 0 : i32
    %c0_i32_0 = arith.constant 0 : i32
    %c0_i32_1 = arith.constant 0 : i32
    return %c0_i32, %c0_i32_0 : i32, i32
  }
  func.func @transform_4(%arg0: i32) -> (i32, i32) {
    %c0_i32 = arith.constant 0 : i32
    %c0_i32_0 = arith.constant 0 : i32
    %c0_i32_1 = arith.constant 0 : i32
    return %c0_i32, %c0_i32_0 : i32, i32
  }
  func.func @transform_5(%arg0: i32) -> (i32, i32) {
    %c0_i32 = arith.constant 0 : i32
    %c0_i32_0 = arith.constant 0 : i32
    %c0_i32_1 = arith.constant 0 : i32
    return %c0_i32, %c0_i32_0 : i32, i32
  }
  func.func @transform_6(%arg0: i32) -> (i32, i32) {
    %c0_i32 = arith.constant 0 : i32
    %c0_i32_0 = arith.constant 0 : i32
    %c0_i32_1 = arith.constant 0 : i32
    return %c0_i32, %c0_i32_0 : i32, i32
  }
  func.func @transform_7(%arg0: i32) -> (i32, i32) {
    %c0_i32 = arith.constant 0 : i32
    %c0_i32_0 = arith.constant 0 : i32
    %c0_i32_1 = arith.constant 0 : i32
    return %c0_i32, %c0_i32_0 : i32, i32
  }
  func.func @transform_8(%arg0: i32) -> (i32, i32) {
    %c0_i32 = arith.constant 0 : i32
    %c0_i32_0 = arith.constant 0 : i32
    %c0_i32_1 = arith.constant 0 : i32
    return %c0_i32, %c0_i32_0 : i32, i32
  }
  func.func @transform_9(%arg0: i32) -> (i32, i32) {
    %c0_i32 = arith.constant 0 : i32
    %c0_i32_0 = arith.constant 0 : i32
    %c0_i32_1 = arith.constant 0 : i32
    return %c0_i32, %c0_i32_0 : i32, i32
  }
  func.func @transform_10(%arg0: i32) -> (i32, i32) {
    %c0_i32 = arith.constant 0 : i32
    %c0_i32_0 = arith.constant 0 : i32
    %c0_i32_1 = arith.constant 0 : i32
    return %c0_i32, %c0_i32_0 : i32, i32
  }
  func.func @transform_11(%arg0: i32) -> (i32, i32) {
    %c0_i32 = arith.constant 0 : i32
    %c0_i32_0 = arith.constant 0 : i32
    %c0_i32_1 = arith.constant 0 : i32
    return %c0_i32, %c0_i32_0 : i32, i32
  }
  func.func @transform_12(%arg0: i32) -> (i32, i32, i32) {
    %c0_i32 = arith.constant 0 : i32
    %c0_i32_0 = arith.constant 0 : i32
    %c0_i32_1 = arith.constant 0 : i32
    return %arg0, %c0_i32, %c0_i32_0 : i32, i32, i32
  }
}

</mosaic_0001>

<llo_original>
// kernel: tpu_custom_call.1
$region0: #{tpu_custom_call.1}
  #allocation0 [shape = 'u32[]', space=smem, size = 0x4, offset = 0x4, fixed_abs, tag = 'smem constant byte address 0x4 - core index']
  #allocation1 [shape = 'u32[144,128]{1,0:T(1,128)}', space=vmem, size = 0x12000, scoped, tag = 'internal scratch']
  #allocation2 [shape = 'f32[1]{0:T(128)S(6)}', space=smem, size = 0x200, scoped, tag = 'scoped memory for tpu_custom_call.1']
  #allocation3 [shape = 'f32[1,1]{1,0:T(1,128)S(1)}', space=vmem, size = 0x200, scoped, tag = 'scoped memory for tpu_custom_call.1']
  %s0 = inlined_call_operand.<no memory space> [shape: f32[1], index: 0, kind: input, shape index: {}]
  %s1 = inlined_call_operand.hbm [shape: f32[1024,128], index: 1, kind: input, shape index: {}]
  %s2 = inlined_call_operand.vmem [shape: bf16[128,128], index: 2, kind: input, shape index: {}]
  %s3 = inlined_call_operand.vmem [shape: f32[1,128], index: 3, kind: input, shape index: {}]
  %s4 = inlined_call_operand.vmem [shape: bf16[128,128], index: 4, kind: input, shape index: {}]
  %s5 = inlined_call_operand.vmem [shape: f32[1,128], index: 5, kind: input, shape index: {}]
  %s6 = inlined_call_operand.vmem [shape: bf16[128,64], index: 6, kind: input, shape index: {}]
  %s7 = inlined_call_operand.hbm [shape: f32[1,64], index: 7, kind: input, shape index: {}]
  %s8 = inlined_call_operand.vmem [shape: bf16[64,16], index: 8, kind: input, shape index: {}]
  %s9 = inlined_call_operand.vmem [shape: f32[1,16], index: 9, kind: input, shape index: {}]
  %s10 = inlined_call_operand.vmem [shape: f32[1,16], index: 10, kind: input, shape index: {}]
  %s11 = inlined_call_operand.<no memory space> [shape: f32[1,1], index: 11, kind: input, shape index: {}]
  %s12 = inlined_call_operand.hbm [shape: f32[2,4,128], index: 12, kind: output, shape index: {}]
  %s13 = sld [smem:[#allocation0]]
  $region89: #{tpu_custom_call.1} parent=0
    _
  %s15 = ssub.s32 1, %s13
  %s16 = scalar_select 0, %s15, %s13
  %17 = sst [smem:[#allocation2]] %s0
  %v18 = vstv %s11
  %19 = vst [vmem:[#allocation3] sm:$0x1] %v18
  $region1: #{tpu_custom_call.1} parent=0
    #allocation4 [shape = 'u8[524288]{0}', space=vmem, size = 0x80000, scoped, tag = 'input window, operand 1']
    #allocation5 [shape = 's32[2]{0}', space=sflag, size = 0x8, scoped, tag = 'scoped memory for tpu_custom_call.1']
    #allocation6 [shape = 's32[2]{0}', space=sflag, size = 0x8, scoped, tag = 'scoped memory for tpu_custom_call.1']
    #allocation7 [shape = 'u8[512]{0}', space=vmem, size = 0x400, scoped, tag = 'input window, operand 7, single buffered']
    #allocation8 [shape = 's32[1]{0}', space=sflag, size = 0x4, scoped, tag = 'scoped memory for tpu_custom_call.1']
    #allocation9 [shape = 'u8[4096]{0}', space=vmem, size = 0x1000, scoped, tag = 'output window, operand 0']
    %20 = vsyncpa [#allocation5], 0
    %s21 = scalar_lea.sflag [#allocation5], 1
    %22 = vsyncpa %s21, 0
    %23 = vsyncpa [#allocation8], 0
    %24 = vsyncpa [#allocation6], 0
    %s25 = scalar_lea.sflag [#allocation6], 1
    %26 = vsyncpa %s25, 0
    loop: start=0, step=1, limit=4
    $region2: #{tpu_custom_call.1} parent=1 // loop_pre_header
      _
    $region3: #{tpu_custom_call.1} parent=1 // loop_header
      %s28 = sphi 0, %s32
      %p29 = scmp.ge.s32.totalorder %s28, 4
      %s36 = sphi 0, %s36
      %s38 = sphi 0, %s36
      %s39 = sphi 0, %s38
      %s53 = sphi 0, %s39
      %s59 = sphi 0, %s61
      %s62 = sphi 0, %s59
      %s63 = sphi 0, %s62
      %s79 = sphi 0, %s63
      %s83 = sphi 0, %s83
      %s85 = sphi 0, %s83
      %s86 = sphi 0, %s85
      %s100 = sphi 0, %s86
      %s104 = sphi 0, %s104
      %s106 = sphi 0, %s104
      %s107 = sphi 0, %s106
      %s121 = sphi 0, %s107
      %s125 = sphi 0, %s125
      %s127 = sphi 0, %s125
      %s128 = sphi 0, %s127
      %s142 = sphi 0, %s128
      %s146 = sphi 0, %s146
      %s148 = sphi 0, %s146
      %s149 = sphi 0, %s148
      %s163 = sphi 0, %s149
      %s167 = sphi 0, %s167
      %s169 = sphi 0, %s167
      %s170 = sphi 0, %s169
      %s184 = sphi 0, %s170
      %s188 = sphi 0, %s188
      %s190 = sphi 0, %s188
      %s191 = sphi 0, %s190
      %s205 = sphi 0, %s191
      %s209 = sphi 0, %s209
      %s211 = sphi 0, %s209
      %s212 = sphi 0, %s211
      %s226 = sphi 0, %s212
      %s230 = sphi 0, %s230
      %s232 = sphi 0, %s230
      %s233 = sphi 0, %s232
      %s247 = sphi 0, %s233
      %s251 = sphi 0, %s251
      %s253 = sphi 0, %s251
      %s254 = sphi 0, %s253
      %s268 = sphi 0, %s254
      %s272 = sphi 0, %s272
      %s274 = sphi 0, %s272
      %s275 = sphi 0, %s274
      %s289 = sphi 0, %s275
      %s295 = sphi 0, %s297
      %s298 = sphi 0, %s295
      %s299 = sphi 0, %s298
      %s315 = sphi 0, %s299
    $region4: #{tpu_custom_call.1} parent=1 // loop_header_branch
      %31 = sbr.rel (%p29) target = $region8
    $region5: #{tpu_custom_call.1} parent=1 // loop_body
      %s33 = ssub.s32 %s28, 1
      %s34 = ssub.s32 %s28, 2
      %s35 = sadd.s32 %s28, 1
      %s37 = sadd.s32 %s36, 1
      %p40 = scmp.eq.s32.totalorder %s28, 1
      %p41 = scmp.ne.s32.totalorder %s36, %s38
      %p42 = scmp.eq.s32.totalorder %s28, 0
      %p43 = por %p41, %p42
      %p44 = scmp.ne.s32.totalorder %s36, %s38
      %p45 = scmp.eq.s32.totalorder %s33, 1
      %p46 = por %p44, %p45
      %p47 = scmp.ne.s32.totalorder %s38, %s39
      %p48 = scmp.eq.s32.totalorder %s33, 0
      %p49 = por %p47, %p48
      %p50 = scmp.ne.s32.totalorder %s38, %s39
      %p51 = scmp.eq.s32.totalorder %s34, 1
      %p52 = por %p50, %p51
      %p54 = scmp.ne.s32.totalorder %s39, %s53
      %p55 = scmp.eq.s32.totalorder %s34, 0
      %p56 = por %p54, %p55
      %s57 = ssub.s32 %s28, %s35
      %p58 = scmp.eq.s32.totalorder %s57, 0
      %s60 = sadd.s32 %s59, 1
      %s61 = scalar_select %p58, %s59, %s60
      %p64 = pneg %p58
      %p65 = scmp.eq.s32.totalorder %s28, 1
      %p66 = por %p64, %p65
      %p67 = scmp.ne.s32.totalorder %s59, %s62
      %p68 = scmp.eq.s32.totalorder %s28, 0
      %p69 = por %p67, %p68
      %p70 = scmp.ne.s32.totalorder %s59, %s62
      %p71 = scmp.eq.s32.totalorder %s33, 1
      %p72 = por %p70, %p71
      %p73 = scmp.ne.s32.totalorder %s62, %s63
      %p74 = scmp.eq.s32.totalorder %s33, 0
      %p75 = por %p73, %p74
      %p76 = scmp.ne.s32.totalorder %s62, %s63
      %p77 = scmp.eq.s32.totalorder %s34, 1
      %p78 = por %p76, %p77
      %p80 = scmp.ne.s32.totalorder %s63, %s79
      %p81 = scmp.eq.s32.totalorder %s34, 0
      %p82 = por %p80, %p81
      %s84 = sadd.s32 %s83, 1
      %p87 = scmp.eq.s32.totalorder %s28, 1
      %p88 = scmp.ne.s32.totalorder %s83, %s85
      %p89 = scmp.eq.s32.totalorder %s28, 0
      %p90 = por %p88, %p89
      %p91 = scmp.ne.s32.totalorder %s83, %s85
      %p92 = scmp.eq.s32.totalorder %s33, 1
      %p93 = por %p91, %p92
      %p94 = scmp.ne.s32.totalorder %s85, %s86
      %p95 = scmp.eq.s32.totalorder %s33, 0
      %p96 = por %p94, %p95
      %p97 = scmp.ne.s32.totalorder %s85, %s86
      %p98 = scmp.eq.s32.totalorder %s34, 1
      %p99 = por %p97, %p98
      %p101 = scmp.ne.s32.totalorder %s86, %s100
      %p102 = scmp.eq.s32.totalorder %s34, 0
      %p103 = por %p101, %p102
      %s105 = sadd.s32 %s104, 1
      %p108 = scmp.eq.s32.totalorder %s28, 1
      %p109 = scmp.ne.s32.totalorder %s104, %s106
      %p110 = scmp.eq.s32.totalorder %s28, 0
      %p111 = por %p109, %p110
      %p112 = scmp.ne.s32.totalorder %s104, %s106
      %p113 = scmp.eq.s32.totalorder %s33, 1
      %p114 = por %p112, %p113
      %p115 = scmp.ne.s32.totalorder %s106, %s107
      %p116 = scmp.eq.s32.totalorder %s33, 0
      %p117 = por %p115, %p116
      %p118 = scmp.ne.s32.totalorder %s106, %s107
      %p119 = scmp.eq.s32.totalorder %s34, 1
      %p120 = por %p118, %p119
      %p122 = scmp.ne.s32.totalorder %s107, %s121
      %p123 = scmp.eq.s32.totalorder %s34, 0
      %p124 = por %p122, %p123
      %s126 = sadd.s32 %s125, 1
      %p129 = scmp.eq.s32.totalorder %s28, 1
      %p130 = scmp.ne.s32.totalorder %s125, %s127
      %p131 = scmp.eq.s32.totalorder %s28, 0
      %p132 = por %p130, %p131
      %p133 = scmp.ne.s32.totalorder %s125, %s127
      %p134 = scmp.eq.s32.totalorder %s33, 1
      %p135 = por %p133, %p134
      %p136 = scmp.ne.s32.totalorder %s127, %s128
      %p137 = scmp.eq.s32.totalorder %s33, 0
      %p138 = por %p136, %p137
      %p139 = scmp.ne.s32.totalorder %s127, %s128
      %p140 = scmp.eq.s32.totalorder %s34, 1
      %p141 = por %p139, %p140
      %p143 = scmp.ne.s32.totalorder %s128, %s142
      %p144 = scmp.eq.s32.totalorder %s34, 0
      %p145 = por %p143, %p144
      %s147 = sadd.s32 %s146, 1
      %p150 = scmp.eq.s32.totalorder %s28, 1
      %p151 = scmp.ne.s32.totalorder %s146, %s148
      %p152 = scmp.eq.s32.totalorder %s28, 0
      %p153 = por %p151, %p152
      %p154 = scmp.ne.s32.totalorder %s146, %s148
      %p155 = scmp.eq.s32.totalorder %s33, 1
      %p156 = por %p154, %p155
      %p157 = scmp.ne.s32.totalorder %s148, %s149
      %p158 = scmp.eq.s32.totalorder %s33, 0
      %p159 = por %p157, %p158
      %p160 = scmp.ne.s32.totalorder %s148, %s149
      %p161 = scmp.eq.s32.totalorder %s34, 1
      %p162 = por %p160, %p161
      %p164 = scmp.ne.s32.totalorder %s149, %s163
      %p165 = scmp.eq.s32.totalorder %s34, 0
      %p166 = por %p164, %p165
      %s168 = sadd.s32 %s167, 1
      %p171 = scmp.eq.s32.totalorder %s28, 1
      %p172 = scmp.ne.s32.totalorder %s167, %s169
      %p173 = scmp.eq.s32.totalorder %s28, 0
      %p174 = por %p172, %p173
      %p175 = scmp.ne.s32.totalorder %s167, %s169
      %p176 = scmp.eq.s32.totalorder %s33, 1
      %p177 = por %p175, %p176
      %p178 = scmp.ne.s32.totalorder %s169, %s170
      %p179 = scmp.eq.s32.totalorder %s33, 0
      %p180 = por %p178, %p179
      %p181 = scmp.ne.s32.totalorder %s169, %s170
      %p182 = scmp.eq.s32.totalorder %s34, 1
      %p183 = por %p181, %p182
      %p185 = scmp.ne.s32.totalorder %s170, %s184
      %p186 = scmp.eq.s32.totalorder %s34, 0
      %p187 = por %p185, %p186
      %s189 = sadd.s32 %s188, 1
      %p192 = scmp.eq.s32.totalorder %s28, 1
      %p193 = scmp.ne.s32.totalorder %s188, %s190
      %p194 = scmp.eq.s32.totalorder %s28, 0
      %p195 = por %p193, %p194
      %p196 = scmp.ne.s32.totalorder %s188, %s190
      %p197 = scmp.eq.s32.totalorder %s33, 1
      %p198 = por %p196, %p197
      %p199 = scmp.ne.s32.totalorder %s190, %s191
      %p200 = scmp.eq.s32.totalorder %s33, 0
      %p201 = por %p199, %p200
      %p202 = scmp.ne.s32.totalorder %s190, %s191
      %p203 = scmp.eq.s32.totalorder %s34, 1
      %p204 = por %p202, %p203
      %p206 = scmp.ne.s32.totalorder %s191, %s205
      %p207 = scmp.eq.s32.totalorder %s34, 0
      %p208 = por %p206, %p207
      %s210 = sadd.s32 %s209, 1
      %p213 = scmp.eq.s32.totalorder %s28, 1
      %p214 = scmp.ne.s32.totalorder %s209, %s211
      %p215 = scmp.eq.s32.totalorder %s28, 0
      %p216 = por %p214, %p215
      %p217 = scmp.ne.s32.totalorder %s209, %s211
      %p218 = scmp.eq.s32.totalorder %s33, 1
      %p219 = por %p217, %p218
      %p220 = scmp.ne.s32.totalorder %s211, %s212
      %p221 = scmp.eq.s32.totalorder %s33, 0
      %p222 = por %p220, %p221
      %p223 = scmp.ne.s32.totalorder %s211, %s212
      %p224 = scmp.eq.s32.totalorder %s34, 1
      %p225 = por %p223, %p224
      %p227 = scmp.ne.s32.totalorder %s212, %s226
      %p228 = scmp.eq.s32.totalorder %s34, 0
      %p229 = por %p227, %p228
      %s231 = sadd.s32 %s230, 1
      %p234 = scmp.eq.s32.totalorder %s28, 1
      %p235 = scmp.ne.s32.totalorder %s230, %s232
      %p236 = scmp.eq.s32.totalorder %s28, 0
      %p237 = por %p235, %p236
      %p238 = scmp.ne.s32.totalorder %s230, %s232
      %p239 = scmp.eq.s32.totalorder %s33, 1
      %p240 = por %p238, %p239
      %p241 = scmp.ne.s32.totalorder %s232, %s233
      %p242 = scmp.eq.s32.totalorder %s33, 0
      %p243 = por %p241, %p242
      %p244 = scmp.ne.s32.totalorder %s232, %s233
      %p245 = scmp.eq.s32.totalorder %s34, 1
      %p246 = por %p244, %p245
      %p248 = scmp.ne.s32.totalorder %s233, %s247
      %p249 = scmp.eq.s32.totalorder %s34, 0
      %p250 = por %p248, %p249
      %s252 = sadd.s32 %s251, 1
      %p255 = scmp.eq.s32.totalorder %s28, 1
      %p256 = scmp.ne.s32.totalorder %s251, %s253
      %p257 = scmp.eq.s32.totalorder %s28, 0
      %p258 = por %p256, %p257
      %p259 = scmp.ne.s32.totalorder %s251, %s253
      %p260 = scmp.eq.s32.totalorder %s33, 1
      %p261 = por %p259, %p260
      %p262 = scmp.ne.s32.totalorder %s253, %s254
      %p263 = scmp.eq.s32.totalorder %s33, 0
      %p264 = por %p262, %p263
      %p265 = scmp.ne.s32.totalorder %s253, %s254
      %p266 = scmp.eq.s32.totalorder %s34, 1
      %p267 = por %p265, %p266
      %p269 = scmp.ne.s32.totalorder %s254, %s268
      %p270 = scmp.eq.s32.totalorder %s34, 0
      %p271 = por %p269, %p270
      %s273 = sadd.s32 %s272, 1
      %p276 = scmp.eq.s32.totalorder %s28, 1
      %p277 = scmp.ne.s32.totalorder %s272, %s274
      %p278 = scmp.eq.s32.totalorder %s28, 0
      %p279 = por %p277, %p278
      %p280 = scmp.ne.s32.totalorder %s272, %s274
      %p281 = scmp.eq.s32.totalorder %s33, 1
      %p282 = por %p280, %p281
      %p283 = scmp.ne.s32.totalorder %s274, %s275
      %p284 = scmp.eq.s32.totalorder %s33, 0
      %p285 = por %p283, %p284
      %p286 = scmp.ne.s32.totalorder %s274, %s275
      %p287 = scmp.eq.s32.totalorder %s34, 1
      %p288 = por %p286, %p287
      %p290 = scmp.ne.s32.totalorder %s275, %s289
      %p291 = scmp.eq.s32.totalorder %s34, 0
      %p292 = por %p290, %p291
      %s293 = ssub.s32 %s28, %s35
      %p294 = scmp.eq.s32.totalorder %s293, 0
      %s296 = sadd.s32 %s295, 1
      %s297 = scalar_select %p294, %s295, %s296
      %p300 = pneg %p294
      %p301 = scmp.eq.s32.totalorder %s28, 1
      %p302 = por %p300, %p301
      %p303 = scmp.ne.s32.totalorder %s295, %s298
      %p304 = scmp.eq.s32.totalorder %s28, 0
      %p305 = por %p303, %p304
      %p306 = scmp.ne.s32.totalorder %s295, %s298
      %p307 = scmp.eq.s32.totalorder %s33, 1
      %p308 = por %p306, %p307
      %p309 = scmp.ne.s32.totalorder %s298, %s299
      %p310 = scmp.eq.s32.totalorder %s33, 0
      %p311 = por %p309, %p310
      %p312 = scmp.ne.s32.totalorder %s298, %s299
      %p313 = scmp.eq.s32.totalorder %s34, 1
      %p314 = por %p312, %p313
      %p316 = scmp.ne.s32.totalorder %s299, %s315
      %p317 = scmp.eq.s32.totalorder %s34, 0
      %p318 = por %p316, %p317
      %p319 = scmp.le.s32.totalorder 1, %s28
      %p320 = scmp.lt.s32.totalorder %s28, 3
      %p321 = pnand %p319, %p320
      %p322 = pneg %p321
      // Predicated region
      $region9: #{tpu_custom_call.1} parent=5 // pred_check
        _
      $region10: #{tpu_custom_call.1} parent=5 // pred_check_branch
        %324 = sbr.rel (%p321) target = $region12
      $region11: #{tpu_custom_call.1} parent=5 // pred_region
        %s325 = ssub.s32 %s28, 1
        // Predicated region
        $region13: #{tpu_custom_call.1} parent=11 // pred_check
          %p326 = pneg %p49
        $region14: #{tpu_custom_call.1} parent=11 // pred_check_branch
          %328 = sbr.rel (%p326) target = $region16
        $region15: #{tpu_custom_call.1} parent=11 // pred_region
          _
        $region16: #{tpu_custom_call.1} parent=11 // pred_fallthru
          _
        // Predicated region
        $region17: #{tpu_custom_call.1} parent=11 // pred_check
          %p329 = pneg %p96
        $region18: #{tpu_custom_call.1} parent=11 // pred_check_branch
          %331 = sbr.rel (%p329) target = $region20
        $region19: #{tpu_custom_call.1} parent=11 // pred_region
          _
        $region20: #{tpu_custom_call.1} parent=11 // pred_fallthru
          _
        // Predicated region
        $region21: #{tpu_custom_call.1} parent=11 // pred_check
          %p332 = pneg %p117
        $region22: #{tpu_custom_call.1} parent=11 // pred_check_branch
          %334 = sbr.rel (%p332) target = $region24
        $region23: #{tpu_custom_call.1} parent=11 // pred_region
          _
        $region24: #{tpu_custom_call.1} parent=11 // pred_fallthru
          _
        // Predicated region
        $region25: #{tpu_custom_call.1} parent=11 // pred_check
          %p335 = pneg %p138
        $region26: #{tpu_custom_call.1} parent=11 // pred_check_branch
          %337 = sbr.rel (%p335) target = $region28
        $region27: #{tpu_custom_call.1} parent=11 // pred_region
          _
        $region28: #{tpu_custom_call.1} parent=11 // pred_fallthru
          _
        // Predicated region
        $region29: #{tpu_custom_call.1} parent=11 // pred_check
          %p338 = pneg %p159
        $region30: #{tpu_custom_call.1} parent=11 // pred_check_branch
          %340 = sbr.rel (%p338) target = $region32
        $region31: #{tpu_custom_call.1} parent=11 // pred_region
          _
        $region32: #{tpu_custom_call.1} parent=11 // pred_fallthru
          _
        // Predicated region
        $region33: #{tpu_custom_call.1} parent=11 // pred_check
          %p341 = pneg %p180
        $region34: #{tpu_custom_call.1} parent=11 // pred_check_branch
          %343 = sbr.rel (%p341) target = $region36
        $region35: #{tpu_custom_call.1} parent=11 // pred_region
          _
        $region36: #{tpu_custom_call.1} parent=11 // pred_fallthru
          _
        // Predicated region
        $region37: #{tpu_custom_call.1} parent=11 // pred_check
          %p344 = pneg %p201
        $region38: #{tpu_custom_call.1} parent=11 // pred_check_branch
          %346 = sbr.rel (%p344) target = $region40
        $region39: #{tpu_custom_call.1} parent=11 // pred_region
          %s348 = ssub.s32 16, 16
          %349 = vsyncadd [#allocation8], %s348
          %s351 = sshll.u32 [#allocation7], 4
          %s352 = int_to_ptr.vmem [resolvable:$true] %s351
          %354 = dma.hbm_to_vmem [thread:$0]  %s7, 16, %s352, [#allocation8]
        $region40: #{tpu_custom_call.1} parent=11 // pred_fallthru
          _
        // Predicated region
        $region41: #{tpu_custom_call.1} parent=11 // pred_check
          %p355 = pneg %p222
        $region42: #{tpu_custom_call.1} parent=11 // pred_check_branch
          %357 = sbr.rel (%p355) target = $region44
        $region43: #{tpu_custom_call.1} parent=11 // pred_region
          _
        $region44: #{tpu_custom_call.1} parent=11 // pred_fallthru
          _
        // Predicated region
        $region45: #{tpu_custom_call.1} parent=11 // pred_check
          %p358 = pneg %p243
        $region46: #{tpu_custom_call.1} parent=11 // pred_check_branch
          %360 = sbr.rel (%p358) target = $region48
        $region47: #{tpu_custom_call.1} parent=11 // pred_region
          _
        $region48: #{tpu_custom_call.1} parent=11 // pred_fallthru
          _
        // Predicated region
        $region49: #{tpu_custom_call.1} parent=11 // pred_check
          %p361 = pneg %p264
        $region50: #{tpu_custom_call.1} parent=11 // pred_check_branch
          %363 = sbr.rel (%p361) target = $region52
        $region51: #{tpu_custom_call.1} parent=11 // pred_region
          _
        $region52: #{tpu_custom_call.1} parent=11 // pred_fallthru
          _
        // Predicated region
        $region53: #{tpu_custom_call.1} parent=11 // pred_check
          %p364 = pneg %p285
        $region54: #{tpu_custom_call.1} parent=11 // pred_check_branch
          %366 = sbr.rel (%p364) target = $region56
        $region55: #{tpu_custom_call.1} parent=11 // pred_region
          _
        $region56: #{tpu_custom_call.1} parent=11 // pred_fallthru
          _
      $region12: #{tpu_custom_call.1} parent=5 // pred_fallthru
        _
      %p367 = scmp.lt.s32.totalorder %s28, 2
      // Predicated region
      $region57: #{tpu_custom_call.1} parent=5 // pred_check
        %p368 = pneg %p367
      $region58: #{tpu_custom_call.1} parent=5 // pred_check_branch
        %370 = sbr.rel (%p368) target = $region60
      $region59: #{tpu_custom_call.1} parent=5 // pred_region
        // Predicated region
        $region61: #{tpu_custom_call.1} parent=59 // pred_check
          %p371 = pneg %p69
        $region62: #{tpu_custom_call.1} parent=59 // pred_check_branch
          %373 = sbr.rel (%p371) target = $region64
        $region63: #{tpu_custom_call.1} parent=59 // pred_region
          %s374 = sand.u32 %s59, 1
          %s375 = scalar_lea.sflag [#allocation5], %s374
          %s376 = sand.u32 %s59, 1
          %s377 = smul.addr %s376, 512
          %s378 = scalar_lea.vmem [#allocation4], %s377
          %s379 = smul.u32 64, %s28
          %s381 = ssub.s32 8192, 8192
          %382 = vsyncadd %s375, %s381
          %s383 = smul.addr %s379, 128
          %s384 = scalar_lea.hbm %s1, %s383
          %s385 = sshll.u32 %s378, 4
          %s386 = int_to_ptr.vmem [resolvable:$true] %s385
          %391 = dma.hbm_to_vmem [thread:$0]  %s384, 8192, %s386, %s375, 128, 128, 8
        $region64: #{tpu_custom_call.1} parent=59 // pred_fallthru
          _
      $region60: #{tpu_custom_call.1} parent=5 // pred_fallthru
        _
      %p392 = scmp.le.s32.totalorder 1, %s28
      %p393 = scmp.lt.s32.totalorder %s28, 3
      %p394 = pnand %p392, %p393
      %p395 = pneg %p394
      // Predicated region
      $region65: #{tpu_custom_call.1} parent=5 // pred_check
        _
      $region66: #{tpu_custom_call.1} parent=5 // pred_check_branch
        %397 = sbr.rel (%p394) target = $region68
      $region67: #{tpu_custom_call.1} parent=5 // pred_region
        %s398 = ssub.s32 %s28, 1
        %s399 = sand.u32 %s62, 1
        %s400 = scalar_lea.sflag [#allocation5], %s399
        %s401 = sand.u32 %s62, 1
        %s402 = smul.addr %s401, 512
        %s403 = scalar_lea.vmem [#allocation4], %s402
        // Predicated region
        $region69: #{tpu_custom_call.1} parent=67 // pred_check
          %p404 = pneg %p75
        $region70: #{tpu_custom_call.1} parent=67 // pred_check_branch
          %406 = sbr.rel (%p404) target = $region72
        $region71: #{tpu_custom_call.1} parent=67 // pred_region
          %407 = dma.done %s400, 8192
        $region72: #{tpu_custom_call.1} parent=67 // pred_fallthru
          _
        // Predicated region
        $region73: #{tpu_custom_call.1} parent=67 // pred_check
          %p408 = pneg %p201
        $region74: #{tpu_custom_call.1} parent=67 // pred_check_branch
          %410 = sbr.rel (%p408) target = $region76
        $region75: #{tpu_custom_call.1} parent=67 // pred_region
          %411 = dma.done [#allocation8], 16
        $region76: #{tpu_custom_call.1} parent=67 // pred_fallthru
          _
        %p412 = pneg %p49
        %p413 = pneg %p46
        %s414 = sand.u32 %s62, 1
        %s415 = scalar_lea.sflag [#allocation5], %s414
        %s416 = sand.u32 %s62, 1
        %s417 = smul.addr %s416, 512
        %s418 = scalar_lea.vmem [#allocation4], %s417
        %p419 = pneg %p75
        %p420 = pneg %p72
        %p421 = pneg %p96
        %p422 = pneg %p93
        %p423 = pneg %p117
        %p424 = pneg %p114
        %p425 = pneg %p138
        %p426 = pneg %p135
        %p427 = pneg %p159
        %p428 = pneg %p156
        %p429 = pneg %p180
        %p430 = pneg %p177
        %p431 = pneg %p201
        %p432 = pneg %p198
        %p433 = pneg %p222
        %p434 = pneg %p219
        %p435 = pneg %p243
        %p436 = pneg %p240
        %p437 = pneg %p264
        %p438 = pneg %p261
        %p439 = pneg %p285
        %p440 = pneg %p282
        %p441 = pneg %p311
        %p442 = pneg %p308
        %s443 = sand.u32 %s298, 1
        %s444 = scalar_lea.sflag [#allocation6], %s443
        %s445 = sand.u32 %s298, 1
        %s446 = smul.addr %s445, 4
        %s447 = scalar_lea.vmem [#allocation9], %s446
        %s448 = smul.u32 64, %s33
        %v450 = vld [vmem:[%s403] sm:$0xff]
        %v451 = vld [vmem:[%s403 + $0x8] sm:$0xff]
        %v452 = vld [vmem:[%s403 + $0x10] sm:$0xff]
        %v453 = vld [vmem:[%s403 + $0x18] sm:$0xff]
        %v454 = vld [vmem:[%s403 + $0x20] sm:$0xff]
        %v455 = vld [vmem:[%s403 + $0x28] sm:$0xff]
        %v456 = vld [vmem:[%s403 + $0x30] sm:$0xff]
        %v457 = vld [vmem:[%s403 + $0x38] sm:$0xff]
        %v458 = vld [vmem:[%s403 + $0x40] sm:$0xff]
        %v459 = vld [vmem:[%s403 + $0x48] sm:$0xff]
        %v460 = vld [vmem:[%s403 + $0x50] sm:$0xff]
        %v461 = vld [vmem:[%s403 + $0x58] sm:$0xff]
        %v462 = vld [vmem:[%s403 + $0x60] sm:$0xff]
        %v463 = vld [vmem:[%s403 + $0x68] sm:$0xff]
        %v464 = vld [vmem:[%s403 + $0x70] sm:$0xff]
        %v465 = vld [vmem:[%s403 + $0x78] sm:$0xff]
        %v466 = vld [vmem:[%s403 + $0x80] sm:$0xff]
        %v467 = vld [vmem:[%s403 + $0x88] sm:$0xff]
        %v468 = vld [vmem:[%s403 + $0x90] sm:$0xff]
        %v469 = vld [vmem:[%s403 + $0x98] sm:$0xff]
        %v470 = vld [vmem:[%s403 + $0xa0] sm:$0xff]
        %v471 = vld [vmem:[%s403 + $0xa8] sm:$0xff]
        %v472 = vld [vmem:[%s403 + $0xb0] sm:$0xff]
        %v473 = vld [vmem:[%s403 + $0xb8] sm:$0xff]
        %v474 = vld [vmem:[%s403 + $0xc0] sm:$0xff]
        %v475 = vld [vmem:[%s403 + $0xc8] sm:$0xff]
        %v476 = vld [vmem:[%s403 + $0xd0] sm:$0xff]
        %v477 = vld [vmem:[%s403 + $0xd8] sm:$0xff]
        %v478 = vld [vmem:[%s403 + $0xe0] sm:$0xff]
        %v479 = vld [vmem:[%s403 + $0xe8] sm:$0xff]
        %v480 = vld [vmem:[%s403 + $0xf0] sm:$0xff]
        %v481 = vld [vmem:[%s403 + $0xf8] sm:$0xff]
        %v482 = vld [vmem:[%s403 + $0x100] sm:$0xff]
        %v483 = vld [vmem:[%s403 + $0x108] sm:$0xff]
        %v484 = vld [vmem:[%s403 + $0x110] sm:$0xff]
        %v485 = vld [vmem:[%s403 + $0x118] sm:$0xff]
        %v486 = vld [vmem:[%s403 + $0x120] sm:$0xff]
        %v487 = vld [vmem:[%s403 + $0x128] sm:$0xff]
        %v488 = vld [vmem:[%s403 + $0x130] sm:$0xff]
        %v489 = vld [vmem:[%s403 + $0x138] sm:$0xff]
        %v490 = vld [vmem:[%s403 + $0x140] sm:$0xff]
        %v491 = vld [vmem:[%s403 + $0x148] sm:$0xff]
        %v492 = vld [vmem:[%s403 + $0x150] sm:$0xff]
        %v493 = vld [vmem:[%s403 + $0x158] sm:$0xff]
        %v494 = vld [vmem:[%s403 + $0x160] sm:$0xff]
        %v495 = vld [vmem:[%s403 + $0x168] sm:$0xff]
        %v496 = vld [vmem:[%s403 + $0x170] sm:$0xff]
        %v497 = vld [vmem:[%s403 + $0x178] sm:$0xff]
        %v498 = vld [vmem:[%s403 + $0x180] sm:$0xff]
        %v499 = vld [vmem:[%s403 + $0x188] sm:$0xff]
        %v500 = vld [vmem:[%s403 + $0x190] sm:$0xff]
        %v501 = vld [vmem:[%s403 + $0x198] sm:$0xff]
        %v502 = vld [vmem:[%s403 + $0x1a0] sm:$0xff]
        %v503 = vld [vmem:[%s403 + $0x1a8] sm:$0xff]
        %v504 = vld [vmem:[%s403 + $0x1b0] sm:$0xff]
        %v505 = vld [vmem:[%s403 + $0x1b8] sm:$0xff]
        %v506 = vld [vmem:[%s403 + $0x1c0] sm:$0xff]
        %v507 = vld [vmem:[%s403 + $0x1c8] sm:$0xff]
        %v508 = vld [vmem:[%s403 + $0x1d0] sm:$0xff]
        %v509 = vld [vmem:[%s403 + $0x1d8] sm:$0xff]
        %v510 = vld [vmem:[%s403 + $0x1e0] sm:$0xff]
        %v511 = vld [vmem:[%s403 + $0x1e8] sm:$0xff]
        %v512 = vld [vmem:[%s403 + $0x1f0] sm:$0xff]
        %v513 = vld [vmem:[%s403 + $0x1f8] sm:$0xff]
        %v514 = vpack.c.bf16 %v451, %v450
        %v515 = vpack.c.bf16 %v453, %v452
        %v516 = vpack.c.bf16 %v455, %v454
        %v517 = vpack.c.bf16 %v457, %v456
        %v518 = vpack.c.bf16 %v459, %v458
        %v519 = vpack.c.bf16 %v461, %v460
        %v520 = vpack.c.bf16 %v463, %v462
        %v521 = vpack.c.bf16 %v465, %v464
        %v522 = vpack.c.bf16 %v467, %v466
        %v523 = vpack.c.bf16 %v469, %v468
        %v524 = vpack.c.bf16 %v471, %v470
        %v525 = vpack.c.bf16 %v473, %v472
        %v526 = vpack.c.bf16 %v475, %v474
        %v527 = vpack.c.bf16 %v477, %v476
        %v528 = vpack.c.bf16 %v479, %v478
        %v529 = vpack.c.bf16 %v481, %v480
        %v530 = vpack.c.bf16 %v483, %v482
        %v531 = vpack.c.bf16 %v485, %v484
        %v532 = vpack.c.bf16 %v487, %v486
        %v533 = vpack.c.bf16 %v489, %v488
        %v534 = vpack.c.bf16 %v491, %v490
        %v535 = vpack.c.bf16 %v493, %v492
        %v536 = vpack.c.bf16 %v495, %v494
        %v537 = vpack.c.bf16 %v497, %v496
        %v538 = vpack.c.bf16 %v499, %v498
        %v539 = vpack.c.bf16 %v501, %v500
        %v540 = vpack.c.bf16 %v503, %v502
        %v541 = vpack.c.bf16 %v505, %v504
        %v542 = vpack.c.bf16 %v507, %v506
        %v543 = vpack.c.bf16 %v509, %v508
        %v544 = vpack.c.bf16 %v511, %v510
        %v545 = vpack.c.bf16 %v513, %v512
        %v546 = vld [vmem:[%s2] sm:$0xf]
        %v547 = vld [vmem:[%s2 + $0x4] sm:$0xf]
        %v548 = vld [vmem:[%s2 + $0x8] sm:$0xf]
        %v549 = vld [vmem:[%s2 + $0xc] sm:$0xf]
        %v550 = vld [vmem:[%s2 + $0x10] sm:$0xf]
        %v551 = vld [vmem:[%s2 + $0x14] sm:$0xf]
        %v552 = vld [vmem:[%s2 + $0x18] sm:$0xf]
        %v553 = vld [vmem:[%s2 + $0x1c] sm:$0xf]
        %v554 = vld [vmem:[%s2 + $0x20] sm:$0xf]
        %v555 = vld [vmem:[%s2 + $0x24] sm:$0xf]
        %v556 = vld [vmem:[%s2 + $0x28] sm:$0xf]
        %v557 = vld [vmem:[%s2 + $0x2c] sm:$0xf]
        %v558 = vld [vmem:[%s2 + $0x30] sm:$0xf]
        %v559 = vld [vmem:[%s2 + $0x34] sm:$0xf]
        %v560 = vld [vmem:[%s2 + $0x38] sm:$0xf]
        %v561 = vld [vmem:[%s2 + $0x3c] sm:$0xf]
        %v562 = vld [vmem:[%s3] sm:$0x1]
        %v564 = vlaneseq
        %v565 = vshrl.u32 %v564, 7
        %v566 = vsub.s32 0, %v565
        %v567 = vrot.slane %v562, %v566
        %v585 = vunpack.c.l.b16 %v546
        %v586 = vunpack.c.l.b16 %v547
        %v587 = vunpack.c.l.b16 %v548
        %v588 = vunpack.c.l.b16 %v549
        %v589 = vunpack.c.l.b16 %v550
        %v590 = vunpack.c.l.b16 %v551
        %v591 = vunpack.c.l.b16 %v552
        %v592 = vunpack.c.l.b16 %v553
        %v593 = vunpack.c.l.b16 %v554
        %v594 = vunpack.c.l.b16 %v555
        %v595 = vunpack.c.l.b16 %v556
        %v596 = vunpack.c.l.b16 %v557
        %v597 = vunpack.c.l.b16 %v558
        %v598 = vunpack.c.l.b16 %v559
        %v599 = vunpack.c.l.b16 %v560
        %v600 = vunpack.c.l.b16 %v561
        %v601 = vpack.c.b16 %v586, %v585
        %v602 = vpack.c.b16 %v588, %v587
        %v603 = vpack.c.b16 %v590, %v589
        %v604 = vpack.c.b16 %v592, %v591
        %v605 = vpack.c.b16 %v594, %v593
        %v606 = vpack.c.b16 %v596, %v595
        %v607 = vpack.c.b16 %v598, %v597
        %v608 = vpack.c.b16 %v600, %v599
        %617 = vmatprep.subr.bf16.mxu0 0
        %618 = vmatpush1.bf16.msra.mxu0 %v601
        %619 = vmatprep.subr.bf16.mxu0 0
        %620 = vmatpush1.bf16.msra.mxu0 %v602
        %621 = vmatprep.subr.bf16.mxu0 0
        %622 = vmatpush1.bf16.msra.mxu0 %v603
        %623 = vmatprep.subr.bf16.mxu0 0
        %624 = vmatpush1.bf16.msra.mxu0 %v604
        %625 = vmatprep.subr.bf16.mxu0 0
        %626 = vmatpush1.bf16.msra.mxu0 %v605
        %627 = vmatprep.subr.bf16.mxu0 0
        %628 = vmatpush1.bf16.msra.mxu0 %v606
        %629 = vmatprep.subr.bf16.mxu0 0
        %630 = vmatpush1.bf16.msra.mxu0 %v607
        %631 = vmatprep.subr.bf16.mxu0 0
        %632 = vmatpush1.bf16.msra.mxu0 %v608
        %633 = vmatprep.subr.bf16.mxu0 0
        %634 = vmatpush1.bf16.msra.mxu0 0
        %635 = vmatprep.subr.bf16.mxu0 0
        %636 = vmatpush1.bf16.msra.mxu0 0
        %637 = vmatprep.subr.bf16.mxu0 0
        %638 = vmatpush1.bf16.msra.mxu0 0
        %639 = vmatprep.subr.bf16.mxu0 0
        %640 = vmatpush1.bf16.msra.mxu0 0
        %641 = vmatprep.subr.bf16.mxu0 0
        %642 = vmatpush1.bf16.msra.mxu0 0
        %643 = vmatprep.subr.bf16.mxu0 0
        %644 = vmatpush1.bf16.msra.mxu0 0
        %645 = vmatprep.subr.bf16.mxu0 0
        %646 = vmatpush1.bf16.msra.mxu0 0
        %647 = vmatprep.subr.bf16.mxu0 0
        %648 = vmatpush1.bf16.msra.mxu0 0
        %649 = vmatprep.mubr.bf16.mxu0 0
        %650 = vmatmul.mubr.bf16.gmra.mrb[0].mxu0 %v514
        %v651 = vpop.f32.mrb[0].mxu0
        %v652 = vadd.f32 %v567, %v651
        %v653 = vpop.f32.mrb[0].mxu0
        %v654 = vpop.f32.mrb[0].mxu0
        %v655 = vadd.f32 %v567, %v654
        %v656 = vpop.f32.mrb[0].mxu0
        %657 = vmatprep.mubr.bf16.mxu0 0
        %658 = vmatmul.mubr.bf16.gmra.mrb[0].mxu0 %v515
        %v659 = vpop.f32.mrb[0].mxu0
        %v660 = vadd.f32 %v567, %v659
        %v661 = vpop.f32.mrb[0].mxu0
        %v662 = vpop.f32.mrb[0].mxu0
        %v663 = vadd.f32 %v567, %v662
        %v664 = vpop.f32.mrb[0].mxu0
        %665 = vmatprep.mubr.bf16.mxu0 0
        %666 = vmatmul.mubr.bf16.gmra.mrb[0].mxu0 %v516
        %v667 = vpop.f32.mrb[0].mxu0
        %v668 = vadd.f32 %v567, %v667
        %v669 = vpop.f32.mrb[0].mxu0
        %v670 = vpop.f32.mrb[0].mxu0
        %v671 = vadd.f32 %v567, %v670
        %v672 = vpop.f32.mrb[0].mxu0
        %673 = vmatprep.mubr.bf16.mxu0 0
        %674 = vmatmul.mubr.bf16.gmra.mrb[0].mxu0 %v517
        %v675 = vpop.f32.mrb[0].mxu0
        %v676 = vadd.f32 %v567, %v675
        %v677 = vpop.f32.mrb[0].mxu0
        %v678 = vpop.f32.mrb[0].mxu0
        %v679 = vadd.f32 %v567, %v678
        %v680 = vpop.f32.mrb[0].mxu0
        %681 = vmatprep.mubr.bf16.mxu0 0
        %682 = vmatmul.mubr.bf16.gmra.mrb[0].mxu0 %v518
        %v683 = vpop.f32.mrb[0].mxu0
        %v684 = vadd.f32 %v567, %v683
        %v685 = vpop.f32.mrb[0].mxu0
        %v686 = vpop.f32.mrb[0].mxu0
        %v687 = vadd.f32 %v567, %v686
        %v688 = vpop.f32.mrb[0].mxu0
        %689 = vmatprep.mubr.bf16.mxu0 0
        %690 = vmatmul.mubr.bf16.gmra.mrb[0].mxu0 %v519
        %v691 = vpop.f32.mrb[0].mxu0
        %v692 = vadd.f32 %v567, %v691
        %v693 = vpop.f32.mrb[0].mxu0
        %v694 = vpop.f32.mrb[0].mxu0
        %v695 = vadd.f32 %v567, %v694
        %v696 = vpop.f32.mrb[0].mxu0
        %697 = vmatprep.mubr.bf16.mxu0 0
        %698 = vmatmul.mubr.bf16.gmra.mrb[0].mxu0 %v520
        %v699 = vpop.f32.mrb[0].mxu0
        %v700 = vadd.f32 %v567, %v699
        %v701 = vpop.f32.mrb[0].mxu0
        %v702 = vpop.f32.mrb[0].mxu0
        %v703 = vadd.f32 %v567, %v702
        %v704 = vpop.f32.mrb[0].mxu0
        %705 = vmatprep.mubr.bf16.mxu0 0
        %706 = vmatmul.mubr.bf16.gmra.mrb[0].mxu0 %v521
        %v707 = vpop.f32.mrb[0].mxu0
        %v708 = vadd.f32 %v567, %v707
        %v709 = vpop.f32.mrb[0].mxu0
        %v710 = vpop.f32.mrb[0].mxu0
        %v711 = vadd.f32 %v567, %v710
        %v712 = vpop.f32.mrb[0].mxu0
        %713 = vmatprep.mubr.bf16.mxu0 0
        %714 = vmatmul.mubr.bf16.gmra.mrb[0].mxu0 %v522
        %v715 = vpop.f32.mrb[0].mxu0
        %v716 = vadd.f32 %v567, %v715
        %v717 = vpop.f32.mrb[0].mxu0
        %v718 = vpop.f32.mrb[0].mxu0
        %v719 = vadd.f32 %v567, %v718
        %v720 = vpop.f32.mrb[0].mxu0
        %721 = vmatprep.mubr.bf16.mxu0 0
        %722 = vmatmul.mubr.bf16.gmra.mrb[0].mxu0 %v523
        %v723 = vpop.f32.mrb[0].mxu0
        %v724 = vadd.f32 %v567, %v723
        %v725 = vpop.f32.mrb[0].mxu0
        %v726 = vpop.f32.mrb[0].mxu0
        %v727 = vadd.f32 %v567, %v726
        %v728 = vpop.f32.mrb[0].mxu0
        %729 = vmatprep.mubr.bf16.mxu0 0
        %730 = vmatmul.mubr.bf16.gmra.mrb[0].mxu0 %v524
        %v731 = vpop.f32.mrb[0].mxu0
        %v732 = vadd.f32 %v567, %v731
        %v733 = vpop.f32.mrb[0].mxu0
        %v734 = vpop.f32.mrb[0].mxu0
        %v735 = vadd.f32 %v567, %v734
        %v736 = vpop.f32.mrb[0].mxu0
        %737 = vmatprep.mubr.bf16.mxu0 0
        %738 = vmatmul.mubr.bf16.gmra.mrb[0].mxu0 %v525
        %v739 = vpop.f32.mrb[0].mxu0
        %v740 = vadd.f32 %v567, %v739
        %v741 = vpop.f32.mrb[0].mxu0
        %v742 = vpop.f32.mrb[0].mxu0
        %v743 = vadd.f32 %v567, %v742
        %v744 = vpop.f32.mrb[0].mxu0
        %745 = vmatprep.mubr.bf16.mxu0 0
        %746 = vmatmul.mubr.bf16.gmra.mrb[0].mxu0 %v526
        %v747 = vpop.f32.mrb[0].mxu0
        %v748 = vadd.f32 %v567, %v747
        %v749 = vpop.f32.mrb[0].mxu0
        %v750 = vpop.f32.mrb[0].mxu0
        %v751 = vadd.f32 %v567, %v750
        %v752 = vpop.f32.mrb[0].mxu0
        %753 = vmatprep.mubr.bf16.mxu0 0
        %754 = vmatmul.mubr.bf16.gmra.mrb[0].mxu0 %v527
        %v755 = vpop.f32.mrb[0].mxu0
        %v756 = vadd.f32 %v567, %v755
        %v757 = vpop.f32.mrb[0].mxu0
        %v758 = vpop.f32.mrb[0].mxu0
        %v759 = vadd.f32 %v567, %v758
        %v760 = vpop.f32.mrb[0].mxu0
        %761 = vmatprep.mubr.bf16.mxu0 0
        %762 = vmatmul.mubr.bf16.gmra.mrb[0].mxu0 %v528
        %v763 = vpop.f32.mrb[0].mxu0
        %v764 = vadd.f32 %v567, %v763
        %v765 = vpop.f32.mrb[0].mxu0
        %v766 = vpop.f32.mrb[0].mxu0
        %v767 = vadd.f32 %v567, %v766
        %v768 = vpop.f32.mrb[0].mxu0
        %769 = vmatprep.mubr.bf16.mxu0 0
        %770 = vmatmul.mubr.bf16.gmra.mrb[0].mxu0 %v529
        %v771 = vpop.f32.mrb[0].mxu0
        %v772 = vadd.f32 %v567, %v771
        %v773 = vpop.f32.mrb[0].mxu0
        %v774 = vpop.f32.mrb[0].mxu0
        %v775 = vadd.f32 %v567, %v774
        %v776 = vpop.f32.mrb[0].mxu0
        %777 = vmatprep.mubr.bf16.mxu0 0
        %778 = vmatmul.mubr.bf16.gmra.mrb[0].mxu0 %v530
        %v779 = vpop.f32.mrb[0].mxu0
        %v780 = vadd.f32 %v567, %v779
        %v781 = vpop.f32.mrb[0].mxu0
        %v782 = vpop.f32.mrb[0].mxu0
        %v783 = vadd.f32 %v567, %v782
        %v784 = vpop.f32.mrb[0].mxu0
        %785 = vmatprep.mubr.bf16.mxu0 0
        %786 = vmatmul.mubr.bf16.gmra.mrb[0].mxu0 %v531
        %v787 = vpop.f32.mrb[0].mxu0
        %v788 = vadd.f32 %v567, %v787
        %v789 = vpop.f32.mrb[0].mxu0
        %v790 = vpop.f32.mrb[0].mxu0
        %v791 = vadd.f32 %v567, %v790
        %v792 = vpop.f32.mrb[0].mxu0
        %793 = vmatprep.mubr.bf16.mxu0 0
        %794 = vmatmul.mubr.bf16.gmra.mrb[0].mxu0 %v532
        %v795 = vpop.f32.mrb[0].mxu0
        %v796 = vadd.f32 %v567, %v795
        %v797 = vpop.f32.mrb[0].mxu0
        %v798 = vpop.f32.mrb[0].mxu0
        %v799 = vadd.f32 %v567, %v798
        %v800 = vpop.f32.mrb[0].mxu0
        %801 = vmatprep.mubr.bf16.mxu0 0
        %802 = vmatmul.mubr.bf16.gmra.mrb[0].mxu0 %v533
        %v803 = vpop.f32.mrb[0].mxu0
        %v804 = vadd.f32 %v567, %v803
        %v805 = vpop.f32.mrb[0].mxu0
        %v806 = vpop.f32.mrb[0].mxu0
        %v807 = vadd.f32 %v567, %v806
        %v808 = vpop.f32.mrb[0].mxu0
        %809 = vmatprep.mubr.bf16.mxu0 0
        %810 = vmatmul.mubr.bf16.gmra.mrb[0].mxu0 %v534
        %v811 = vpop.f32.mrb[0].mxu0
        %v812 = vadd.f32 %v567, %v811
        %v813 = vpop.f32.mrb[0].mxu0
        %v814 = vpop.f32.mrb[0].mxu0
        %v815 = vadd.f32 %v567, %v814
        %v816 = vpop.f32.mrb[0].mxu0
        %817 = vmatprep.mubr.bf16.mxu0 0
        %818 = vmatmul.mubr.bf16.gmra.mrb[0].mxu0 %v535
        %v819 = vpop.f32.mrb[0].mxu0
        %v820 = vadd.f32 %v567, %v819
        %v821 = vpop.f32.mrb[0].mxu0
        %v822 = vpop.f32.mrb[0].mxu0
        %v823 = vadd.f32 %v567, %v822
        %v824 = vpop.f32.mrb[0].mxu0
        %825 = vmatprep.mubr.bf16.mxu0 0
        %826 = vmatmul.mubr.bf16.gmra.mrb[0].mxu0 %v536
        %v827 = vpop.f32.mrb[0].mxu0
        %v828 = vadd.f32 %v567, %v827
        %v829 = vpop.f32.mrb[0].mxu0
        %v830 = vpop.f32.mrb[0].mxu0
        %v831 = vadd.f32 %v567, %v830
        %v832 = vpop.f32.mrb[0].mxu0
        %833 = vmatprep.mubr.bf16.mxu0 0
        %834 = vmatmul.mubr.bf16.gmra.mrb[0].mxu0 %v537
        %v835 = vpop.f32.mrb[0].mxu0
        %v836 = vadd.f32 %v567, %v835
        %v837 = vpop.f32.mrb[0].mxu0
        %v838 = vpop.f32.mrb[0].mxu0
        %v839 = vadd.f32 %v567, %v838
        %v840 = vpop.f32.mrb[0].mxu0
        %841 = vmatprep.mubr.bf16.mxu0 0
        %842 = vmatmul.mubr.bf16.gmra.mrb[0].mxu0 %v538
        %v843 = vpop.f32.mrb[0].mxu0
        %v844 = vadd.f32 %v567, %v843
        %v845 = vpop.f32.mrb[0].mxu0
        %v846 = vpop.f32.mrb[0].mxu0
        %v847 = vadd.f32 %v567, %v846
        %v848 = vpop.f32.mrb[0].mxu0
        %849 = vmatprep.mubr.bf16.mxu0 0
        %850 = vmatmul.mubr.bf16.gmra.mrb[0].mxu0 %v539
        %v851 = vpop.f32.mrb[0].mxu0
        %v852 = vadd.f32 %v567, %v851
        %v853 = vpop.f32.mrb[0].mxu0
        %v854 = vpop.f32.mrb[0].mxu0
        %v855 = vadd.f32 %v567, %v854
        %v856 = vpop.f32.mrb[0].mxu0
        %857 = vmatprep.mubr.bf16.mxu0 0
        %858 = vmatmul.mubr.bf16.gmra.mrb[0].mxu0 %v540
        %v859 = vpop.f32.mrb[0].mxu0
        %v860 = vadd.f32 %v567, %v859
        %v861 = vpop.f32.mrb[0].mxu0
        %v862 = vpop.f32.mrb[0].mxu0
        %v863 = vadd.f32 %v567, %v862
        %v864 = vpop.f32.mrb[0].mxu0
        %865 = vmatprep.mubr.bf16.mxu0 0
        %866 = vmatmul.mubr.bf16.gmra.mrb[0].mxu0 %v541
        %v867 = vpop.f32.mrb[0].mxu0
        %v868 = vadd.f32 %v567, %v867
        %v869 = vpop.f32.mrb[0].mxu0
        %v870 = vpop.f32.mrb[0].mxu0
        %v871 = vadd.f32 %v567, %v870
        %v872 = vpop.f32.mrb[0].mxu0
        %873 = vmatprep.mubr.bf16.mxu0 0
        %874 = vmatmul.mubr.bf16.gmra.mrb[0].mxu0 %v542
        %v875 = vpop.f32.mrb[0].mxu0
        %v876 = vadd.f32 %v567, %v875
        %v877 = vpop.f32.mrb[0].mxu0
        %v878 = vpop.f32.mrb[0].mxu0
        %v879 = vadd.f32 %v567, %v878
        %v880 = vpop.f32.mrb[0].mxu0
        %881 = vmatprep.mubr.bf16.mxu0 0
        %882 = vmatmul.mubr.bf16.gmra.mrb[0].mxu0 %v543
        %v883 = vpop.f32.mrb[0].mxu0
        %v884 = vadd.f32 %v567, %v883
        %v885 = vpop.f32.mrb[0].mxu0
        %v886 = vpop.f32.mrb[0].mxu0
        %v887 = vadd.f32 %v567, %v886
        %v888 = vpop.f32.mrb[0].mxu0
        %889 = vmatprep.mubr.bf16.mxu0 0
        %890 = vmatmul.mubr.bf16.gmra.mrb[0].mxu0 %v544
        %v891 = vpop.f32.mrb[0].mxu0
        %v892 = vadd.f32 %v567, %v891
        %v893 = vpop.f32.mrb[0].mxu0
        %v894 = vpop.f32.mrb[0].mxu0
        %v895 = vadd.f32 %v567, %v894
        %v896 = vpop.f32.mrb[0].mxu0
        %897 = vmatprep.mubr.bf16.mxu0 0
        %898 = vmatmul.mubr.bf16.gmra.mrb[0].mxu0 %v545
        %v899 = vpop.f32.mrb[0].mxu0
        %v900 = vadd.f32 %v567, %v899
        %v901 = vpop.f32.mrb[0].mxu0
        %v902 = vpop.f32.mrb[0].mxu0
        %v903 = vadd.f32 %v567, %v902
        %v904 = vpop.f32.mrb[0].mxu0
        %905 = vdwg.mxu0
        %v906 = vmul.f32 %v652, 0.2
        %v907 = vmul.f32 %v655, 0.2
        %v908 = vmul.f32 %v660, 0.2
        %v909 = vmul.f32 %v663, 0.2
        %v910 = vmul.f32 %v668, 0.2
        %v911 = vmul.f32 %v671, 0.2
        %v912 = vmul.f32 %v676, 0.2
        %v913 = vmul.f32 %v679, 0.2
        %v914 = vmul.f32 %v684, 0.2
        %v915 = vmul.f32 %v687, 0.2
        %v916 = vmul.f32 %v692, 0.2
        %v917 = vmul.f32 %v695, 0.2
        %v918 = vmul.f32 %v700, 0.2
        %v919 = vmul.f32 %v703, 0.2
        %v920 = vmul.f32 %v708, 0.2
        %v921 = vmul.f32 %v711, 0.2
        %v922 = vmul.f32 %v716, 0.2
        %v923 = vmul.f32 %v719, 0.2
        %v924 = vmul.f32 %v724, 0.2
        %v925 = vmul.f32 %v727, 0.2
        %v926 = vmul.f32 %v732, 0.2
        %v927 = vmul.f32 %v735, 0.2
        %v928 = vmul.f32 %v740, 0.2
        %v929 = vmul.f32 %v743, 0.2
        %v930 = vmul.f32 %v748, 0.2
        %v931 = vmul.f32 %v751, 0.2
        %v932 = vmul.f32 %v756, 0.2
        %v933 = vmul.f32 %v759, 0.2
        %v934 = vmul.f32 %v764, 0.2
        %v935 = vmul.f32 %v767, 0.2
        %v936 = vmul.f32 %v772, 0.2
        %v937 = vmul.f32 %v775, 0.2
        %v938 = vmul.f32 %v780, 0.2
        %v939 = vmul.f32 %v783, 0.2
        %v940 = vmul.f32 %v788, 0.2
        %v941 = vmul.f32 %v791, 0.2
        %v942 = vmul.f32 %v796, 0.2
        %v943 = vmul.f32 %v799, 0.2
        %v944 = vmul.f32 %v804, 0.2
        %v945 = vmul.f32 %v807, 0.2
        %v946 = vmul.f32 %v812, 0.2
        %v947 = vmul.f32 %v815, 0.2
        %v948 = vmul.f32 %v820, 0.2
        %v949 = vmul.f32 %v823, 0.2
        %v950 = vmul.f32 %v828, 0.2
        %v951 = vmul.f32 %v831, 0.2
        %v952 = vmul.f32 %v836, 0.2
        %v953 = vmul.f32 %v839, 0.2
        %v954 = vmul.f32 %v844, 0.2
        %v955 = vmul.f32 %v847, 0.2
        %v956 = vmul.f32 %v852, 0.2
        %v957 = vmul.f32 %v855, 0.2
        %v958 = vmul.f32 %v860, 0.2
        %v959 = vmul.f32 %v863, 0.2
        %v960 = vmul.f32 %v868, 0.2
        %v961 = vmul.f32 %v871, 0.2
        %v962 = vmul.f32 %v876, 0.2
        %v963 = vmul.f32 %v879, 0.2
        %v964 = vmul.f32 %v884, 0.2
        %v965 = vmul.f32 %v887, 0.2
        %v966 = vmul.f32 %v892, 0.2
        %v967 = vmul.f32 %v895, 0.2
        %v968 = vmul.f32 %v900, 0.2
        %v969 = vmul.f32 %v903, 0.2
        %v970 = vmax.f32 %v652, %v906
        %v971 = vmax.f32 %v655, %v907
        %v972 = vmax.f32 %v660, %v908
        %v973 = vmax.f32 %v663, %v909
        %v974 = vmax.f32 %v668, %v910
        %v975 = vmax.f32 %v671, %v911
        %v976 = vmax.f32 %v676, %v912
        %v977 = vmax.f32 %v679, %v913
        %v978 = vmax.f32 %v684, %v914
        %v979 = vmax.f32 %v687, %v915
        %v980 = vmax.f32 %v692, %v916
        %v981 = vmax.f32 %v695, %v917
        %v982 = vmax.f32 %v700, %v918
        %v983 = vmax.f32 %v703, %v919
        %v984 = vmax.f32 %v708, %v920
        %v985 = vmax.f32 %v711, %v921
        %v986 = vmax.f32 %v716, %v922
        %v987 = vmax.f32 %v719, %v923
        %v988 = vmax.f32 %v724, %v924
        %v989 = vmax.f32 %v727, %v925
        %v990 = vmax.f32 %v732, %v926
        %v991 = vmax.f32 %v735, %v927
        %v992 = vmax.f32 %v740, %v928
        %v993 = vmax.f32 %v743, %v929
        %v994 = vmax.f32 %v748, %v930
        %v995 = vmax.f32 %v751, %v931
        %v996 = vmax.f32 %v756, %v932
        %v997 = vmax.f32 %v759, %v933
        %v998 = vmax.f32 %v764, %v934
        %v999 = vmax.f32 %v767, %v935
        %v1000 = vmax.f32 %v772, %v936
        %v1001 = vmax.f32 %v775, %v937
        %v1002 = vmax.f32 %v780, %v938
        %v1003 = vmax.f32 %v783, %v939
        %v1004 = vmax.f32 %v788, %v940
        %v1005 = vmax.f32 %v791, %v941
        %v1006 = vmax.f32 %v796, %v942
        %v1007 = vmax.f32 %v799, %v943
        %v1008 = vmax.f32 %v804, %v944
        %v1009 = vmax.f32 %v807, %v945
        %v1010 = vmax.f32 %v812, %v946
        %v1011 = vmax.f32 %v815, %v947
        %v1012 = vmax.f32 %v820, %v948
        %v1013 = vmax.f32 %v823, %v949
        %v1014 = vmax.f32 %v828, %v950
        %v1015 = vmax.f32 %v831, %v951
        %v1016 = vmax.f32 %v836, %v952
        %v1017 = vmax.f32 %v839, %v953
        %v1018 = vmax.f32 %v844, %v954
        %v1019 = vmax.f32 %v847, %v955
        %v1020 = vmax.f32 %v852, %v956
        %v1021 = vmax.f32 %v855, %v957
        %v1022 = vmax.f32 %v860, %v958
        %v1023 = vmax.f32 %v863, %v959
        %v1024 = vmax.f32 %v868, %v960
        %v1025 = vmax.f32 %v871, %v961
        %v1026 = vmax.f32 %v876, %v962
        %v1027 = vmax.f32 %v879, %v963
        %v1028 = vmax.f32 %v884, %v964
        %v1029 = vmax.f32 %v887, %v965
        %v1030 = vmax.f32 %v892, %v966
        %v1031 = vmax.f32 %v895, %v967
        %v1032 = vmax.f32 %v900, %v968
        %v1033 = vmax.f32 %v903, %v969
        %v1034 = vpack.c.bf16 %v971, %v970
        %v1035 = vpack.c.bf16 %v973, %v972
        %v1036 = vpack.c.bf16 %v975, %v974
        %v1037 = vpack.c.bf16 %v977, %v976
        %v1038 = vpack.c.bf16 %v979, %v978
        %v1039 = vpack.c.bf16 %v981, %v980
        %v1040 = vpack.c.bf16 %v983, %v982
        %v1041 = vpack.c.bf16 %v985, %v984
        %v1042 = vpack.c.bf16 %v987, %v986
        %v1043 = vpack.c.bf16 %v989, %v988
        %v1044 = vpack.c.bf16 %v991, %v990
        %v1045 = vpack.c.bf16 %v993, %v992
        %v1046 = vpack.c.bf16 %v995, %v994
        %v1047 = vpack.c.bf16 %v997, %v996
        %v1048 = vpack.c.bf16 %v999, %v998
        %v1049 = vpack.c.bf16 %v1001, %v1000
        %v1050 = vpack.c.bf16 %v1003, %v1002
        %v1051 = vpack.c.bf16 %v1005, %v1004
        %v1052 = vpack.c.bf16 %v1007, %v1006
        %v1053 = vpack.c.bf16 %v1009, %v1008
        %v1054 = vpack.c.bf16 %v1011, %v1010
        %v1055 = vpack.c.bf16 %v1013, %v1012
        %v1056 = vpack.c.bf16 %v1015, %v1014
        %v1057 = vpack.c.bf16 %v1017, %v1016
        %v1058 = vpack.c.bf16 %v1019, %v1018
        %v1059 = vpack.c.bf16 %v1021, %v1020
        %v1060 = vpack.c.bf16 %v1023, %v1022
        %v1061 = vpack.c.bf16 %v1025, %v1024
        %v1062 = vpack.c.bf16 %v1027, %v1026
        %v1063 = vpack.c.bf16 %v1029, %v1028
        %v1064 = vpack.c.bf16 %v1031, %v1030
        %v1065 = vpack.c.bf16 %v1033, %v1032
        %v1066 = vld [vmem:[%s4] sm:$0xf]
        %v1067 = vld [vmem:[%s4 + $0x4] sm:$0xf]
        %v1068 = vld [vmem:[%s4 + $0x8] sm:$0xf]
        %v1069 = vld [vmem:[%s4 + $0xc] sm:$0xf]
        %v1070 = vld [vmem:[%s4 + $0x10] sm:$0xf]
        %v1071 = vld [vmem:[%s4 + $0x14] sm:$0xf]
        %v1072 = vld [vmem:[%s4 + $0x18] sm:$0xf]
        %v1073 = vld [vmem:[%s4 + $0x1c] sm:$0xf]
        %v1074 = vld [vmem:[%s4 + $0x20] sm:$0xf]
        %v1075 = vld [vmem:[%s4 + $0x24] sm:$0xf]
        %v1076 = vld [vmem:[%s4 + $0x28] sm:$0xf]
        %v1077 = vld [vmem:[%s4 + $0x2c] sm:$0xf]
        %v1078 = vld [vmem:[%s4 + $0x30] sm:$0xf]
        %v1079 = vld [vmem:[%s4 + $0x34] sm:$0xf]
        %v1080 = vld [vmem:[%s4 + $0x38] sm:$0xf]
        %v1081 = vld [vmem:[%s4 + $0x3c] sm:$0xf]
        %v1082 = vld [vmem:[%s5] sm:$0x1]
        %v1084 = vlaneseq
        %v1085 = vshrl.u32 %v1084, 7
        %v1086 = vsub.s32 0, %v1085
        %v1087 = vrot.slane %v1082, %v1086
        %v1105 = vunpack.c.l.b16 %v1066
        %v1106 = vunpack.c.l.b16 %v1067
        %v1107 = vunpack.c.l.b16 %v1068
        %v1108 = vunpack.c.l.b16 %v1069
        %v1109 = vunpack.c.l.b16 %v1070
        %v1110 = vunpack.c.l.b16 %v1071
        %v1111 = vunpack.c.l.b16 %v1072
        %v1112 = vunpack.c.l.b16 %v1073
        %v1113 = vunpack.c.l.b16 %v1074
        %v1114 = vunpack.c.l.b16 %v1075
        %v1115 = vunpack.c.l.b16 %v1076
        %v1116 = vunpack.c.l.b16 %v1077
        %v1117 = vunpack.c.l.b16 %v1078
        %v1118 = vunpack.c.l.b16 %v1079
        %v1119 = vunpack.c.l.b16 %v1080
        %v1120 = vunpack.c.l.b16 %v1081
        %v1121 = vpack.c.b16 %v1106, %v1105
        %v1122 = vpack.c.b16 %v1108, %v1107
        %v1123 = vpack.c.b16 %v1110, %v1109
        %v1124 = vpack.c.b16 %v1112, %v1111
        %v1125 = vpack.c.b16 %v1114, %v1113
        %v1126 = vpack.c.b16 %v1116, %v1115
        %v1127 = vpack.c.b16 %v1118, %v1117
        %v1128 = vpack.c.b16 %v1120, %v1119
        %1137 = vmatprep.subr.bf16.mxu0 0
        %1138 = vmatpush1.bf16.msra.mxu0 %v1121
        %1139 = vmatprep.subr.bf16.mxu0 0
        %1140 = vmatpush1.bf16.msra.mxu0 %v1122
        %1141 = vmatprep.subr.bf16.mxu0 0
        %1142 = vmatpush1.bf16.msra.mxu0 %v1123
        %1143 = vmatprep.subr.bf16.mxu0 0
        %1144 = vmatpush1.bf16.msra.mxu0 %v1124
        %1145 = vmatprep.subr.bf16.mxu0 0
        %1146 = vmatpush1.bf16.msra.mxu0 %v1125
        %1147 = vmatprep.subr.bf16.mxu0 0
        %1148 = vmatpush1.bf16.msra.mxu0 %v1126
        %1149 = vmatprep.subr.bf16.mxu0 0
        %1150 = vmatpush1.bf16.msra.mxu0 %v1127
        %1151 = vmatprep.subr.bf16.mxu0 0
        %1152 = vmatpush1.bf16.msra.mxu0 %v1128
        %1153 = vmatprep.subr.bf16.mxu0 0
        %1154 = vmatpush1.bf16.msra.mxu0 0
        %1155 = vmatprep.subr.bf16.mxu0 0
        %1156 = vmatpush1.bf16.msra.mxu0 0
        %1157 = vmatprep.subr.bf16.mxu0 0
        %1158 = vmatpush1.bf16.msra.mxu0 0
        %1159 = vmatprep.subr.bf16.mxu0 0
        %1160 = vmatpush1.bf16.msra.mxu0 0
        %1161 = vmatprep.subr.bf16.mxu0 0
        %1162 = vmatpush1.bf16.msra.mxu0 0
        %1163 = vmatprep.subr.bf16.mxu0 0
        %1164 = vmatpush1.bf16.msra.mxu0 0
        %1165 = vmatprep.subr.bf16.mxu0 0
        %1166 = vmatpush1.bf16.msra.mxu0 0
        %1167 = vmatprep.subr.bf16.mxu0 0
        %1168 = vmatpush1.bf16.msra.mxu0 0
        %1169 = vmatprep.mubr.bf16.mxu0 0
        %1170 = vmatmul.mubr.bf16.gmra.mrb[0].mxu0 %v1034
        %v1171 = vpop.f32.mrb[0].mxu0
        %v1172 = vadd.f32 %v1087, %v1171
        %v1173 = vpop.f32.mrb[0].mxu0
        %v1174 = vpop.f32.mrb[0].mxu0
        %v1175 = vadd.f32 %v1087, %v1174
        %v1176 = vpop.f32.mrb[0].mxu0
        %1177 = vmatprep.mubr.bf16.mxu0 0
        %1178 = vmatmul.mubr.bf16.gmra.mrb[0].mxu0 %v1035
        %v1179 = vpop.f32.mrb[0].mxu0
        %v1180 = vadd.f32 %v1087, %v1179
        %v1181 = vpop.f32.mrb[0].mxu0
        %v1182 = vpop.f32.mrb[0].mxu0
        %v1183 = vadd.f32 %v1087, %v1182
        %v1184 = vpop.f32.mrb[0].mxu0
        %1185 = vmatprep.mubr.bf16.mxu0 0
        %1186 = vmatmul.mubr.bf16.gmra.mrb[0].mxu0 %v1036
        %v1187 = vpop.f32.mrb[0].mxu0
        %v1188 = vadd.f32 %v1087, %v1187
        %v1189 = vpop.f32.mrb[0].mxu0
        %v1190 = vpop.f32.mrb[0].mxu0
        %v1191 = vadd.f32 %v1087, %v1190
        %v1192 = vpop.f32.mrb[0].mxu0
        %1193 = vmatprep.mubr.bf16.mxu0 0
        %1194 = vmatmul.mubr.bf16.gmra.mrb[0].mxu0 %v1037
        %v1195 = vpop.f32.mrb[0].mxu0
        %v1196 = vadd.f32 %v1087, %v1195
        %v1197 = vpop.f32.mrb[0].mxu0
        %v1198 = vpop.f32.mrb[0].mxu0
        %v1199 = vadd.f32 %v1087, %v1198
        %v1200 = vpop.f32.mrb[0].mxu0
        %1201 = vmatprep.mubr.bf16.mxu0 0
        %1202 = vmatmul.mubr.bf16.gmra.mrb[0].mxu0 %v1038
        %v1203 = vpop.f32.mrb[0].mxu0
        %v1204 = vadd.f32 %v1087, %v1203
        %v1205 = vpop.f32.mrb[0].mxu0
        %v1206 = vpop.f32.mrb[0].mxu0
        %v1207 = vadd.f32 %v1087, %v1206
        %v1208 = vpop.f32.mrb[0].mxu0
        %1209 = vmatprep.mubr.bf16.mxu0 0
        %1210 = vmatmul.mubr.bf16.gmra.mrb[0].mxu0 %v1039
        %v1211 = vpop.f32.mrb[0].mxu0
        %v1212 = vadd.f32 %v1087, %v1211
        %v1213 = vpop.f32.mrb[0].mxu0
        %v1214 = vpop.f32.mrb[0].mxu0
        %v1215 = vadd.f32 %v1087, %v1214
        %v1216 = vpop.f32.mrb[0].mxu0
        %1217 = vmatprep.mubr.bf16.mxu0 0
        %1218 = vmatmul.mubr.bf16.gmra.mrb[0].mxu0 %v1040
        %v1219 = vpop.f32.mrb[0].mxu0
        %v1220 = vadd.f32 %v1087, %v1219
        %v1221 = vpop.f32.mrb[0].mxu0
        %v1222 = vpop.f32.mrb[0].mxu0
        %v1223 = vadd.f32 %v1087, %v1222
        %v1224 = vpop.f32.mrb[0].mxu0
        %1225 = vmatprep.mubr.bf16.mxu0 0
        %1226 = vmatmul.mubr.bf16.gmra.mrb[0].mxu0 %v1041
        %v1227 = vpop.f32.mrb[0].mxu0
        %v1228 = vadd.f32 %v1087, %v1227
        %v1229 = vpop.f32.mrb[0].mxu0
        %v1230 = vpop.f32.mrb[0].mxu0
        %v1231 = vadd.f32 %v1087, %v1230
        %v1232 = vpop.f32.mrb[0].mxu0
        %1233 = vmatprep.mubr.bf16.mxu0 0
        %1234 = vmatmul.mubr.bf16.gmra.mrb[0].mxu0 %v1042
        %v1235 = vpop.f32.mrb[0].mxu0
        %v1236 = vadd.f32 %v1087, %v1235
        %v1237 = vpop.f32.mrb[0].mxu0
        %v1238 = vpop.f32.mrb[0].mxu0
        %v1239 = vadd.f32 %v1087, %v1238
        %v1240 = vpop.f32.mrb[0].mxu0
        %1241 = vmatprep.mubr.bf16.mxu0 0
        %1242 = vmatmul.mubr.bf16.gmra.mrb[0].mxu0 %v1043
        %v1243 = vpop.f32.mrb[0].mxu0
        %v1244 = vadd.f32 %v1087, %v1243
        %v1245 = vpop.f32.mrb[0].mxu0
        %v1246 = vpop.f32.mrb[0].mxu0
        %v1247 = vadd.f32 %v1087, %v1246
        %v1248 = vpop.f32.mrb[0].mxu0
        %1249 = vmatprep.mubr.bf16.mxu0 0
        %1250 = vmatmul.mubr.bf16.gmra.mrb[0].mxu0 %v1044
        %v1251 = vpop.f32.mrb[0].mxu0
        %v1252 = vadd.f32 %v1087, %v1251
        %v1253 = vpop.f32.mrb[0].mxu0
        %v1254 = vpop.f32.mrb[0].mxu0
        %v1255 = vadd.f32 %v1087, %v1254
        %v1256 = vpop.f32.mrb[0].mxu0
        %1257 = vmatprep.mubr.bf16.mxu0 0
        %1258 = vmatmul.mubr.bf16.gmra.mrb[0].mxu0 %v1045
        %v1259 = vpop.f32.mrb[0].mxu0
        %v1260 = vadd.f32 %v1087, %v1259
        %v1261 = vpop.f32.mrb[0].mxu0
        %v1262 = vpop.f32.mrb[0].mxu0
        %v1263 = vadd.f32 %v1087, %v1262
        %v1264 = vpop.f32.mrb[0].mxu0
        %1265 = vmatprep.mubr.bf16.mxu0 0
        %1266 = vmatmul.mubr.bf16.gmra.mrb[0].mxu0 %v1046
        %v1267 = vpop.f32.mrb[0].mxu0
        %v1268 = vadd.f32 %v1087, %v1267
        %v1269 = vpop.f32.mrb[0].mxu0
        %v1270 = vpop.f32.mrb[0].mxu0
        %v1271 = vadd.f32 %v1087, %v1270
        %v1272 = vpop.f32.mrb[0].mxu0
        %1273 = vmatprep.mubr.bf16.mxu0 0
        %1274 = vmatmul.mubr.bf16.gmra.mrb[0].mxu0 %v1047
        %v1275 = vpop.f32.mrb[0].mxu0
        %v1276 = vadd.f32 %v1087, %v1275
        %v1277 = vpop.f32.mrb[0].mxu0
        %v1278 = vpop.f32.mrb[0].mxu0
        %v1279 = vadd.f32 %v1087, %v1278
        %v1280 = vpop.f32.mrb[0].mxu0
        %1281 = vmatprep.mubr.bf16.mxu0 0
        %1282 = vmatmul.mubr.bf16.gmra.mrb[0].mxu0 %v1048
        %v1283 = vpop.f32.mrb[0].mxu0
        %v1284 = vadd.f32 %v1087, %v1283
        %v1285 = vpop.f32.mrb[0].mxu0
        %v1286 = vpop.f32.mrb[0].mxu0
        %v1287 = vadd.f32 %v1087, %v1286
        %v1288 = vpop.f32.mrb[0].mxu0
        %1289 = vmatprep.mubr.bf16.mxu0 0
        %1290 = vmatmul.mubr.bf16.gmra.mrb[0].mxu0 %v1049
        %v1291 = vpop.f32.mrb[0].mxu0
        %v1292 = vadd.f32 %v1087, %v1291
        %v1293 = vpop.f32.mrb[0].mxu0
        %v1294 = vpop.f32.mrb[0].mxu0
        %v1295 = vadd.f32 %v1087, %v1294
        %v1296 = vpop.f32.mrb[0].mxu0
        %1297 = vmatprep.mubr.bf16.mxu0 0
        %1298 = vmatmul.mubr.bf16.gmra.mrb[0].mxu0 %v1050
        %v1299 = vpop.f32.mrb[0].mxu0
        %v1300 = vadd.f32 %v1087, %v1299
        %v1301 = vpop.f32.mrb[0].mxu0
        %v1302 = vpop.f32.mrb[0].mxu0
        %v1303 = vadd.f32 %v1087, %v1302
        %v1304 = vpop.f32.mrb[0].mxu0
        %1305 = vmatprep.mubr.bf16.mxu0 0
        %1306 = vmatmul.mubr.bf16.gmra.mrb[0].mxu0 %v1051
        %v1307 = vpop.f32.mrb[0].mxu0
        %v1308 = vadd.f32 %v1087, %v1307
        %v1309 = vpop.f32.mrb[0].mxu0
        %v1310 = vpop.f32.mrb[0].mxu0
        %v1311 = vadd.f32 %v1087, %v1310
        %v1312 = vpop.f32.mrb[0].mxu0
        %1313 = vmatprep.mubr.bf16.mxu0 0
        %1314 = vmatmul.mubr.bf16.gmra.mrb[0].mxu0 %v1052
        %v1315 = vpop.f32.mrb[0].mxu0
        %v1316 = vadd.f32 %v1087, %v1315
        %v1317 = vpop.f32.mrb[0].mxu0
        %v1318 = vpop.f32.mrb[0].mxu0
        %v1319 = vadd.f32 %v1087, %v1318
        %v1320 = vpop.f32.mrb[0].mxu0
        %1321 = vmatprep.mubr.bf16.mxu0 0
        %1322 = vmatmul.mubr.bf16.gmra.mrb[0].mxu0 %v1053
        %v1323 = vpop.f32.mrb[0].mxu0
        %v1324 = vadd.f32 %v1087, %v1323
        %v1325 = vpop.f32.mrb[0].mxu0
        %v1326 = vpop.f32.mrb[0].mxu0
        %v1327 = vadd.f32 %v1087, %v1326
        %v1328 = vpop.f32.mrb[0].mxu0
        %1329 = vmatprep.mubr.bf16.mxu0 0
        %1330 = vmatmul.mubr.bf16.gmra.mrb[0].mxu0 %v1054
        %v1331 = vpop.f32.mrb[0].mxu0
        %v1332 = vadd.f32 %v1087, %v1331
        %v1333 = vpop.f32.mrb[0].mxu0
        %v1334 = vpop.f32.mrb[0].mxu0
        %v1335 = vadd.f32 %v1087, %v1334
        %v1336 = vpop.f32.mrb[0].mxu0
        %1337 = vmatprep.mubr.bf16.mxu0 0
        %1338 = vmatmul.mubr.bf16.gmra.mrb[0].mxu0 %v1055
        %v1339 = vpop.f32.mrb[0].mxu0
        %v1340 = vadd.f32 %v1087, %v1339
        %v1341 = vpop.f32.mrb[0].mxu0
        %v1342 = vpop.f32.mrb[0].mxu0
        %v1343 = vadd.f32 %v1087, %v1342
        %v1344 = vpop.f32.mrb[0].mxu0
        %1345 = vmatprep.mubr.bf16.mxu0 0
        %1346 = vmatmul.mubr.bf16.gmra.mrb[0].mxu0 %v1056
        %v1347 = vpop.f32.mrb[0].mxu0
        %v1348 = vadd.f32 %v1087, %v1347
        %v1349 = vpop.f32.mrb[0].mxu0
        %v1350 = vpop.f32.mrb[0].mxu0
        %v1351 = vadd.f32 %v1087, %v1350
        %v1352 = vpop.f32.mrb[0].mxu0
        %1353 = vmatprep.mubr.bf16.mxu0 0
        %1354 = vmatmul.mubr.bf16.gmra.mrb[0].mxu0 %v1057
        %v1355 = vpop.f32.mrb[0].mxu0
        %v1356 = vadd.f32 %v1087, %v1355
        %v1357 = vpop.f32.mrb[0].mxu0
        %v1358 = vpop.f32.mrb[0].mxu0
        %v1359 = vadd.f32 %v1087, %v1358
        %v1360 = vpop.f32.mrb[0].mxu0
        %1361 = vmatprep.mubr.bf16.mxu0 0
        %1362 = vmatmul.mubr.bf16.gmra.mrb[0].mxu0 %v1058
        %v1363 = vpop.f32.mrb[0].mxu0
        %v1364 = vadd.f32 %v1087, %v1363
        %v1365 = vpop.f32.mrb[0].mxu0
        %v1366 = vpop.f32.mrb[0].mxu0
        %v1367 = vadd.f32 %v1087, %v1366
        %v1368 = vpop.f32.mrb[0].mxu0
        %1369 = vmatprep.mubr.bf16.mxu0 0
        %1370 = vmatmul.mubr.bf16.gmra.mrb[0].mxu0 %v1059
        %v1371 = vpop.f32.mrb[0].mxu0
        %v1372 = vadd.f32 %v1087, %v1371
        %v1373 = vpop.f32.mrb[0].mxu0
        %v1374 = vpop.f32.mrb[0].mxu0
        %v1375 = vadd.f32 %v1087, %v1374
        %v1376 = vpop.f32.mrb[0].mxu0
        %1377 = vmatprep.mubr.bf16.mxu0 0
        %1378 = vmatmul.mubr.bf16.gmra.mrb[0].mxu0 %v1060
        %v1379 = vpop.f32.mrb[0].mxu0
        %v1380 = vadd.f32 %v1087, %v1379
        %v1381 = vpop.f32.mrb[0].mxu0
        %v1382 = vpop.f32.mrb[0].mxu0
        %v1383 = vadd.f32 %v1087, %v1382
        %v1384 = vpop.f32.mrb[0].mxu0
        %1385 = vmatprep.mubr.bf16.mxu0 0
        %1386 = vmatmul.mubr.bf16.gmra.mrb[0].mxu0 %v1061
        %v1387 = vpop.f32.mrb[0].mxu0
        %v1388 = vadd.f32 %v1087, %v1387
        %v1389 = vpop.f32.mrb[0].mxu0
        %v1390 = vpop.f32.mrb[0].mxu0
        %v1391 = vadd.f32 %v1087, %v1390
        %v1392 = vpop.f32.mrb[0].mxu0
        %1393 = vmatprep.mubr.bf16.mxu0 0
        %1394 = vmatmul.mubr.bf16.gmra.mrb[0].mxu0 %v1062
        %v1395 = vpop.f32.mrb[0].mxu0
        %v1396 = vadd.f32 %v1087, %v1395
        %v1397 = vpop.f32.mrb[0].mxu0
        %v1398 = vpop.f32.mrb[0].mxu0
        %v1399 = vadd.f32 %v1087, %v1398
        %v1400 = vpop.f32.mrb[0].mxu0
        %1401 = vmatprep.mubr.bf16.mxu0 0
        %1402 = vmatmul.mubr.bf16.gmra.mrb[0].mxu0 %v1063
        %v1403 = vpop.f32.mrb[0].mxu0
        %v1404 = vadd.f32 %v1087, %v1403
        %v1405 = vpop.f32.mrb[0].mxu0
        %v1406 = vpop.f32.mrb[0].mxu0
        %v1407 = vadd.f32 %v1087, %v1406
        %v1408 = vpop.f32.mrb[0].mxu0
        %1409 = vmatprep.mubr.bf16.mxu0 0
        %1410 = vmatmul.mubr.bf16.gmra.mrb[0].mxu0 %v1064
        %v1411 = vpop.f32.mrb[0].mxu0
        %v1412 = vadd.f32 %v1087, %v1411
        %v1413 = vpop.f32.mrb[0].mxu0
        %v1414 = vpop.f32.mrb[0].mxu0
        %v1415 = vadd.f32 %v1087, %v1414
        %v1416 = vpop.f32.mrb[0].mxu0
        %1417 = vmatprep.mubr.bf16.mxu0 0
        %1418 = vmatmul.mubr.bf16.gmra.mrb[0].mxu0 %v1065
        %v1419 = vpop.f32.mrb[0].mxu0
        %v1420 = vadd.f32 %v1087, %v1419
        %v1421 = vpop.f32.mrb[0].mxu0
        %v1422 = vpop.f32.mrb[0].mxu0
        %v1423 = vadd.f32 %v1087, %v1422
        %v1424 = vpop.f32.mrb[0].mxu0
        %1425 = vdwg.mxu0
        %v1426 = vmul.f32 %v1172, 0.2
        %v1427 = vmul.f32 %v1175, 0.2
        %v1428 = vmul.f32 %v1180, 0.2
        %v1429 = vmul.f32 %v1183, 0.2
        %v1430 = vmul.f32 %v1188, 0.2
        %v1431 = vmul.f32 %v1191, 0.2
        %v1432 = vmul.f32 %v1196, 0.2
        %v1433 = vmul.f32 %v1199, 0.2
        %v1434 = vmul.f32 %v1204, 0.2
        %v1435 = vmul.f32 %v1207, 0.2
        %v1436 = vmul.f32 %v1212, 0.2
        %v1437 = vmul.f32 %v1215, 0.2
        %v1438 = vmul.f32 %v1220, 0.2
        %v1439 = vmul.f32 %v1223, 0.2
        %v1440 = vmul.f32 %v1228, 0.2
        %v1441 = vmul.f32 %v1231, 0.2
        %v1442 = vmul.f32 %v1236, 0.2
        %v1443 = vmul.f32 %v1239, 0.2
        %v1444 = vmul.f32 %v1244, 0.2
        %v1445 = vmul.f32 %v1247, 0.2
        %v1446 = vmul.f32 %v1252, 0.2
        %v1447 = vmul.f32 %v1255, 0.2
        %v1448 = vmul.f32 %v1260, 0.2
        %v1449 = vmul.f32 %v1263, 0.2
        %v1450 = vmul.f32 %v1268, 0.2
        %v1451 = vmul.f32 %v1271, 0.2
        %v1452 = vmul.f32 %v1276, 0.2
        %v1453 = vmul.f32 %v1279, 0.2
        %v1454 = vmul.f32 %v1284, 0.2
        %v1455 = vmul.f32 %v1287, 0.2
        %v1456 = vmul.f32 %v1292, 0.2
        %v1457 = vmul.f32 %v1295, 0.2
        %v1458 = vmul.f32 %v1300, 0.2
        %v1459 = vmul.f32 %v1303, 0.2
        %v1460 = vmul.f32 %v1308, 0.2
        %v1461 = vmul.f32 %v1311, 0.2
        %v1462 = vmul.f32 %v1316, 0.2
        %v1463 = vmul.f32 %v1319, 0.2
        %v1464 = vmul.f32 %v1324, 0.2
        %v1465 = vmul.f32 %v1327, 0.2
        %v1466 = vmul.f32 %v1332, 0.2
        %v1467 = vmul.f32 %v1335, 0.2
        %v1468 = vmul.f32 %v1340, 0.2
        %v1469 = vmul.f32 %v1343, 0.2
        %v1470 = vmul.f32 %v1348, 0.2
        %v1471 = vmul.f32 %v1351, 0.2
        %v1472 = vmul.f32 %v1356, 0.2
        %v1473 = vmul.f32 %v1359, 0.2
        %v1474 = vmul.f32 %v1364, 0.2
        %v1475 = vmul.f32 %v1367, 0.2
        %v1476 = vmul.f32 %v1372, 0.2
        %v1477 = vmul.f32 %v1375, 0.2
        %v1478 = vmul.f32 %v1380, 0.2
        %v1479 = vmul.f32 %v1383, 0.2
        %v1480 = vmul.f32 %v1388, 0.2
        %v1481 = vmul.f32 %v1391, 0.2
        %v1482 = vmul.f32 %v1396, 0.2
        %v1483 = vmul.f32 %v1399, 0.2
        %v1484 = vmul.f32 %v1404, 0.2
        %v1485 = vmul.f32 %v1407, 0.2
        %v1486 = vmul.f32 %v1412, 0.2
        %v1487 = vmul.f32 %v1415, 0.2
        %v1488 = vmul.f32 %v1420, 0.2
        %v1489 = vmul.f32 %v1423, 0.2
        %v1490 = vmax.f32 %v1172, %v1426
        %v1491 = vmax.f32 %v1175, %v1427
        %v1492 = vmax.f32 %v1180, %v1428
        %v1493 = vmax.f32 %v1183, %v1429
        %v1494 = vmax.f32 %v1188, %v1430
        %v1495 = vmax.f32 %v1191, %v1431
        %v1496 = vmax.f32 %v1196, %v1432
        %v1497 = vmax.f32 %v1199, %v1433
        %v1498 = vmax.f32 %v1204, %v1434
        %v1499 = vmax.f32 %v1207, %v1435
        %v1500 = vmax.f32 %v1212, %v1436
        %v1501 = vmax.f32 %v1215, %v1437
        %v1502 = vmax.f32 %v1220, %v1438
        %v1503 = vmax.f32 %v1223, %v1439
        %v1504 = vmax.f32 %v1228, %v1440
        %v1505 = vmax.f32 %v1231, %v1441
        %v1506 = vmax.f32 %v1236, %v1442
        %v1507 = vmax.f32 %v1239, %v1443
        %v1508 = vmax.f32 %v1244, %v1444
        %v1509 = vmax.f32 %v1247, %v1445
        %v1510 = vmax.f32 %v1252, %v1446
        %v1511 = vmax.f32 %v1255, %v1447
        %v1512 = vmax.f32 %v1260, %v1448
        %v1513 = vmax.f32 %v1263, %v1449
        %v1514 = vmax.f32 %v1268, %v1450
        %v1515 = vmax.f32 %v1271, %v1451
        %v1516 = vmax.f32 %v1276, %v1452
        %v1517 = vmax.f32 %v1279, %v1453
        %v1518 = vmax.f32 %v1284, %v1454
        %v1519 = vmax.f32 %v1287, %v1455
        %v1520 = vmax.f32 %v1292, %v1456
        %v1521 = vmax.f32 %v1295, %v1457
        %v1522 = vmax.f32 %v1300, %v1458
        %v1523 = vmax.f32 %v1303, %v1459
        %v1524 = vmax.f32 %v1308, %v1460
        %v1525 = vmax.f32 %v1311, %v1461
        %v1526 = vmax.f32 %v1316, %v1462
        %v1527 = vmax.f32 %v1319, %v1463
        %v1528 = vmax.f32 %v1324, %v1464
        %v1529 = vmax.f32 %v1327, %v1465
        %v1530 = vmax.f32 %v1332, %v1466
        %v1531 = vmax.f32 %v1335, %v1467
        %v1532 = vmax.f32 %v1340, %v1468
        %v1533 = vmax.f32 %v1343, %v1469
        %v1534 = vmax.f32 %v1348, %v1470
        %v1535 = vmax.f32 %v1351, %v1471
        %v1536 = vmax.f32 %v1356, %v1472
        %v1537 = vmax.f32 %v1359, %v1473
        %v1538 = vmax.f32 %v1364, %v1474
        %v1539 = vmax.f32 %v1367, %v1475
        %v1540 = vmax.f32 %v1372, %v1476
        %v1541 = vmax.f32 %v1375, %v1477
        %v1542 = vmax.f32 %v1380, %v1478
        %v1543 = vmax.f32 %v1383, %v1479
        %v1544 = vmax.f32 %v1388, %v1480
        %v1545 = vmax.f32 %v1391, %v1481
        %v1546 = vmax.f32 %v1396, %v1482
        %v1547 = vmax.f32 %v1399, %v1483
        %v1548 = vmax.f32 %v1404, %v1484
        %v1549 = vmax.f32 %v1407, %v1485
        %v1550 = vmax.f32 %v1412, %v1486
        %v1551 = vmax.f32 %v1415, %v1487
        %v1552 = vmax.f32 %v1420, %v1488
        %v1553 = vmax.f32 %v1423, %v1489
        %v1554 = vpack.c.bf16 %v1491, %v1490
        %v1555 = vpack.c.bf16 %v1493, %v1492
        %v1556 = vpack.c.bf16 %v1495, %v1494
        %v1557 = vpack.c.bf16 %v1497, %v1496
        %v1558 = vpack.c.bf16 %v1499, %v1498
        %v1559 = vpack.c.bf16 %v1501, %v1500
        %v1560 = vpack.c.bf16 %v1503, %v1502
        %v1561 = vpack.c.bf16 %v1505, %v1504
        %v1562 = vpack.c.bf16 %v1507, %v1506
        %v1563 = vpack.c.bf16 %v1509, %v1508
        %v1564 = vpack.c.bf16 %v1511, %v1510
        %v1565 = vpack.c.bf16 %v1513, %v1512
        %v1566 = vpack.c.bf16 %v1515, %v1514
        %v1567 = vpack.c.bf16 %v1517, %v1516
        %v1568 = vpack.c.bf16 %v1519, %v1518
        %v1569 = vpack.c.bf16 %v1521, %v1520
        %v1570 = vpack.c.bf16 %v1523, %v1522
        %v1571 = vpack.c.bf16 %v1525, %v1524
        %v1572 = vpack.c.bf16 %v1527, %v1526
        %v1573 = vpack.c.bf16 %v1529, %v1528
        %v1574 = vpack.c.bf16 %v1531, %v1530
        %v1575 = vpack.c.bf16 %v1533, %v1532
        %v1576 = vpack.c.bf16 %v1535, %v1534
        %v1577 = vpack.c.bf16 %v1537, %v1536
        %v1578 = vpack.c.bf16 %v1539, %v1538
        %v1579 = vpack.c.bf16 %v1541, %v1540
        %v1580 = vpack.c.bf16 %v1543, %v1542
        %v1581 = vpack.c.bf16 %v1545, %v1544
        %v1582 = vpack.c.bf16 %v1547, %v1546
        %v1583 = vpack.c.bf16 %v1549, %v1548
        %v1584 = vpack.c.bf16 %v1551, %v1550
        %v1585 = vpack.c.bf16 %v1553, %v1552
        %v1586 = vld [vmem:[%s6] sm:$0xf]
        %v1587 = vld [vmem:[%s6 + $0x4] sm:$0xf]
        %v1588 = vld [vmem:[%s6 + $0x8] sm:$0xf]
        %v1589 = vld [vmem:[%s6 + $0xc] sm:$0xf]
        %v1590 = vld [vmem:[%s6 + $0x10] sm:$0xf]
        %v1591 = vld [vmem:[%s6 + $0x14] sm:$0xf]
        %v1592 = vld [vmem:[%s6 + $0x18] sm:$0xf]
        %v1593 = vld [vmem:[%s6 + $0x1c] sm:$0xf]
        %v1594 = vld [vmem:[%s6 + $0x20] sm:$0xf]
        %v1595 = vld [vmem:[%s6 + $0x24] sm:$0xf]
        %v1596 = vld [vmem:[%s6 + $0x28] sm:$0xf]
        %v1597 = vld [vmem:[%s6 + $0x2c] sm:$0xf]
        %v1598 = vld [vmem:[%s6 + $0x30] sm:$0xf]
        %v1599 = vld [vmem:[%s6 + $0x34] sm:$0xf]
        %v1600 = vld [vmem:[%s6 + $0x38] sm:$0xf]
        %v1601 = vld [vmem:[%s6 + $0x3c] sm:$0xf]
        %v1602 = vld [vmem:[#allocation7] sm:$0x1]
        %v1604 = vlaneseq
        %v1605 = vshrl.u32 %v1604, 7
        %v1606 = vsub.s32 0, %v1605
        %v1607 = vrot.slane %v1602, %v1606
        %v1625 = vunpack.c.l.b16 %v1586
        %v1626 = vunpack.c.l.b16 %v1587
        %v1627 = vunpack.c.l.b16 %v1588
        %v1628 = vunpack.c.l.b16 %v1589
        %v1629 = vunpack.c.l.b16 %v1590
        %v1630 = vunpack.c.l.b16 %v1591
        %v1631 = vunpack.c.l.b16 %v1592
        %v1632 = vunpack.c.l.b16 %v1593
        %v1633 = vunpack.c.l.b16 %v1594
        %v1634 = vunpack.c.l.b16 %v1595
        %v1635 = vunpack.c.l.b16 %v1596
        %v1636 = vunpack.c.l.b16 %v1597
        %v1637 = vunpack.c.l.b16 %v1598
        %v1638 = vunpack.c.l.b16 %v1599
        %v1639 = vunpack.c.l.b16 %v1600
        %v1640 = vunpack.c.l.b16 %v1601
        %v1641 = vpack.c.b16 %v1626, %v1625
        %v1642 = vpack.c.b16 %v1628, %v1627
        %v1643 = vpack.c.b16 %v1630, %v1629
        %v1644 = vpack.c.b16 %v1632, %v1631
        %v1645 = vpack.c.b16 %v1634, %v1633
        %v1646 = vpack.c.b16 %v1636, %v1635
        %v1647 = vpack.c.b16 %v1638, %v1637
        %v1648 = vpack.c.b16 %v1640, %v1639
        %1657 = vmatprep.subr.bf16.mxu0 0
        %1658 = vmatpush1.bf16.msra.mxu0 %v1641
        %1659 = vmatprep.subr.bf16.mxu0 0
        %1660 = vmatpush1.bf16.msra.mxu0 %v1642
        %1661 = vmatprep.subr.bf16.mxu0 0
        %1662 = vmatpush1.bf16.msra.mxu0 %v1643
        %1663 = vmatprep.subr.bf16.mxu0 0
        %1664 = vmatpush1.bf16.msra.mxu0 %v1644
        %1665 = vmatprep.subr.bf16.mxu0 0
        %1666 = vmatpush1.bf16.msra.mxu0 %v1645
        %1667 = vmatprep.subr.bf16.mxu0 0
        %1668 = vmatpush1.bf16.msra.mxu0 %v1646
        %1669 = vmatprep.subr.bf16.mxu0 0
        %1670 = vmatpush1.bf16.msra.mxu0 %v1647
        %1671 = vmatprep.subr.bf16.mxu0 0
        %1672 = vmatpush1.bf16.msra.mxu0 %v1648
        %1673 = vmatprep.subr.bf16.mxu0 0
        %1674 = vmatpush1.bf16.msra.mxu0 0
        %1675 = vmatprep.subr.bf16.mxu0 0
        %1676 = vmatpush1.bf16.msra.mxu0 0
        %1677 = vmatprep.subr.bf16.mxu0 0
        %1678 = vmatpush1.bf16.msra.mxu0 0
        %1679 = vmatprep.subr.bf16.mxu0 0
        %1680 = vmatpush1.bf16.msra.mxu0 0
        %1681 = vmatprep.subr.bf16.mxu0 0
        %1682 = vmatpush1.bf16.msra.mxu0 0
        %1683 = vmatprep.subr.bf16.mxu0 0
        %1684 = vmatpush1.bf16.msra.mxu0 0
        %1685 = vmatprep.subr.bf16.mxu0 0
        %1686 = vmatpush1.bf16.msra.mxu0 0
        %1687 = vmatprep.subr.bf16.mxu0 0
        %1688 = vmatpush1.bf16.msra.mxu0 0
        %1689 = vmatprep.mubr.bf16.mxu0 0
        %1690 = vmatmul.mubr.bf16.gmra.mrb[0].mxu0 %v1554
        %v1691 = vpop.f32.mrb[0].mxu0
        %v1692 = vadd.f32 %v1607, %v1691
        %v1693 = vpop.f32.mrb[0].mxu0
        %v1694 = vpop.f32.mrb[0].mxu0
        %v1695 = vadd.f32 %v1607, %v1694
        %v1696 = vpop.f32.mrb[0].mxu0
        %1697 = vmatprep.mubr.bf16.mxu0 0
        %1698 = vmatmul.mubr.bf16.gmra.mrb[0].mxu0 %v1555
        %v1699 = vpop.f32.mrb[0].mxu0
        %v1700 = vadd.f32 %v1607, %v1699
        %v1701 = vpop.f32.mrb[0].mxu0
        %v1702 = vpop.f32.mrb[0].mxu0
        %v1703 = vadd.f32 %v1607, %v1702
        %v1704 = vpop.f32.mrb[0].mxu0
        %1705 = vmatprep.mubr.bf16.mxu0 0
        %1706 = vmatmul.mubr.bf16.gmra.mrb[0].mxu0 %v1556
        %v1707 = vpop.f32.mrb[0].mxu0
        %v1708 = vadd.f32 %v1607, %v1707
        %v1709 = vpop.f32.mrb[0].mxu0
        %v1710 = vpop.f32.mrb[0].mxu0
        %v1711 = vadd.f32 %v1607, %v1710
        %v1712 = vpop.f32.mrb[0].mxu0
        %1713 = vmatprep.mubr.bf16.mxu0 0
        %1714 = vmatmul.mubr.bf16.gmra.mrb[0].mxu0 %v1557
        %v1715 = vpop.f32.mrb[0].mxu0
        %v1716 = vadd.f32 %v1607, %v1715
        %v1717 = vpop.f32.mrb[0].mxu0
        %v1718 = vpop.f32.mrb[0].mxu0
        %v1719 = vadd.f32 %v1607, %v1718
        %v1720 = vpop.f32.mrb[0].mxu0
        %1721 = vmatprep.mubr.bf16.mxu0 0
        %1722 = vmatmul.mubr.bf16.gmra.mrb[0].mxu0 %v1558
        %v1723 = vpop.f32.mrb[0].mxu0
        %v1724 = vadd.f32 %v1607, %v1723
        %v1725 = vpop.f32.mrb[0].mxu0
        %v1726 = vpop.f32.mrb[0].mxu0
        %v1727 = vadd.f32 %v1607, %v1726
        %v1728 = vpop.f32.mrb[0].mxu0
        %1729 = vmatprep.mubr.bf16.mxu0 0
        %1730 = vmatmul.mubr.bf16.gmra.mrb[0].mxu0 %v1559
        %v1731 = vpop.f32.mrb[0].mxu0
        %v1732 = vadd.f32 %v1607, %v1731
        %v1733 = vpop.f32.mrb[0].mxu0
        %v1734 = vpop.f32.mrb[0].mxu0
        %v1735 = vadd.f32 %v1607, %v1734
        %v1736 = vpop.f32.mrb[0].mxu0
        %1737 = vmatprep.mubr.bf16.mxu0 0
        %1738 = vmatmul.mubr.bf16.gmra.mrb[0].mxu0 %v1560
        %v1739 = vpop.f32.mrb[0].mxu0
        %v1740 = vadd.f32 %v1607, %v1739
        %v1741 = vpop.f32.mrb[0].mxu0
        %v1742 = vpop.f32.mrb[0].mxu0
        %v1743 = vadd.f32 %v1607, %v1742
        %v1744 = vpop.f32.mrb[0].mxu0
        %1745 = vmatprep.mubr.bf16.mxu0 0
        %1746 = vmatmul.mubr.bf16.gmra.mrb[0].mxu0 %v1561
        %v1747 = vpop.f32.mrb[0].mxu0
        %v1748 = vadd.f32 %v1607, %v1747
        %v1749 = vpop.f32.mrb[0].mxu0
        %v1750 = vpop.f32.mrb[0].mxu0
        %v1751 = vadd.f32 %v1607, %v1750
        %v1752 = vpop.f32.mrb[0].mxu0
        %1753 = vmatprep.mubr.bf16.mxu0 0
        %1754 = vmatmul.mubr.bf16.gmra.mrb[0].mxu0 %v1562
        %v1755 = vpop.f32.mrb[0].mxu0
        %v1756 = vadd.f32 %v1607, %v1755
        %v1757 = vpop.f32.mrb[0].mxu0
        %v1758 = vpop.f32.mrb[0].mxu0
        %v1759 = vadd.f32 %v1607, %v1758
        %v1760 = vpop.f32.mrb[0].mxu0
        %1761 = vmatprep.mubr.bf16.mxu0 0
        %1762 = vmatmul.mubr.bf16.gmra.mrb[0].mxu0 %v1563
        %v1763 = vpop.f32.mrb[0].mxu0
        %v1764 = vadd.f32 %v1607, %v1763
        %v1765 = vpop.f32.mrb[0].mxu0
        %v1766 = vpop.f32.mrb[0].mxu0
        %v1767 = vadd.f32 %v1607, %v1766
        %v1768 = vpop.f32.mrb[0].mxu0
        %1769 = vmatprep.mubr.bf16.mxu0 0
        %1770 = vmatmul.mubr.bf16.gmra.mrb[0].mxu0 %v1564
        %v1771 = vpop.f32.mrb[0].mxu0
        %v1772 = vadd.f32 %v1607, %v1771
        %v1773 = vpop.f32.mrb[0].mxu0
        %v1774 = vpop.f32.mrb[0].mxu0
        %v1775 = vadd.f32 %v1607, %v1774
        %v1776 = vpop.f32.mrb[0].mxu0
        %1777 = vmatprep.mubr.bf16.mxu0 0
        %1778 = vmatmul.mubr.bf16.gmra.mrb[0].mxu0 %v1565
        %v1779 = vpop.f32.mrb[0].mxu0
        %v1780 = vadd.f32 %v1607, %v1779
        %v1781 = vpop.f32.mrb[0].mxu0
        %v1782 = vpop.f32.mrb[0].mxu0
        %v1783 = vadd.f32 %v1607, %v1782
        %v1784 = vpop.f32.mrb[0].mxu0
        %1785 = vmatprep.mubr.bf16.mxu0 0
        %1786 = vmatmul.mubr.bf16.gmra.mrb[0].mxu0 %v1566
        %v1787 = vpop.f32.mrb[0].mxu0
        %v1788 = vadd.f32 %v1607, %v1787
        %v1789 = vpop.f32.mrb[0].mxu0
        %v1790 = vpop.f32.mrb[0].mxu0
        %v1791 = vadd.f32 %v1607, %v1790
        %v1792 = vpop.f32.mrb[0].mxu0
        %1793 = vmatprep.mubr.bf16.mxu0 0
        %1794 = vmatmul.mubr.bf16.gmra.mrb[0].mxu0 %v1567
        %v1795 = vpop.f32.mrb[0].mxu0
        %v1796 = vadd.f32 %v1607, %v1795
        %v1797 = vpop.f32.mrb[0].mxu0
        %v1798 = vpop.f32.mrb[0].mxu0
        %v1799 = vadd.f32 %v1607, %v1798
        %v1800 = vpop.f32.mrb[0].mxu0
        %1801 = vmatprep.mubr.bf16.mxu0 0
        %1802 = vmatmul.mubr.bf16.gmra.mrb[0].mxu0 %v1568
        %v1803 = vpop.f32.mrb[0].mxu0
        %v1804 = vadd.f32 %v1607, %v1803
        %v1805 = vpop.f32.mrb[0].mxu0
        %v1806 = vpop.f32.mrb[0].mxu0
        %v1807 = vadd.f32 %v1607, %v1806
        %v1808 = vpop.f32.mrb[0].mxu0
        %1809 = vmatprep.mubr.bf16.mxu0 0
        %1810 = vmatmul.mubr.bf16.gmra.mrb[0].mxu0 %v1569
        %v1811 = vpop.f32.mrb[0].mxu0
        %v1812 = vadd.f32 %v1607, %v1811
        %v1813 = vpop.f32.mrb[0].mxu0
        %v1814 = vpop.f32.mrb[0].mxu0
        %v1815 = vadd.f32 %v1607, %v1814
        %v1816 = vpop.f32.mrb[0].mxu0
        %1817 = vmatprep.mubr.bf16.mxu0 0
        %1818 = vmatmul.mubr.bf16.gmra.mrb[0].mxu0 %v1570
        %v1819 = vpop.f32.mrb[0].mxu0
        %v1820 = vadd.f32 %v1607, %v1819
        %v1821 = vpop.f32.mrb[0].mxu0
        %v1822 = vpop.f32.mrb[0].mxu0
        %v1823 = vadd.f32 %v1607, %v1822
        %v1824 = vpop.f32.mrb[0].mxu0
        %1825 = vmatprep.mubr.bf16.mxu0 0
        %1826 = vmatmul.mubr.bf16.gmra.mrb[0].mxu0 %v1571
        %v1827 = vpop.f32.mrb[0].mxu0
        %v1828 = vadd.f32 %v1607, %v1827
        %v1829 = vpop.f32.mrb[0].mxu0
        %v1830 = vpop.f32.mrb[0].mxu0
        %v1831 = vadd.f32 %v1607, %v1830
        %v1832 = vpop.f32.mrb[0].mxu0
        %1833 = vmatprep.mubr.bf16.mxu0 0
        %1834 = vmatmul.mubr.bf16.gmra.mrb[0].mxu0 %v1572
        %v1835 = vpop.f32.mrb[0].mxu0
        %v1836 = vadd.f32 %v1607, %v1835
        %v1837 = vpop.f32.mrb[0].mxu0
        %v1838 = vpop.f32.mrb[0].mxu0
        %v1839 = vadd.f32 %v1607, %v1838
        %v1840 = vpop.f32.mrb[0].mxu0
        %1841 = vmatprep.mubr.bf16.mxu0 0
        %1842 = vmatmul.mubr.bf16.gmra.mrb[0].mxu0 %v1573
        %v1843 = vpop.f32.mrb[0].mxu0
        %v1844 = vadd.f32 %v1607, %v1843
        %v1845 = vpop.f32.mrb[0].mxu0
        %v1846 = vpop.f32.mrb[0].mxu0
        %v1847 = vadd.f32 %v1607, %v1846
        %v1848 = vpop.f32.mrb[0].mxu0
        %1849 = vmatprep.mubr.bf16.mxu0 0
        %1850 = vmatmul.mubr.bf16.gmra.mrb[0].mxu0 %v1574
        %v1851 = vpop.f32.mrb[0].mxu0
        %v1852 = vadd.f32 %v1607, %v1851
        %v1853 = vpop.f32.mrb[0].mxu0
        %v1854 = vpop.f32.mrb[0].mxu0
        %v1855 = vadd.f32 %v1607, %v1854
        %v1856 = vpop.f32.mrb[0].mxu0
        %1857 = vmatprep.mubr.bf16.mxu0 0
        %1858 = vmatmul.mubr.bf16.gmra.mrb[0].mxu0 %v1575
        %v1859 = vpop.f32.mrb[0].mxu0
        %v1860 = vadd.f32 %v1607, %v1859
        %v1861 = vpop.f32.mrb[0].mxu0
        %v1862 = vpop.f32.mrb[0].mxu0
        %v1863 = vadd.f32 %v1607, %v1862
        %v1864 = vpop.f32.mrb[0].mxu0
        %1865 = vmatprep.mubr.bf16.mxu0 0
        %1866 = vmatmul.mubr.bf16.gmra.mrb[0].mxu0 %v1576
        %v1867 = vpop.f32.mrb[0].mxu0
        %v1868 = vadd.f32 %v1607, %v1867
        %v1869 = vpop.f32.mrb[0].mxu0
        %v1870 = vpop.f32.mrb[0].mxu0
        %v1871 = vadd.f32 %v1607, %v1870
        %v1872 = vpop.f32.mrb[0].mxu0
        %1873 = vmatprep.mubr.bf16.mxu0 0
        %1874 = vmatmul.mubr.bf16.gmra.mrb[0].mxu0 %v1577
        %v1875 = vpop.f32.mrb[0].mxu0
        %v1876 = vadd.f32 %v1607, %v1875
        %v1877 = vpop.f32.mrb[0].mxu0
        %v1878 = vpop.f32.mrb[0].mxu0
        %v1879 = vadd.f32 %v1607, %v1878
        %v1880 = vpop.f32.mrb[0].mxu0
        %1881 = vmatprep.mubr.bf16.mxu0 0
        %1882 = vmatmul.mubr.bf16.gmra.mrb[0].mxu0 %v1578
        %v1883 = vpop.f32.mrb[0].mxu0
        %v1884 = vadd.f32 %v1607, %v1883
        %v1885 = vpop.f32.mrb[0].mxu0
        %v1886 = vpop.f32.mrb[0].mxu0
        %v1887 = vadd.f32 %v1607, %v1886
        %v1888 = vpop.f32.mrb[0].mxu0
        %1889 = vmatprep.mubr.bf16.mxu0 0
        %1890 = vmatmul.mubr.bf16.gmra.mrb[0].mxu0 %v1579
        %v1891 = vpop.f32.mrb[0].mxu0
        %v1892 = vadd.f32 %v1607, %v1891
        %v1893 = vpop.f32.mrb[0].mxu0
        %v1894 = vpop.f32.mrb[0].mxu0
        %v1895 = vadd.f32 %v1607, %v1894
        %v1896 = vpop.f32.mrb[0].mxu0
        %1897 = vmatprep.mubr.bf16.mxu0 0
        %1898 = vmatmul.mubr.bf16.gmra.mrb[0].mxu0 %v1580
        %v1899 = vpop.f32.mrb[0].mxu0
        %v1900 = vadd.f32 %v1607, %v1899
        %v1901 = vpop.f32.mrb[0].mxu0
        %v1902 = vpop.f32.mrb[0].mxu0
        %v1903 = vadd.f32 %v1607, %v1902
        %v1904 = vpop.f32.mrb[0].mxu0
        %1905 = vmatprep.mubr.bf16.mxu0 0
        %1906 = vmatmul.mubr.bf16.gmra.mrb[0].mxu0 %v1581
        %v1907 = vpop.f32.mrb[0].mxu0
        %v1908 = vadd.f32 %v1607, %v1907
        %v1909 = vpop.f32.mrb[0].mxu0
        %v1910 = vpop.f32.mrb[0].mxu0
        %v1911 = vadd.f32 %v1607, %v1910
        %v1912 = vpop.f32.mrb[0].mxu0
        %1913 = vmatprep.mubr.bf16.mxu0 0
        %1914 = vmatmul.mubr.bf16.gmra.mrb[0].mxu0 %v1582
        %v1915 = vpop.f32.mrb[0].mxu0
        %v1916 = vadd.f32 %v1607, %v1915
        %v1917 = vpop.f32.mrb[0].mxu0
        %v1918 = vpop.f32.mrb[0].mxu0
        %v1919 = vadd.f32 %v1607, %v1918
        %v1920 = vpop.f32.mrb[0].mxu0
        %1921 = vmatprep.mubr.bf16.mxu0 0
        %1922 = vmatmul.mubr.bf16.gmra.mrb[0].mxu0 %v1583
        %v1923 = vpop.f32.mrb[0].mxu0
        %v1924 = vadd.f32 %v1607, %v1923
        %v1925 = vpop.f32.mrb[0].mxu0
        %v1926 = vpop.f32.mrb[0].mxu0
        %v1927 = vadd.f32 %v1607, %v1926
        %v1928 = vpop.f32.mrb[0].mxu0
        %1929 = vmatprep.mubr.bf16.mxu0 0
        %1930 = vmatmul.mubr.bf16.gmra.mrb[0].mxu0 %v1584
        %v1931 = vpop.f32.mrb[0].mxu0
        %v1932 = vadd.f32 %v1607, %v1931
        %v1933 = vpop.f32.mrb[0].mxu0
        %v1934 = vpop.f32.mrb[0].mxu0
        %v1935 = vadd.f32 %v1607, %v1934
        %v1936 = vpop.f32.mrb[0].mxu0
        %1937 = vmatprep.mubr.bf16.mxu0 0
        %1938 = vmatmul.mubr.bf16.gmra.mrb[0].mxu0 %v1585
        %v1939 = vpop.f32.mrb[0].mxu0
        %v1940 = vadd.f32 %v1607, %v1939
        %v1941 = vpop.f32.mrb[0].mxu0
        %v1942 = vpop.f32.mrb[0].mxu0
        %v1943 = vadd.f32 %v1607, %v1942
        %v1944 = vpop.f32.mrb[0].mxu0
        %1945 = vdwg.mxu0
        %v1946 = vmul.f32 %v1692, 0.2
        %v1947 = vmul.f32 %v1695, 0.2
        %v1948 = vmul.f32 %v1700, 0.2
        %v1949 = vmul.f32 %v1703, 0.2
        %v1950 = vmul.f32 %v1708, 0.2
        %v1951 = vmul.f32 %v1711, 0.2
        %v1952 = vmul.f32 %v1716, 0.2
        %v1953 = vmul.f32 %v1719, 0.2
        %v1954 = vmul.f32 %v1724, 0.2
        %v1955 = vmul.f32 %v1727, 0.2
        %v1956 = vmul.f32 %v1732, 0.2
        %v1957 = vmul.f32 %v1735, 0.2
        %v1958 = vmul.f32 %v1740, 0.2
        %v1959 = vmul.f32 %v1743, 0.2
        %v1960 = vmul.f32 %v1748, 0.2
        %v1961 = vmul.f32 %v1751, 0.2
        %v1962 = vmul.f32 %v1756, 0.2
        %v1963 = vmul.f32 %v1759, 0.2
        %v1964 = vmul.f32 %v1764, 0.2
        %v1965 = vmul.f32 %v1767, 0.2
        %v1966 = vmul.f32 %v1772, 0.2
        %v1967 = vmul.f32 %v1775, 0.2
        %v1968 = vmul.f32 %v1780, 0.2
        %v1969 = vmul.f32 %v1783, 0.2
        %v1970 = vmul.f32 %v1788, 0.2
        %v1971 = vmul.f32 %v1791, 0.2
        %v1972 = vmul.f32 %v1796, 0.2
        %v1973 = vmul.f32 %v1799, 0.2
        %v1974 = vmul.f32 %v1804, 0.2
        %v1975 = vmul.f32 %v1807, 0.2
        %v1976 = vmul.f32 %v1812, 0.2
        %v1977 = vmul.f32 %v1815, 0.2
        %v1978 = vmul.f32 %v1820, 0.2
        %v1979 = vmul.f32 %v1823, 0.2
        %v1980 = vmul.f32 %v1828, 0.2
        %v1981 = vmul.f32 %v1831, 0.2
        %v1982 = vmul.f32 %v1836, 0.2
        %v1983 = vmul.f32 %v1839, 0.2
        %v1984 = vmul.f32 %v1844, 0.2
        %v1985 = vmul.f32 %v1847, 0.2
        %v1986 = vmul.f32 %v1852, 0.2
        %v1987 = vmul.f32 %v1855, 0.2
        %v1988 = vmul.f32 %v1860, 0.2
        %v1989 = vmul.f32 %v1863, 0.2
        %v1990 = vmul.f32 %v1868, 0.2
        %v1991 = vmul.f32 %v1871, 0.2
        %v1992 = vmul.f32 %v1876, 0.2
        %v1993 = vmul.f32 %v1879, 0.2
        %v1994 = vmul.f32 %v1884, 0.2
        %v1995 = vmul.f32 %v1887, 0.2
        %v1996 = vmul.f32 %v1892, 0.2
        %v1997 = vmul.f32 %v1895, 0.2
        %v1998 = vmul.f32 %v1900, 0.2
        %v1999 = vmul.f32 %v1903, 0.2
        %v2000 = vmul.f32 %v1908, 0.2
        %v2001 = vmul.f32 %v1911, 0.2
        %v2002 = vmul.f32 %v1916, 0.2
        %v2003 = vmul.f32 %v1919, 0.2
        %v2004 = vmul.f32 %v1924, 0.2
        %v2005 = vmul.f32 %v1927, 0.2
        %v2006 = vmul.f32 %v1932, 0.2
        %v2007 = vmul.f32 %v1935, 0.2
        %v2008 = vmul.f32 %v1940, 0.2
        %v2009 = vmul.f32 %v1943, 0.2
        %v2010 = vmax.f32 %v1692, %v1946
        %v2011 = vmax.f32 %v1695, %v1947
        %v2012 = vmax.f32 %v1700, %v1948
        %v2013 = vmax.f32 %v1703, %v1949
        %v2014 = vmax.f32 %v1708, %v1950
        %v2015 = vmax.f32 %v1711, %v1951
        %v2016 = vmax.f32 %v1716, %v1952
        %v2017 = vmax.f32 %v1719, %v1953
        %v2018 = vmax.f32 %v1724, %v1954
        %v2019 = vmax.f32 %v1727, %v1955
        %v2020 = vmax.f32 %v1732, %v1956
        %v2021 = vmax.f32 %v1735, %v1957
        %v2022 = vmax.f32 %v1740, %v1958
        %v2023 = vmax.f32 %v1743, %v1959
        %v2024 = vmax.f32 %v1748, %v1960
        %v2025 = vmax.f32 %v1751, %v1961
        %v2026 = vmax.f32 %v1756, %v1962
        %v2027 = vmax.f32 %v1759, %v1963
        %v2028 = vmax.f32 %v1764, %v1964
        %v2029 = vmax.f32 %v1767, %v1965
        %v2030 = vmax.f32 %v1772, %v1966
        %v2031 = vmax.f32 %v1775, %v1967
        %v2032 = vmax.f32 %v1780, %v1968
        %v2033 = vmax.f32 %v1783, %v1969
        %v2034 = vmax.f32 %v1788, %v1970
        %v2035 = vmax.f32 %v1791, %v1971
        %v2036 = vmax.f32 %v1796, %v1972
        %v2037 = vmax.f32 %v1799, %v1973
        %v2038 = vmax.f32 %v1804, %v1974
        %v2039 = vmax.f32 %v1807, %v1975
        %v2040 = vmax.f32 %v1812, %v1976
        %v2041 = vmax.f32 %v1815, %v1977
        %v2042 = vmax.f32 %v1820, %v1978
        %v2043 = vmax.f32 %v1823, %v1979
        %v2044 = vmax.f32 %v1828, %v1980
        %v2045 = vmax.f32 %v1831, %v1981
        %v2046 = vmax.f32 %v1836, %v1982
        %v2047 = vmax.f32 %v1839, %v1983
        %v2048 = vmax.f32 %v1844, %v1984
        %v2049 = vmax.f32 %v1847, %v1985
        %v2050 = vmax.f32 %v1852, %v1986
        %v2051 = vmax.f32 %v1855, %v1987
        %v2052 = vmax.f32 %v1860, %v1988
        %v2053 = vmax.f32 %v1863, %v1989
        %v2054 = vmax.f32 %v1868, %v1990
        %v2055 = vmax.f32 %v1871, %v1991
        %v2056 = vmax.f32 %v1876, %v1992
        %v2057 = vmax.f32 %v1879, %v1993
        %v2058 = vmax.f32 %v1884, %v1994
        %v2059 = vmax.f32 %v1887, %v1995
        %v2060 = vmax.f32 %v1892, %v1996
        %v2061 = vmax.f32 %v1895, %v1997
        %v2062 = vmax.f32 %v1900, %v1998
        %v2063 = vmax.f32 %v1903, %v1999
        %v2064 = vmax.f32 %v1908, %v2000
        %v2065 = vmax.f32 %v1911, %v2001
        %v2066 = vmax.f32 %v1916, %v2002
        %v2067 = vmax.f32 %v1919, %v2003
        %v2068 = vmax.f32 %v1924, %v2004
        %v2069 = vmax.f32 %v1927, %v2005
        %v2070 = vmax.f32 %v1932, %v2006
        %v2071 = vmax.f32 %v1935, %v2007
        %v2072 = vmax.f32 %v1940, %v2008
        %v2073 = vmax.f32 %v1943, %v2009
        %v2074 = vpack.c.bf16 %v2011, %v2010
        %v2075 = vpack.c.bf16 %v2013, %v2012
        %v2076 = vpack.c.bf16 %v2015, %v2014
        %v2077 = vpack.c.bf16 %v2017, %v2016
        %v2078 = vpack.c.bf16 %v2019, %v2018
        %v2079 = vpack.c.bf16 %v2021, %v2020
        %v2080 = vpack.c.bf16 %v2023, %v2022
        %v2081 = vpack.c.bf16 %v2025, %v2024
        %v2082 = vpack.c.bf16 %v2027, %v2026
        %v2083 = vpack.c.bf16 %v2029, %v2028
        %v2084 = vpack.c.bf16 %v2031, %v2030
        %v2085 = vpack.c.bf16 %v2033, %v2032
        %v2086 = vpack.c.bf16 %v2035, %v2034
        %v2087 = vpack.c.bf16 %v2037, %v2036
        %v2088 = vpack.c.bf16 %v2039, %v2038
        %v2089 = vpack.c.bf16 %v2041, %v2040
        %v2090 = vpack.c.bf16 %v2043, %v2042
        %v2091 = vpack.c.bf16 %v2045, %v2044
        %v2092 = vpack.c.bf16 %v2047, %v2046
        %v2093 = vpack.c.bf16 %v2049, %v2048
        %v2094 = vpack.c.bf16 %v2051, %v2050
        %v2095 = vpack.c.bf16 %v2053, %v2052
        %v2096 = vpack.c.bf16 %v2055, %v2054
        %v2097 = vpack.c.bf16 %v2057, %v2056
        %v2098 = vpack.c.bf16 %v2059, %v2058
        %v2099 = vpack.c.bf16 %v2061, %v2060
        %v2100 = vpack.c.bf16 %v2063, %v2062
        %v2101 = vpack.c.bf16 %v2065, %v2064
        %v2102 = vpack.c.bf16 %v2067, %v2066
        %v2103 = vpack.c.bf16 %v2069, %v2068
        %v2104 = vpack.c.bf16 %v2071, %v2070
        %v2105 = vpack.c.bf16 %v2073, %v2072
        %v2106 = vld [vmem:[%s8] sm:$0xf]
        %v2107 = vld [vmem:[%s8 + $0x4] sm:$0xf]
        %v2108 = vld [vmem:[%s8 + $0x8] sm:$0xf]
        %v2109 = vld [vmem:[%s8 + $0xc] sm:$0xf]
        %v2110 = vld [vmem:[%s8 + $0x10] sm:$0xf]
        %v2111 = vld [vmem:[%s8 + $0x14] sm:$0xf]
        %v2112 = vld [vmem:[%s8 + $0x18] sm:$0xf]
        %v2113 = vld [vmem:[%s8 + $0x1c] sm:$0xf]
        %v2114 = vld [vmem:[%s9] sm:$0x1]
        %v2116 = vlaneseq
        %v2117 = vshrl.u32 %v2116, 7
        %v2118 = vsub.s32 0, %v2117
        %v2119 = vrot.slane %v2114, %v2118
        %v2129 = vunpack.c.l.b16 %v2106
        %v2130 = vunpack.c.l.b16 %v2107
        %v2131 = vunpack.c.l.b16 %v2108
        %v2132 = vunpack.c.l.b16 %v2109
        %v2133 = vunpack.c.l.b16 %v2110
        %v2134 = vunpack.c.l.b16 %v2111
        %v2135 = vunpack.c.l.b16 %v2112
        %v2136 = vunpack.c.l.b16 %v2113
        %v2137 = vpack.c.b16 %v2130, %v2129
        %v2138 = vpack.c.b16 %v2132, %v2131
        %v2139 = vpack.c.b16 %v2134, %v2133
        %v2140 = vpack.c.b16 %v2136, %v2135
        %vm2145 = vcmask 523264
        %v2147 = vsel %vm2145, %v2074, 0
        %v2150 = vsel %vm2145, %v2075, 0
        %v2153 = vsel %vm2145, %v2076, 0
        %v2156 = vsel %vm2145, %v2077, 0
        %v2159 = vsel %vm2145, %v2078, 0
        %v2162 = vsel %vm2145, %v2079, 0
        %v2165 = vsel %vm2145, %v2080, 0
        %v2168 = vsel %vm2145, %v2081, 0
        %v2171 = vsel %vm2145, %v2082, 0
        %v2174 = vsel %vm2145, %v2083, 0
        %v2177 = vsel %vm2145, %v2084, 0
        %v2180 = vsel %vm2145, %v2085, 0
        %v2183 = vsel %vm2145, %v2086, 0
        %v2186 = vsel %vm2145, %v2087, 0
        %v2189 = vsel %vm2145, %v2088, 0
        %v2192 = vsel %vm2145, %v2089, 0
        %v2195 = vsel %vm2145, %v2090, 0
        %v2198 = vsel %vm2145, %v2091, 0
        %v2201 = vsel %vm2145, %v2092, 0
        %v2204 = vsel %vm2145, %v2093, 0
        %v2207 = vsel %vm2145, %v2094, 0
        %v2210 = vsel %vm2145, %v2095, 0
        %v2213 = vsel %vm2145, %v2096, 0
        %v2216 = vsel %vm2145, %v2097, 0
        %v2219 = vsel %vm2145, %v2098, 0
        %v2222 = vsel %vm2145, %v2099, 0
        %v2225 = vsel %vm2145, %v2100, 0
        %v2228 = vsel %vm2145, %v2101, 0
        %v2231 = vsel %vm2145, %v2102, 0
        %v2234 = vsel %vm2145, %v2103, 0
        %v2237 = vsel %vm2145, %v2104, 0
        %v2240 = vsel %vm2145, %v2105, 0
        %2242 = vmatprep.subr.bf16.mxu0 0
        %2243 = vmatpush1.bf16.msra.mxu0 %v2137
        %2244 = vmatprep.subr.bf16.mxu0 0
        %2245 = vmatpush1.bf16.msra.mxu0 %v2138
        %2246 = vmatprep.subr.bf16.mxu0 0
        %2247 = vmatpush1.bf16.msra.mxu0 %v2139
        %2248 = vmatprep.subr.bf16.mxu0 0
        %2249 = vmatpush1.bf16.msra.mxu0 %v2140
        %2250 = vmatprep.subr.bf16.mxu0 0
        %2251 = vmatpush1.bf16.msra.mxu0 0
        %2252 = vmatprep.subr.bf16.mxu0 0
        %2253 = vmatpush1.bf16.msra.mxu0 0
        %2254 = vmatprep.subr.bf16.mxu0 0
        %2255 = vmatpush1.bf16.msra.mxu0 0
        %2256 = vmatprep.subr.bf16.mxu0 0
        %2257 = vmatpush1.bf16.msra.mxu0 0
        %2258 = vmatprep.subr.bf16.mxu0 0
        %2259 = vmatpush1.bf16.msra.mxu0 0
        %2260 = vmatprep.subr.bf16.mxu0 0
        %2261 = vmatpush1.bf16.msra.mxu0 0
        %2262 = vmatprep.subr.bf16.mxu0 0
        %2263 = vmatpush1.bf16.msra.mxu0 0
        %2264 = vmatprep.subr.bf16.mxu0 0
        %2265 = vmatpush1.bf16.msra.mxu0 0
        %2266 = vmatprep.subr.bf16.mxu0 0
        %2267 = vmatpush1.bf16.msra.mxu0 0
        %2268 = vmatprep.subr.bf16.mxu0 0
        %2269 = vmatpush1.bf16.msra.mxu0 0
        %2270 = vmatprep.subr.bf16.mxu0 0
        %2271 = vmatpush1.bf16.msra.mxu0 0
        %2272 = vmatprep.subr.bf16.mxu0 0
        %2273 = vmatpush1.bf16.msra.mxu0 0
        %2274 = vmatprep.mubr.bf16.mxu0 0
        %2275 = vmatmul.mubr.bf16.gmra.mrb[0].mxu0 %v2147
        %v2276 = vpop.f32.mrb[0].mxu0
        %v2277 = vadd.f32 %v2119, %v2276
        %v2278 = vpop.f32.mrb[0].mxu0
        %v2279 = vpop.f32.mrb[0].mxu0
        %v2280 = vadd.f32 %v2119, %v2279
        %v2281 = vpop.f32.mrb[0].mxu0
        %2282 = vmatprep.mubr.bf16.mxu0 0
        %2283 = vmatmul.mubr.bf16.gmra.mrb[0].mxu0 %v2150
        %v2284 = vpop.f32.mrb[0].mxu0
        %v2285 = vadd.f32 %v2119, %v2284
        %v2286 = vpop.f32.mrb[0].mxu0
        %v2287 = vpop.f32.mrb[0].mxu0
        %v2288 = vadd.f32 %v2119, %v2287
        %v2289 = vpop.f32.mrb[0].mxu0
        %2290 = vmatprep.mubr.bf16.mxu0 0
        %2291 = vmatmul.mubr.bf16.gmra.mrb[0].mxu0 %v2153
        %v2292 = vpop.f32.mrb[0].mxu0
        %v2293 = vadd.f32 %v2119, %v2292
        %v2294 = vpop.f32.mrb[0].mxu0
        %v2295 = vpop.f32.mrb[0].mxu0
        %v2296 = vadd.f32 %v2119, %v2295
        %v2297 = vpop.f32.mrb[0].mxu0
        %2298 = vmatprep.mubr.bf16.mxu0 0
        %2299 = vmatmul.mubr.bf16.gmra.mrb[0].mxu0 %v2156
        %v2300 = vpop.f32.mrb[0].mxu0
        %v2301 = vadd.f32 %v2119, %v2300
        %v2302 = vpop.f32.mrb[0].mxu0
        %v2303 = vpop.f32.mrb[0].mxu0
        %v2304 = vadd.f32 %v2119, %v2303
        %v2305 = vpop.f32.mrb[0].mxu0
        %2306 = vmatprep.mubr.bf16.mxu0 0
        %2307 = vmatmul.mubr.bf16.gmra.mrb[0].mxu0 %v2159
        %v2308 = vpop.f32.mrb[0].mxu0
        %v2309 = vadd.f32 %v2119, %v2308
        %v2310 = vpop.f32.mrb[0].mxu0
        %v2311 = vpop.f32.mrb[0].mxu0
        %v2312 = vadd.f32 %v2119, %v2311
        %v2313 = vpop.f32.mrb[0].mxu0
        %2314 = vmatprep.mubr.bf16.mxu0 0
        %2315 = vmatmul.mubr.bf16.gmra.mrb[0].mxu0 %v2162
        %v2316 = vpop.f32.mrb[0].mxu0
        %v2317 = vadd.f32 %v2119, %v2316
        %v2318 = vpop.f32.mrb[0].mxu0
        %v2319 = vpop.f32.mrb[0].mxu0
        %v2320 = vadd.f32 %v2119, %v2319
        %v2321 = vpop.f32.mrb[0].mxu0
        %2322 = vmatprep.mubr.bf16.mxu0 0
        %2323 = vmatmul.mubr.bf16.gmra.mrb[0].mxu0 %v2165
        %v2324 = vpop.f32.mrb[0].mxu0
        %v2325 = vadd.f32 %v2119, %v2324
        %v2326 = vpop.f32.mrb[0].mxu0
        %v2327 = vpop.f32.mrb[0].mxu0
        %v2328 = vadd.f32 %v2119, %v2327
        %v2329 = vpop.f32.mrb[0].mxu0
        %2330 = vmatprep.mubr.bf16.mxu0 0
        %2331 = vmatmul.mubr.bf16.gmra.mrb[0].mxu0 %v2168
        %v2332 = vpop.f32.mrb[0].mxu0
        %v2333 = vadd.f32 %v2119, %v2332
        %v2334 = vpop.f32.mrb[0].mxu0
        %v2335 = vpop.f32.mrb[0].mxu0
        %v2336 = vadd.f32 %v2119, %v2335
        %v2337 = vpop.f32.mrb[0].mxu0
        %2338 = vmatprep.mubr.bf16.mxu0 0
        %2339 = vmatmul.mubr.bf16.gmra.mrb[0].mxu0 %v2171
        %v2340 = vpop.f32.mrb[0].mxu0
        %v2341 = vadd.f32 %v2119, %v2340
        %v2342 = vpop.f32.mrb[0].mxu0
        %v2343 = vpop.f32.mrb[0].mxu0
        %v2344 = vadd.f32 %v2119, %v2343
        %v2345 = vpop.f32.mrb[0].mxu0
        %2346 = vmatprep.mubr.bf16.mxu0 0
        %2347 = vmatmul.mubr.bf16.gmra.mrb[0].mxu0 %v2174
        %v2348 = vpop.f32.mrb[0].mxu0
        %v2349 = vadd.f32 %v2119, %v2348
        %v2350 = vpop.f32.mrb[0].mxu0
        %v2351 = vpop.f32.mrb[0].mxu0
        %v2352 = vadd.f32 %v2119, %v2351
        %v2353 = vpop.f32.mrb[0].mxu0
        %2354 = vmatprep.mubr.bf16.mxu0 0
        %2355 = vmatmul.mubr.bf16.gmra.mrb[0].mxu0 %v2177
        %v2356 = vpop.f32.mrb[0].mxu0
        %v2357 = vadd.f32 %v2119, %v2356
        %v2358 = vpop.f32.mrb[0].mxu0
        %v2359 = vpop.f32.mrb[0].mxu0
        %v2360 = vadd.f32 %v2119, %v2359
        %v2361 = vpop.f32.mrb[0].mxu0
        %2362 = vmatprep.mubr.bf16.mxu0 0
        %2363 = vmatmul.mubr.bf16.gmra.mrb[0].mxu0 %v2180
        %v2364 = vpop.f32.mrb[0].mxu0
        %v2365 = vadd.f32 %v2119, %v2364
        %v2366 = vpop.f32.mrb[0].mxu0
        %v2367 = vpop.f32.mrb[0].mxu0
        %v2368 = vadd.f32 %v2119, %v2367
        %v2369 = vpop.f32.mrb[0].mxu0
        %2370 = vmatprep.mubr.bf16.mxu0 0
        %2371 = vmatmul.mubr.bf16.gmra.mrb[0].mxu0 %v2183
        %v2372 = vpop.f32.mrb[0].mxu0
        %v2373 = vadd.f32 %v2119, %v2372
        %v2374 = vpop.f32.mrb[0].mxu0
        %v2375 = vpop.f32.mrb[0].mxu0
        %v2376 = vadd.f32 %v2119, %v2375
        %v2377 = vpop.f32.mrb[0].mxu0
        %2378 = vmatprep.mubr.bf16.mxu0 0
        %2379 = vmatmul.mubr.bf16.gmra.mrb[0].mxu0 %v2186
        %v2380 = vpop.f32.mrb[0].mxu0
        %v2381 = vadd.f32 %v2119, %v2380
        %v2382 = vpop.f32.mrb[0].mxu0
        %v2383 = vpop.f32.mrb[0].mxu0
        %v2384 = vadd.f32 %v2119, %v2383
        %v2385 = vpop.f32.mrb[0].mxu0
        %2386 = vmatprep.mubr.bf16.mxu0 0
        %2387 = vmatmul.mubr.bf16.gmra.mrb[0].mxu0 %v2189
        %v2388 = vpop.f32.mrb[0].mxu0
        %v2389 = vadd.f32 %v2119, %v2388
        %v2390 = vpop.f32.mrb[0].mxu0
        %v2391 = vpop.f32.mrb[0].mxu0
        %v2392 = vadd.f32 %v2119, %v2391
        %v2393 = vpop.f32.mrb[0].mxu0
        %2394 = vmatprep.mubr.bf16.mxu0 0
        %2395 = vmatmul.mubr.bf16.gmra.mrb[0].mxu0 %v2192
        %v2396 = vpop.f32.mrb[0].mxu0
        %v2397 = vadd.f32 %v2119, %v2396
        %v2398 = vpop.f32.mrb[0].mxu0
        %v2399 = vpop.f32.mrb[0].mxu0
        %v2400 = vadd.f32 %v2119, %v2399
        %v2401 = vpop.f32.mrb[0].mxu0
        %2402 = vmatprep.mubr.bf16.mxu0 0
        %2403 = vmatmul.mubr.bf16.gmra.mrb[0].mxu0 %v2195
        %v2404 = vpop.f32.mrb[0].mxu0
        %v2405 = vadd.f32 %v2119, %v2404
        %v2406 = vpop.f32.mrb[0].mxu0
        %v2407 = vpop.f32.mrb[0].mxu0
        %v2408 = vadd.f32 %v2119, %v2407
        %v2409 = vpop.f32.mrb[0].mxu0
        %2410 = vmatprep.mubr.bf16.mxu0 0
        %2411 = vmatmul.mubr.bf16.gmra.mrb[0].mxu0 %v2198
        %v2412 = vpop.f32.mrb[0].mxu0
        %v2413 = vadd.f32 %v2119, %v2412
        %v2414 = vpop.f32.mrb[0].mxu0
        %v2415 = vpop.f32.mrb[0].mxu0
        %v2416 = vadd.f32 %v2119, %v2415
        %v2417 = vpop.f32.mrb[0].mxu0
        %2418 = vmatprep.mubr.bf16.mxu0 0
        %2419 = vmatmul.mubr.bf16.gmra.mrb[0].mxu0 %v2201
        %v2420 = vpop.f32.mrb[0].mxu0
        %v2421 = vadd.f32 %v2119, %v2420
        %v2422 = vpop.f32.mrb[0].mxu0
        %v2423 = vpop.f32.mrb[0].mxu0
        %v2424 = vadd.f32 %v2119, %v2423
        %v2425 = vpop.f32.mrb[0].mxu0
        %2426 = vmatprep.mubr.bf16.mxu0 0
        %2427 = vmatmul.mubr.bf16.gmra.mrb[0].mxu0 %v2204
        %v2428 = vpop.f32.mrb[0].mxu0
        %v2429 = vadd.f32 %v2119, %v2428
        %v2430 = vpop.f32.mrb[0].mxu0
        %v2431 = vpop.f32.mrb[0].mxu0
        %v2432 = vadd.f32 %v2119, %v2431
        %v2433 = vpop.f32.mrb[0].mxu0
        %2434 = vmatprep.mubr.bf16.mxu0 0
        %2435 = vmatmul.mubr.bf16.gmra.mrb[0].mxu0 %v2207
        %v2436 = vpop.f32.mrb[0].mxu0
        %v2437 = vadd.f32 %v2119, %v2436
        %v2438 = vpop.f32.mrb[0].mxu0
        %v2439 = vpop.f32.mrb[0].mxu0
        %v2440 = vadd.f32 %v2119, %v2439
        %v2441 = vpop.f32.mrb[0].mxu0
        %2442 = vmatprep.mubr.bf16.mxu0 0
        %2443 = vmatmul.mubr.bf16.gmra.mrb[0].mxu0 %v2210
        %v2444 = vpop.f32.mrb[0].mxu0
        %v2445 = vadd.f32 %v2119, %v2444
        %v2446 = vpop.f32.mrb[0].mxu0
        %v2447 = vpop.f32.mrb[0].mxu0
        %v2448 = vadd.f32 %v2119, %v2447
        %v2449 = vpop.f32.mrb[0].mxu0
        %2450 = vmatprep.mubr.bf16.mxu0 0
        %2451 = vmatmul.mubr.bf16.gmra.mrb[0].mxu0 %v2213
        %v2452 = vpop.f32.mrb[0].mxu0
        %v2453 = vadd.f32 %v2119, %v2452
        %v2454 = vpop.f32.mrb[0].mxu0
        %v2455 = vpop.f32.mrb[0].mxu0
        %v2456 = vadd.f32 %v2119, %v2455
        %v2457 = vpop.f32.mrb[0].mxu0
        %2458 = vmatprep.mubr.bf16.mxu0 0
        %2459 = vmatmul.mubr.bf16.gmra.mrb[0].mxu0 %v2216
        %v2460 = vpop.f32.mrb[0].mxu0
        %v2461 = vadd.f32 %v2119, %v2460
        %v2462 = vpop.f32.mrb[0].mxu0
        %v2463 = vpop.f32.mrb[0].mxu0
        %v2464 = vadd.f32 %v2119, %v2463
        %v2465 = vpop.f32.mrb[0].mxu0
        %2466 = vmatprep.mubr.bf16.mxu0 0
        %2467 = vmatmul.mubr.bf16.gmra.mrb[0].mxu0 %v2219
        %v2468 = vpop.f32.mrb[0].mxu0
        %v2469 = vadd.f32 %v2119, %v2468
        %v2470 = vpop.f32.mrb[0].mxu0
        %v2471 = vpop.f32.mrb[0].mxu0
        %v2472 = vadd.f32 %v2119, %v2471
        %v2473 = vpop.f32.mrb[0].mxu0
        %2474 = vmatprep.mubr.bf16.mxu0 0
        %2475 = vmatmul.mubr.bf16.gmra.mrb[0].mxu0 %v2222
        %v2476 = vpop.f32.mrb[0].mxu0
        %v2477 = vadd.f32 %v2119, %v2476
        %v2478 = vpop.f32.mrb[0].mxu0
        %v2479 = vpop.f32.mrb[0].mxu0
        %v2480 = vadd.f32 %v2119, %v2479
        %v2481 = vpop.f32.mrb[0].mxu0
        %2482 = vmatprep.mubr.bf16.mxu0 0
        %2483 = vmatmul.mubr.bf16.gmra.mrb[0].mxu0 %v2225
        %v2484 = vpop.f32.mrb[0].mxu0
        %v2485 = vadd.f32 %v2119, %v2484
        %v2486 = vpop.f32.mrb[0].mxu0
        %v2487 = vpop.f32.mrb[0].mxu0
        %v2488 = vadd.f32 %v2119, %v2487
        %v2489 = vpop.f32.mrb[0].mxu0
        %2490 = vmatprep.mubr.bf16.mxu0 0
        %2491 = vmatmul.mubr.bf16.gmra.mrb[0].mxu0 %v2228
        %v2492 = vpop.f32.mrb[0].mxu0
        %v2493 = vadd.f32 %v2119, %v2492
        %v2494 = vpop.f32.mrb[0].mxu0
        %v2495 = vpop.f32.mrb[0].mxu0
        %v2496 = vadd.f32 %v2119, %v2495
        %v2497 = vpop.f32.mrb[0].mxu0
        %2498 = vmatprep.mubr.bf16.mxu0 0
        %2499 = vmatmul.mubr.bf16.gmra.mrb[0].mxu0 %v2231
        %v2500 = vpop.f32.mrb[0].mxu0
        %v2501 = vadd.f32 %v2119, %v2500
        %v2502 = vpop.f32.mrb[0].mxu0
        %v2503 = vpop.f32.mrb[0].mxu0
        %v2504 = vadd.f32 %v2119, %v2503
        %v2505 = vpop.f32.mrb[0].mxu0
        %2506 = vmatprep.mubr.bf16.mxu0 0
        %2507 = vmatmul.mubr.bf16.gmra.mrb[0].mxu0 %v2234
        %v2508 = vpop.f32.mrb[0].mxu0
        %v2509 = vadd.f32 %v2119, %v2508
        %v2510 = vpop.f32.mrb[0].mxu0
        %v2511 = vpop.f32.mrb[0].mxu0
        %v2512 = vadd.f32 %v2119, %v2511
        %v2513 = vpop.f32.mrb[0].mxu0
        %2514 = vmatprep.mubr.bf16.mxu0 0
        %2515 = vmatmul.mubr.bf16.gmra.mrb[0].mxu0 %v2237
        %v2516 = vpop.f32.mrb[0].mxu0
        %v2517 = vadd.f32 %v2119, %v2516
        %v2518 = vpop.f32.mrb[0].mxu0
        %v2519 = vpop.f32.mrb[0].mxu0
        %v2520 = vadd.f32 %v2119, %v2519
        %v2521 = vpop.f32.mrb[0].mxu0
        %2522 = vmatprep.mubr.bf16.mxu0 0
        %2523 = vmatmul.mubr.bf16.gmra.mrb[0].mxu0 %v2240
        %v2524 = vpop.f32.mrb[0].mxu0
        %v2525 = vadd.f32 %v2119, %v2524
        %v2526 = vpop.f32.mrb[0].mxu0
        %v2527 = vpop.f32.mrb[0].mxu0
        %v2528 = vadd.f32 %v2119, %v2527
        %v2529 = vpop.f32.mrb[0].mxu0
        %2530 = vdwg.mxu0
        %v2531 = vmul.f32 %v2277, 0.2
        %v2532 = vmul.f32 %v2280, 0.2
        %v2533 = vmul.f32 %v2285, 0.2
        %v2534 = vmul.f32 %v2288, 0.2
        %v2535 = vmul.f32 %v2293, 0.2
        %v2536 = vmul.f32 %v2296, 0.2
        %v2537 = vmul.f32 %v2301, 0.2
        %v2538 = vmul.f32 %v2304, 0.2
        %v2539 = vmul.f32 %v2309, 0.2
        %v2540 = vmul.f32 %v2312, 0.2
        %v2541 = vmul.f32 %v2317, 0.2
        %v2542 = vmul.f32 %v2320, 0.2
        %v2543 = vmul.f32 %v2325, 0.2
        %v2544 = vmul.f32 %v2328, 0.2
        %v2545 = vmul.f32 %v2333, 0.2
        %v2546 = vmul.f32 %v2336, 0.2
        %v2547 = vmul.f32 %v2341, 0.2
        %v2548 = vmul.f32 %v2344, 0.2
        %v2549 = vmul.f32 %v2349, 0.2
        %v2550 = vmul.f32 %v2352, 0.2
        %v2551 = vmul.f32 %v2357, 0.2
        %v2552 = vmul.f32 %v2360, 0.2
        %v2553 = vmul.f32 %v2365, 0.2
        %v2554 = vmul.f32 %v2368, 0.2
        %v2555 = vmul.f32 %v2373, 0.2
        %v2556 = vmul.f32 %v2376, 0.2
        %v2557 = vmul.f32 %v2381, 0.2
        %v2558 = vmul.f32 %v2384, 0.2
        %v2559 = vmul.f32 %v2389, 0.2
        %v2560 = vmul.f32 %v2392, 0.2
        %v2561 = vmul.f32 %v2397, 0.2
        %v2562 = vmul.f32 %v2400, 0.2
        %v2563 = vmul.f32 %v2405, 0.2
        %v2564 = vmul.f32 %v2408, 0.2
        %v2565 = vmul.f32 %v2413, 0.2
        %v2566 = vmul.f32 %v2416, 0.2
        %v2567 = vmul.f32 %v2421, 0.2
        %v2568 = vmul.f32 %v2424, 0.2
        %v2569 = vmul.f32 %v2429, 0.2
        %v2570 = vmul.f32 %v2432, 0.2
        %v2571 = vmul.f32 %v2437, 0.2
        %v2572 = vmul.f32 %v2440, 0.2
        %v2573 = vmul.f32 %v2445, 0.2
        %v2574 = vmul.f32 %v2448, 0.2
        %v2575 = vmul.f32 %v2453, 0.2
        %v2576 = vmul.f32 %v2456, 0.2
        %v2577 = vmul.f32 %v2461, 0.2
        %v2578 = vmul.f32 %v2464, 0.2
        %v2579 = vmul.f32 %v2469, 0.2
        %v2580 = vmul.f32 %v2472, 0.2
        %v2581 = vmul.f32 %v2477, 0.2
        %v2582 = vmul.f32 %v2480, 0.2
        %v2583 = vmul.f32 %v2485, 0.2
        %v2584 = vmul.f32 %v2488, 0.2
        %v2585 = vmul.f32 %v2493, 0.2
        %v2586 = vmul.f32 %v2496, 0.2
        %v2587 = vmul.f32 %v2501, 0.2
        %v2588 = vmul.f32 %v2504, 0.2
        %v2589 = vmul.f32 %v2509, 0.2
        %v2590 = vmul.f32 %v2512, 0.2
        %v2591 = vmul.f32 %v2517, 0.2
        %v2592 = vmul.f32 %v2520, 0.2
        %v2593 = vmul.f32 %v2525, 0.2
        %v2594 = vmul.f32 %v2528, 0.2
        %v2595 = vmax.f32 %v2277, %v2531
        %v2596 = vmax.f32 %v2280, %v2532
        %v2597 = vmax.f32 %v2285, %v2533
        %v2598 = vmax.f32 %v2288, %v2534
        %v2599 = vmax.f32 %v2293, %v2535
        %v2600 = vmax.f32 %v2296, %v2536
        %v2601 = vmax.f32 %v2301, %v2537
        %v2602 = vmax.f32 %v2304, %v2538
        %v2603 = vmax.f32 %v2309, %v2539
        %v2604 = vmax.f32 %v2312, %v2540
        %v2605 = vmax.f32 %v2317, %v2541
        %v2606 = vmax.f32 %v2320, %v2542
        %v2607 = vmax.f32 %v2325, %v2543
        %v2608 = vmax.f32 %v2328, %v2544
        %v2609 = vmax.f32 %v2333, %v2545
        %v2610 = vmax.f32 %v2336, %v2546
        %v2611 = vmax.f32 %v2341, %v2547
        %v2612 = vmax.f32 %v2344, %v2548
        %v2613 = vmax.f32 %v2349, %v2549
        %v2614 = vmax.f32 %v2352, %v2550
        %v2615 = vmax.f32 %v2357, %v2551
        %v2616 = vmax.f32 %v2360, %v2552
        %v2617 = vmax.f32 %v2365, %v2553
        %v2618 = vmax.f32 %v2368, %v2554
        %v2619 = vmax.f32 %v2373, %v2555
        %v2620 = vmax.f32 %v2376, %v2556
        %v2621 = vmax.f32 %v2381, %v2557
        %v2622 = vmax.f32 %v2384, %v2558
        %v2623 = vmax.f32 %v2389, %v2559
        %v2624 = vmax.f32 %v2392, %v2560
        %v2625 = vmax.f32 %v2397, %v2561
        %v2626 = vmax.f32 %v2400, %v2562
        %v2627 = vmax.f32 %v2405, %v2563
        %v2628 = vmax.f32 %v2408, %v2564
        %v2629 = vmax.f32 %v2413, %v2565
        %v2630 = vmax.f32 %v2416, %v2566
        %v2631 = vmax.f32 %v2421, %v2567
        %v2632 = vmax.f32 %v2424, %v2568
        %v2633 = vmax.f32 %v2429, %v2569
        %v2634 = vmax.f32 %v2432, %v2570
        %v2635 = vmax.f32 %v2437, %v2571
        %v2636 = vmax.f32 %v2440, %v2572
        %v2637 = vmax.f32 %v2445, %v2573
        %v2638 = vmax.f32 %v2448, %v2574
        %v2639 = vmax.f32 %v2453, %v2575
        %v2640 = vmax.f32 %v2456, %v2576
        %v2641 = vmax.f32 %v2461, %v2577
        %v2642 = vmax.f32 %v2464, %v2578
        %v2643 = vmax.f32 %v2469, %v2579
        %v2644 = vmax.f32 %v2472, %v2580
        %v2645 = vmax.f32 %v2477, %v2581
        %v2646 = vmax.f32 %v2480, %v2582
        %v2647 = vmax.f32 %v2485, %v2583
        %v2648 = vmax.f32 %v2488, %v2584
        %v2649 = vmax.f32 %v2493, %v2585
        %v2650 = vmax.f32 %v2496, %v2586
        %v2651 = vmax.f32 %v2501, %v2587
        %v2652 = vmax.f32 %v2504, %v2588
        %v2653 = vmax.f32 %v2509, %v2589
        %v2654 = vmax.f32 %v2512, %v2590
        %v2655 = vmax.f32 %v2517, %v2591
        %v2656 = vmax.f32 %v2520, %v2592
        %v2657 = vmax.f32 %v2525, %v2593
        %v2658 = vmax.f32 %v2528, %v2594
        %v2659 = vld [vmem:[%s10] sm:$0x1]
        %v2661 = vlaneseq
        %v2662 = vshrl.u32 %v2661, 7
        %v2663 = vsub.s32 0, %v2662
        %v2664 = vrot.slane %v2659, %v2663
        %v2666 = vmul.f32 %v2595, %v2664
        %v2667 = vmul.f32 %v2596, %v2664
        %v2668 = vmul.f32 %v2597, %v2664
        %v2669 = vmul.f32 %v2598, %v2664
        %v2670 = vmul.f32 %v2599, %v2664
        %v2671 = vmul.f32 %v2600, %v2664
        %v2672 = vmul.f32 %v2601, %v2664
        %v2673 = vmul.f32 %v2602, %v2664
        %v2674 = vmul.f32 %v2603, %v2664
        %v2675 = vmul.f32 %v2604, %v2664
        %v2676 = vmul.f32 %v2605, %v2664
        %v2677 = vmul.f32 %v2606, %v2664
        %v2678 = vmul.f32 %v2607, %v2664
        %v2679 = vmul.f32 %v2608, %v2664
        %v2680 = vmul.f32 %v2609, %v2664
        %v2681 = vmul.f32 %v2610, %v2664
        %v2682 = vmul.f32 %v2611, %v2664
        %v2683 = vmul.f32 %v2612, %v2664
        %v2684 = vmul.f32 %v2613, %v2664
        %v2685 = vmul.f32 %v2614, %v2664
        %v2686 = vmul.f32 %v2615, %v2664
        %v2687 = vmul.f32 %v2616, %v2664
        %v2688 = vmul.f32 %v2617, %v2664
        %v2689 = vmul.f32 %v2618, %v2664
        %v2690 = vmul.f32 %v2619, %v2664
        %v2691 = vmul.f32 %v2620, %v2664
        %v2692 = vmul.f32 %v2621, %v2664
        %v2693 = vmul.f32 %v2622, %v2664
        %v2694 = vmul.f32 %v2623, %v2664
        %v2695 = vmul.f32 %v2624, %v2664
        %v2696 = vmul.f32 %v2625, %v2664
        %v2697 = vmul.f32 %v2626, %v2664
        %v2698 = vmul.f32 %v2627, %v2664
        %v2699 = vmul.f32 %v2628, %v2664
        %v2700 = vmul.f32 %v2629, %v2664
        %v2701 = vmul.f32 %v2630, %v2664
        %v2702 = vmul.f32 %v2631, %v2664
        %v2703 = vmul.f32 %v2632, %v2664
        %v2704 = vmul.f32 %v2633, %v2664
        %v2705 = vmul.f32 %v2634, %v2664
        %v2706 = vmul.f32 %v2635, %v2664
        %v2707 = vmul.f32 %v2636, %v2664
        %v2708 = vmul.f32 %v2637, %v2664
        %v2709 = vmul.f32 %v2638, %v2664
        %v2710 = vmul.f32 %v2639, %v2664
        %v2711 = vmul.f32 %v2640, %v2664
        %v2712 = vmul.f32 %v2641, %v2664
        %v2713 = vmul.f32 %v2642, %v2664
        %v2714 = vmul.f32 %v2643, %v2664
        %v2715 = vmul.f32 %v2644, %v2664
        %v2716 = vmul.f32 %v2645, %v2664
        %v2717 = vmul.f32 %v2646, %v2664
        %v2718 = vmul.f32 %v2647, %v2664
        %v2719 = vmul.f32 %v2648, %v2664
        %v2720 = vmul.f32 %v2649, %v2664
        %v2721 = vmul.f32 %v2650, %v2664
        %v2722 = vmul.f32 %v2651, %v2664
        %v2723 = vmul.f32 %v2652, %v2664
        %v2724 = vmul.f32 %v2653, %v2664
        %v2725 = vmul.f32 %v2654, %v2664
        %v2726 = vmul.f32 %v2655, %v2664
        %v2727 = vmul.f32 %v2656, %v2664
        %v2728 = vmul.f32 %v2657, %v2664
        %v2729 = vmul.f32 %v2658, %v2664
        %vm2730 = vcmask 130048
        %v2731 = vsel %vm2730, %v2666, 0.0
        %2732 = vadd.xlane.f32.xlu0 %v2731
        %v2733 = vpop.xlane.xlu0 %2732
        %v2734 = vsel %vm2730, %v2667, 0.0
        %2735 = vadd.xlane.f32.xlu0 %v2734
        %v2736 = vpop.xlane.xlu0 %2735
        %v2737 = vsel %vm2730, %v2668, 0.0
        %2738 = vadd.xlane.f32.xlu0 %v2737
        %v2739 = vpop.xlane.xlu0 %2738
        %v2740 = vsel %vm2730, %v2669, 0.0
        %2741 = vadd.xlane.f32.xlu0 %v2740
        %v2742 = vpop.xlane.xlu0 %2741
        %v2743 = vsel %vm2730, %v2670, 0.0
        %2744 = vadd.xlane.f32.xlu0 %v2743
        %v2745 = vpop.xlane.xlu0 %2744
        %v2746 = vsel %vm2730, %v2671, 0.0
        %2747 = vadd.xlane.f32.xlu0 %v2746
        %v2748 = vpop.xlane.xlu0 %2747
        %v2749 = vsel %vm2730, %v2672, 0.0
        %2750 = vadd.xlane.f32.xlu0 %v2749
        %v2751 = vpop.xlane.xlu0 %2750
        %v2752 = vsel %vm2730, %v2673, 0.0
        %2753 = vadd.xlane.f32.xlu0 %v2752
        %v2754 = vpop.xlane.xlu0 %2753
        %v2755 = vsel %vm2730, %v2674, 0.0
        %2756 = vadd.xlane.f32.xlu0 %v2755
        %v2757 = vpop.xlane.xlu0 %2756
        %v2758 = vsel %vm2730, %v2675, 0.0
        %2759 = vadd.xlane.f32.xlu0 %v2758
        %v2760 = vpop.xlane.xlu0 %2759
        %v2761 = vsel %vm2730, %v2676, 0.0
        %2762 = vadd.xlane.f32.xlu0 %v2761
        %v2763 = vpop.xlane.xlu0 %2762
        %v2764 = vsel %vm2730, %v2677, 0.0
        %2765 = vadd.xlane.f32.xlu0 %v2764
        %v2766 = vpop.xlane.xlu0 %2765
        %v2767 = vsel %vm2730, %v2678, 0.0
        %2768 = vadd.xlane.f32.xlu0 %v2767
        %v2769 = vpop.xlane.xlu0 %2768
        %v2770 = vsel %vm2730, %v2679, 0.0
        %2771 = vadd.xlane.f32.xlu0 %v2770
        %v2772 = vpop.xlane.xlu0 %2771
        %v2773 = vsel %vm2730, %v2680, 0.0
        %2774 = vadd.xlane.f32.xlu0 %v2773
        %v2775 = vpop.xlane.xlu0 %2774
        %v2776 = vsel %vm2730, %v2681, 0.0
        %2777 = vadd.xlane.f32.xlu0 %v2776
        %v2778 = vpop.xlane.xlu0 %2777
        %v2779 = vsel %vm2730, %v2682, 0.0
        %2780 = vadd.xlane.f32.xlu0 %v2779
        %v2781 = vpop.xlane.xlu0 %2780
        %v2782 = vsel %vm2730, %v2683, 0.0
        %2783 = vadd.xlane.f32.xlu0 %v2782
        %v2784 = vpop.xlane.xlu0 %2783
        %v2785 = vsel %vm2730, %v2684, 0.0
        %2786 = vadd.xlane.f32.xlu0 %v2785
        %v2787 = vpop.xlane.xlu0 %2786
        %v2788 = vsel %vm2730, %v2685, 0.0
        %2789 = vadd.xlane.f32.xlu0 %v2788
        %v2790 = vpop.xlane.xlu0 %2789
        %v2791 = vsel %vm2730, %v2686, 0.0
        %2792 = vadd.xlane.f32.xlu0 %v2791
        %v2793 = vpop.xlane.xlu0 %2792
        %v2794 = vsel %vm2730, %v2687, 0.0
        %2795 = vadd.xlane.f32.xlu0 %v2794
        %v2796 = vpop.xlane.xlu0 %2795
        %v2797 = vsel %vm2730, %v2688, 0.0
        %2798 = vadd.xlane.f32.xlu0 %v2797
        %v2799 = vpop.xlane.xlu0 %2798
        %v2800 = vsel %vm2730, %v2689, 0.0
        %2801 = vadd.xlane.f32.xlu0 %v2800
        %v2802 = vpop.xlane.xlu0 %2801
        %v2803 = vsel %vm2730, %v2690, 0.0
        %2804 = vadd.xlane.f32.xlu0 %v2803
        %v2805 = vpop.xlane.xlu0 %2804
        %v2806 = vsel %vm2730, %v2691, 0.0
        %2807 = vadd.xlane.f32.xlu0 %v2806
        %v2808 = vpop.xlane.xlu0 %2807
        %v2809 = vsel %vm2730, %v2692, 0.0
        %2810 = vadd.xlane.f32.xlu0 %v2809
        %v2811 = vpop.xlane.xlu0 %2810
        %v2812 = vsel %vm2730, %v2693, 0.0
        %2813 = vadd.xlane.f32.xlu0 %v2812
        %v2814 = vpop.xlane.xlu0 %2813
        %v2815 = vsel %vm2730, %v2694, 0.0
        %2816 = vadd.xlane.f32.xlu0 %v2815
        %v2817 = vpop.xlane.xlu0 %2816
        %v2818 = vsel %vm2730, %v2695, 0.0
        %2819 = vadd.xlane.f32.xlu0 %v2818
        %v2820 = vpop.xlane.xlu0 %2819
        %v2821 = vsel %vm2730, %v2696, 0.0
        %2822 = vadd.xlane.f32.xlu0 %v2821
        %v2823 = vpop.xlane.xlu0 %2822
        %v2824 = vsel %vm2730, %v2697, 0.0
        %2825 = vadd.xlane.f32.xlu0 %v2824
        %v2826 = vpop.xlane.xlu0 %2825
        %v2827 = vsel %vm2730, %v2698, 0.0
        %2828 = vadd.xlane.f32.xlu0 %v2827
        %v2829 = vpop.xlane.xlu0 %2828
        %v2830 = vsel %vm2730, %v2699, 0.0
        %2831 = vadd.xlane.f32.xlu0 %v2830
        %v2832 = vpop.xlane.xlu0 %2831
        %v2833 = vsel %vm2730, %v2700, 0.0
        %2834 = vadd.xlane.f32.xlu0 %v2833
        %v2835 = vpop.xlane.xlu0 %2834
        %v2836 = vsel %vm2730, %v2701, 0.0
        %2837 = vadd.xlane.f32.xlu0 %v2836
        %v2838 = vpop.xlane.xlu0 %2837
        %v2839 = vsel %vm2730, %v2702, 0.0
        %2840 = vadd.xlane.f32.xlu0 %v2839
        %v2841 = vpop.xlane.xlu0 %2840
        %v2842 = vsel %vm2730, %v2703, 0.0
        %2843 = vadd.xlane.f32.xlu0 %v2842
        %v2844 = vpop.xlane.xlu0 %2843
        %v2845 = vsel %vm2730, %v2704, 0.0
        %2846 = vadd.xlane.f32.xlu0 %v2845
        %v2847 = vpop.xlane.xlu0 %2846
        %v2848 = vsel %vm2730, %v2705, 0.0
        %2849 = vadd.xlane.f32.xlu0 %v2848
        %v2850 = vpop.xlane.xlu0 %2849
        %v2851 = vsel %vm2730, %v2706, 0.0
        %2852 = vadd.xlane.f32.xlu0 %v2851
        %v2853 = vpop.xlane.xlu0 %2852
        %v2854 = vsel %vm2730, %v2707, 0.0
        %2855 = vadd.xlane.f32.xlu0 %v2854
        %v2856 = vpop.xlane.xlu0 %2855
        %v2857 = vsel %vm2730, %v2708, 0.0
        %2858 = vadd.xlane.f32.xlu0 %v2857
        %v2859 = vpop.xlane.xlu0 %2858
        %v2860 = vsel %vm2730, %v2709, 0.0
        %2861 = vadd.xlane.f32.xlu0 %v2860
        %v2862 = vpop.xlane.xlu0 %2861
        %v2863 = vsel %vm2730, %v2710, 0.0
        %2864 = vadd.xlane.f32.xlu0 %v2863
        %v2865 = vpop.xlane.xlu0 %2864
        %v2866 = vsel %vm2730, %v2711, 0.0
        %2867 = vadd.xlane.f32.xlu0 %v2866
        %v2868 = vpop.xlane.xlu0 %2867
        %v2869 = vsel %vm2730, %v2712, 0.0
        %2870 = vadd.xlane.f32.xlu0 %v2869
        %v2871 = vpop.xlane.xlu0 %2870
        %v2872 = vsel %vm2730, %v2713, 0.0
        %2873 = vadd.xlane.f32.xlu0 %v2872
        %v2874 = vpop.xlane.xlu0 %2873
        %v2875 = vsel %vm2730, %v2714, 0.0
        %2876 = vadd.xlane.f32.xlu0 %v2875
        %v2877 = vpop.xlane.xlu0 %2876
        %v2878 = vsel %vm2730, %v2715, 0.0
        %2879 = vadd.xlane.f32.xlu0 %v2878
        %v2880 = vpop.xlane.xlu0 %2879
        %v2881 = vsel %vm2730, %v2716, 0.0
        %2882 = vadd.xlane.f32.xlu0 %v2881
        %v2883 = vpop.xlane.xlu0 %2882
        %v2884 = vsel %vm2730, %v2717, 0.0
        %2885 = vadd.xlane.f32.xlu0 %v2884
        %v2886 = vpop.xlane.xlu0 %2885
        %v2887 = vsel %vm2730, %v2718, 0.0
        %2888 = vadd.xlane.f32.xlu0 %v2887
        %v2889 = vpop.xlane.xlu0 %2888
        %v2890 = vsel %vm2730, %v2719, 0.0
        %2891 = vadd.xlane.f32.xlu0 %v2890
        %v2892 = vpop.xlane.xlu0 %2891
        %v2893 = vsel %vm2730, %v2720, 0.0
        %2894 = vadd.xlane.f32.xlu0 %v2893
        %v2895 = vpop.xlane.xlu0 %2894
        %v2896 = vsel %vm2730, %v2721, 0.0
        %2897 = vadd.xlane.f32.xlu0 %v2896
        %v2898 = vpop.xlane.xlu0 %2897
        %v2899 = vsel %vm2730, %v2722, 0.0
        %2900 = vadd.xlane.f32.xlu0 %v2899
        %v2901 = vpop.xlane.xlu0 %2900
        %v2902 = vsel %vm2730, %v2723, 0.0
        %2903 = vadd.xlane.f32.xlu0 %v2902
        %v2904 = vpop.xlane.xlu0 %2903
        %v2905 = vsel %vm2730, %v2724, 0.0
        %2906 = vadd.xlane.f32.xlu0 %v2905
        %v2907 = vpop.xlane.xlu0 %2906
        %v2908 = vsel %vm2730, %v2725, 0.0
        %2909 = vadd.xlane.f32.xlu0 %v2908
        %v2910 = vpop.xlane.xlu0 %2909
        %v2911 = vsel %vm2730, %v2726, 0.0
        %2912 = vadd.xlane.f32.xlu0 %v2911
        %v2913 = vpop.xlane.xlu0 %2912
        %v2914 = vsel %vm2730, %v2727, 0.0
        %2915 = vadd.xlane.f32.xlu0 %v2914
        %v2916 = vpop.xlane.xlu0 %2915
        %v2917 = vsel %vm2730, %v2728, 0.0
        %2918 = vadd.xlane.f32.xlu0 %v2917
        %v2919 = vpop.xlane.xlu0 %2918
        %v2920 = vsel %vm2730, %v2729, 0.0
        %2921 = vadd.xlane.f32.xlu0 %v2920
        %v2922 = vpop.xlane.xlu0 %2921
        %v2923 = vld [vmem:[#allocation3] sm:$0x1]
        %v2925 = vlaneseq
        %v2926 = vshrl.u32 %v2925, 7
        %v2927 = vsub.s32 0, %v2926
        %v2928 = vrot.slane %v2923, %v2927
        %v2930 = vadd.f32 %v2733, %v2928
        %v2931 = vadd.f32 %v2736, %v2928
        %v2932 = vadd.f32 %v2739, %v2928
        %v2933 = vadd.f32 %v2742, %v2928
        %v2934 = vadd.f32 %v2745, %v2928
        %v2935 = vadd.f32 %v2748, %v2928
        %v2936 = vadd.f32 %v2751, %v2928
        %v2937 = vadd.f32 %v2754, %v2928
        %v2938 = vadd.f32 %v2757, %v2928
        %v2939 = vadd.f32 %v2760, %v2928
        %v2940 = vadd.f32 %v2763, %v2928
        %v2941 = vadd.f32 %v2766, %v2928
        %v2942 = vadd.f32 %v2769, %v2928
        %v2943 = vadd.f32 %v2772, %v2928
        %v2944 = vadd.f32 %v2775, %v2928
        %v2945 = vadd.f32 %v2778, %v2928
        %v2946 = vadd.f32 %v2781, %v2928
        %v2947 = vadd.f32 %v2784, %v2928
        %v2948 = vadd.f32 %v2787, %v2928
        %v2949 = vadd.f32 %v2790, %v2928
        %v2950 = vadd.f32 %v2793, %v2928
        %v2951 = vadd.f32 %v2796, %v2928
        %v2952 = vadd.f32 %v2799, %v2928
        %v2953 = vadd.f32 %v2802, %v2928
        %v2954 = vadd.f32 %v2805, %v2928
        %v2955 = vadd.f32 %v2808, %v2928
        %v2956 = vadd.f32 %v2811, %v2928
        %v2957 = vadd.f32 %v2814, %v2928
        %v2958 = vadd.f32 %v2817, %v2928
        %v2959 = vadd.f32 %v2820, %v2928
        %v2960 = vadd.f32 %v2823, %v2928
        %v2961 = vadd.f32 %v2826, %v2928
        %v2962 = vadd.f32 %v2829, %v2928
        %v2963 = vadd.f32 %v2832, %v2928
        %v2964 = vadd.f32 %v2835, %v2928
        %v2965 = vadd.f32 %v2838, %v2928
        %v2966 = vadd.f32 %v2841, %v2928
        %v2967 = vadd.f32 %v2844, %v2928
        %v2968 = vadd.f32 %v2847, %v2928
        %v2969 = vadd.f32 %v2850, %v2928
        %v2970 = vadd.f32 %v2853, %v2928
        %v2971 = vadd.f32 %v2856, %v2928
        %v2972 = vadd.f32 %v2859, %v2928
        %v2973 = vadd.f32 %v2862, %v2928
        %v2974 = vadd.f32 %v2865, %v2928
        %v2975 = vadd.f32 %v2868, %v2928
        %v2976 = vadd.f32 %v2871, %v2928
        %v2977 = vadd.f32 %v2874, %v2928
        %v2978 = vadd.f32 %v2877, %v2928
        %v2979 = vadd.f32 %v2880, %v2928
        %v2980 = vadd.f32 %v2883, %v2928
        %v2981 = vadd.f32 %v2886, %v2928
        %v2982 = vadd.f32 %v2889, %v2928
        %v2983 = vadd.f32 %v2892, %v2928
        %v2984 = vadd.f32 %v2895, %v2928
        %v2985 = vadd.f32 %v2898, %v2928
        %v2986 = vadd.f32 %v2901, %v2928
        %v2987 = vadd.f32 %v2904, %v2928
        %v2988 = vadd.f32 %v2907, %v2928
        %v2989 = vadd.f32 %v2910, %v2928
        %v2990 = vadd.f32 %v2913, %v2928
        %v2991 = vadd.f32 %v2916, %v2928
        %v2992 = vadd.f32 %v2919, %v2928
        %v2993 = vadd.f32 %v2922, %v2928
        %s2994 = sld [smem:[#allocation2]]
        %v2995 = vstv %s2994
        %v2996 = vmul.f32 %v2995, %v450
        %v2997 = vmul.f32 %v2995, %v451
        %v2998 = vmul.f32 %v2995, %v452
        %v2999 = vmul.f32 %v2995, %v453
        %v3000 = vmul.f32 %v2995, %v454
        %v3001 = vmul.f32 %v2995, %v455
        %v3002 = vmul.f32 %v2995, %v456
        %v3003 = vmul.f32 %v2995, %v457
        %v3004 = vmul.f32 %v2995, %v458
        %v3005 = vmul.f32 %v2995, %v459
        %v3006 = vmul.f32 %v2995, %v460
        %v3007 = vmul.f32 %v2995, %v461
        %v3008 = vmul.f32 %v2995, %v462
        %v3009 = vmul.f32 %v2995, %v463
        %v3010 = vmul.f32 %v2995, %v464
        %v3011 = vmul.f32 %v2995, %v465
        %v3012 = vmul.f32 %v2995, %v466
        %v3013 = vmul.f32 %v2995, %v467
        %v3014 = vmul.f32 %v2995, %v468
        %v3015 = vmul.f32 %v2995, %v469
        %v3016 = vmul.f32 %v2995, %v470
        %v3017 = vmul.f32 %v2995, %v471
        %v3018 = vmul.f32 %v2995, %v472
        %v3019 = vmul.f32 %v2995, %v473
        %v3020 = vmul.f32 %v2995, %v474
        %v3021 = vmul.f32 %v2995, %v475
        %v3022 = vmul.f32 %v2995, %v476
        %v3023 = vmul.f32 %v2995, %v477
        %v3024 = vmul.f32 %v2995, %v478
        %v3025 = vmul.f32 %v2995, %v479
        %v3026 = vmul.f32 %v2995, %v480
        %v3027 = vmul.f32 %v2995, %v481
        %v3028 = vmul.f32 %v2995, %v482
        %v3029 = vmul.f32 %v2995, %v483
        %v3030 = vmul.f32 %v2995, %v484
        %v3031 = vmul.f32 %v2995, %v485
        %v3032 = vmul.f32 %v2995, %v486
        %v3033 = vmul.f32 %v2995, %v487
        %v3034 = vmul.f32 %v2995, %v488
        %v3035 = vmul.f32 %v2995, %v489
        %v3036 = vmul.f32 %v2995, %v490
        %v3037 = vmul.f32 %v2995, %v491
        %v3038 = vmul.f32 %v2995, %v492
        %v3039 = vmul.f32 %v2995, %v493
        %v3040 = vmul.f32 %v2995, %v494
        %v3041 = vmul.f32 %v2995, %v495
        %v3042 = vmul.f32 %v2995, %v496
        %v3043 = vmul.f32 %v2995, %v497
        %v3044 = vmul.f32 %v2995, %v498
        %v3045 = vmul.f32 %v2995, %v499
        %v3046 = vmul.f32 %v2995, %v500
        %v3047 = vmul.f32 %v2995, %v501
        %v3048 = vmul.f32 %v2995, %v502
        %v3049 = vmul.f32 %v2995, %v503
        %v3050 = vmul.f32 %v2995, %v504
        %v3051 = vmul.f32 %v2995, %v505
        %v3052 = vmul.f32 %v2995, %v506
        %v3053 = vmul.f32 %v2995, %v507
        %v3054 = vmul.f32 %v2995, %v508
        %v3055 = vmul.f32 %v2995, %v509
        %v3056 = vmul.f32 %v2995, %v510
        %v3057 = vmul.f32 %v2995, %v511
        %v3058 = vmul.f32 %v2995, %v512
        %v3059 = vmul.f32 %v2995, %v513
        %3124 = vrot.lane.b32.xlu0 %v2996, 1
        %v3125 = vpop.permute.xlu0 %3124
        %3126 = vrot.lane.b32.xlu0 %v2997, 1
        %v3127 = vpop.permute.xlu0 %3126
        %3128 = vrot.lane.b32.xlu0 %v2998, 1
        %v3129 = vpop.permute.xlu0 %3128
        %3130 = vrot.lane.b32.xlu0 %v2999, 1
        %v3131 = vpop.permute.xlu0 %3130
        %3132 = vrot.lane.b32.xlu0 %v3000, 1
        %v3133 = vpop.permute.xlu0 %3132
        %3134 = vrot.lane.b32.xlu0 %v3001, 1
        %v3135 = vpop.permute.xlu0 %3134
        %3136 = vrot.lane.b32.xlu0 %v3002, 1
        %v3137 = vpop.permute.xlu0 %3136
        %3138 = vrot.lane.b32.xlu0 %v3003, 1
        %v3139 = vpop.permute.xlu0 %3138
        %3140 = vrot.lane.b32.xlu0 %v3004, 1
        %v3141 = vpop.permute.xlu0 %3140
        %3142 = vrot.lane.b32.xlu0 %v3005, 1
        %v3143 = vpop.permute.xlu0 %3142
        %3144 = vrot.lane.b32.xlu0 %v3006, 1
        %v3145 = vpop.permute.xlu0 %3144
        %3146 = vrot.lane.b32.xlu0 %v3007, 1
        %v3147 = vpop.permute.xlu0 %3146
        %3148 = vrot.lane.b32.xlu0 %v3008, 1
        %v3149 = vpop.permute.xlu0 %3148
        %3150 = vrot.lane.b32.xlu0 %v3009, 1
        %v3151 = vpop.permute.xlu0 %3150
        %3152 = vrot.lane.b32.xlu0 %v3010, 1
        %v3153 = vpop.permute.xlu0 %3152
        %3154 = vrot.lane.b32.xlu0 %v3011, 1
        %v3155 = vpop.permute.xlu0 %3154
        %3156 = vrot.lane.b32.xlu0 %v3012, 1
        %v3157 = vpop.permute.xlu0 %3156
        %3158 = vrot.lane.b32.xlu0 %v3013, 1
        %v3159 = vpop.permute.xlu0 %3158
        %3160 = vrot.lane.b32.xlu0 %v3014, 1
        %v3161 = vpop.permute.xlu0 %3160
        %3162 = vrot.lane.b32.xlu0 %v3015, 1
        %v3163 = vpop.permute.xlu0 %3162
        %3164 = vrot.lane.b32.xlu0 %v3016, 1
        %v3165 = vpop.permute.xlu0 %3164
        %3166 = vrot.lane.b32.xlu0 %v3017, 1
        %v3167 = vpop.permute.xlu0 %3166
        %3168 = vrot.lane.b32.xlu0 %v3018, 1
        %v3169 = vpop.permute.xlu0 %3168
        %3170 = vrot.lane.b32.xlu0 %v3019, 1
        %v3171 = vpop.permute.xlu0 %3170
        %3172 = vrot.lane.b32.xlu0 %v3020, 1
        %v3173 = vpop.permute.xlu0 %3172
        %3174 = vrot.lane.b32.xlu0 %v3021, 1
        %v3175 = vpop.permute.xlu0 %3174
        %3176 = vrot.lane.b32.xlu0 %v3022, 1
        %v3177 = vpop.permute.xlu0 %3176
        %3178 = vrot.lane.b32.xlu0 %v3023, 1
        %v3179 = vpop.permute.xlu0 %3178
        %3180 = vrot.lane.b32.xlu0 %v3024, 1
        %v3181 = vpop.permute.xlu0 %3180
        %3182 = vrot.lane.b32.xlu0 %v3025, 1
        %v3183 = vpop.permute.xlu0 %3182
        %3184 = vrot.lane.b32.xlu0 %v3026, 1
        %v3185 = vpop.permute.xlu0 %3184
        %3186 = vrot.lane.b32.xlu0 %v3027, 1
        %v3187 = vpop.permute.xlu0 %3186
        %3188 = vrot.lane.b32.xlu0 %v3028, 1
        %v3189 = vpop.permute.xlu0 %3188
        %3190 = vrot.lane.b32.xlu0 %v3029, 1
        %v3191 = vpop.permute.xlu0 %3190
        %3192 = vrot.lane.b32.xlu0 %v3030, 1
        %v3193 = vpop.permute.xlu0 %3192
        %3194 = vrot.lane.b32.xlu0 %v3031, 1
        %v3195 = vpop.permute.xlu0 %3194
        %3196 = vrot.lane.b32.xlu0 %v3032, 1
        %v3197 = vpop.permute.xlu0 %3196
        %3198 = vrot.lane.b32.xlu0 %v3033, 1
        %v3199 = vpop.permute.xlu0 %3198
        %3200 = vrot.lane.b32.xlu0 %v3034, 1
        %v3201 = vpop.permute.xlu0 %3200
        %3202 = vrot.lane.b32.xlu0 %v3035, 1
        %v3203 = vpop.permute.xlu0 %3202
        %3204 = vrot.lane.b32.xlu0 %v3036, 1
        %v3205 = vpop.permute.xlu0 %3204
        %3206 = vrot.lane.b32.xlu0 %v3037, 1
        %v3207 = vpop.permute.xlu0 %3206
        %3208 = vrot.lane.b32.xlu0 %v3038, 1
        %v3209 = vpop.permute.xlu0 %3208
        %3210 = vrot.lane.b32.xlu0 %v3039, 1
        %v3211 = vpop.permute.xlu0 %3210
        %3212 = vrot.lane.b32.xlu0 %v3040, 1
        %v3213 = vpop.permute.xlu0 %3212
        %3214 = vrot.lane.b32.xlu0 %v3041, 1
        %v3215 = vpop.permute.xlu0 %3214
        %3216 = vrot.lane.b32.xlu0 %v3042, 1
        %v3217 = vpop.permute.xlu0 %3216
        %3218 = vrot.lane.b32.xlu0 %v3043, 1
        %v3219 = vpop.permute.xlu0 %3218
        %3220 = vrot.lane.b32.xlu0 %v3044, 1
        %v3221 = vpop.permute.xlu0 %3220
        %3222 = vrot.lane.b32.xlu0 %v3045, 1
        %v3223 = vpop.permute.xlu0 %3222
        %3224 = vrot.lane.b32.xlu0 %v3046, 1
        %v3225 = vpop.permute.xlu0 %3224
        %3226 = vrot.lane.b32.xlu0 %v3047, 1
        %v3227 = vpop.permute.xlu0 %3226
        %3228 = vrot.lane.b32.xlu0 %v3048, 1
        %v3229 = vpop.permute.xlu0 %3228
        %3230 = vrot.lane.b32.xlu0 %v3049, 1
        %v3231 = vpop.permute.xlu0 %3230
        %3232 = vrot.lane.b32.xlu0 %v3050, 1
        %v3233 = vpop.permute.xlu0 %3232
        %3234 = vrot.lane.b32.xlu0 %v3051, 1
        %v3235 = vpop.permute.xlu0 %3234
        %3236 = vrot.lane.b32.xlu0 %v3052, 1
        %v3237 = vpop.permute.xlu0 %3236
        %3238 = vrot.lane.b32.xlu0 %v3053, 1
        %v3239 = vpop.permute.xlu0 %3238
        %3240 = vrot.lane.b32.xlu0 %v3054, 1
        %v3241 = vpop.permute.xlu0 %3240
        %3242 = vrot.lane.b32.xlu0 %v3055, 1
        %v3243 = vpop.permute.xlu0 %3242
        %3244 = vrot.lane.b32.xlu0 %v3056, 1
        %v3245 = vpop.permute.xlu0 %3244
        %3246 = vrot.lane.b32.xlu0 %v3057, 1
        %v3247 = vpop.permute.xlu0 %3246
        %3248 = vrot.lane.b32.xlu0 %v3058, 1
        %v3249 = vpop.permute.xlu0 %3248
        %3250 = vrot.lane.b32.xlu0 %v3059, 1
        %v3251 = vpop.permute.xlu0 %3250
        %v3316 = vadd.f32 %v2930, %v3125
        %v3317 = vadd.f32 %v2931, %v3127
        %v3318 = vadd.f32 %v2932, %v3129
        %v3319 = vadd.f32 %v2933, %v3131
        %v3320 = vadd.f32 %v2934, %v3133
        %v3321 = vadd.f32 %v2935, %v3135
        %v3322 = vadd.f32 %v2936, %v3137
        %v3323 = vadd.f32 %v2937, %v3139
        %v3324 = vadd.f32 %v2938, %v3141
        %v3325 = vadd.f32 %v2939, %v3143
        %v3326 = vadd.f32 %v2940, %v3145
        %v3327 = vadd.f32 %v2941, %v3147
        %v3328 = vadd.f32 %v2942, %v3149
        %v3329 = vadd.f32 %v2943, %v3151
        %v3330 = vadd.f32 %v2944, %v3153
        %v3331 = vadd.f32 %v2945, %v3155
        %v3332 = vadd.f32 %v2946, %v3157
        %v3333 = vadd.f32 %v2947, %v3159
        %v3334 = vadd.f32 %v2948, %v3161
        %v3335 = vadd.f32 %v2949, %v3163
        %v3336 = vadd.f32 %v2950, %v3165
        %v3337 = vadd.f32 %v2951, %v3167
        %v3338 = vadd.f32 %v2952, %v3169
        %v3339 = vadd.f32 %v2953, %v3171
        %v3340 = vadd.f32 %v2954, %v3173
        %v3341 = vadd.f32 %v2955, %v3175
        %v3342 = vadd.f32 %v2956, %v3177
        %v3343 = vadd.f32 %v2957, %v3179
        %v3344 = vadd.f32 %v2958, %v3181
        %v3345 = vadd.f32 %v2959, %v3183
        %v3346 = vadd.f32 %v2960, %v3185
        %v3347 = vadd.f32 %v2961, %v3187
        %v3348 = vadd.f32 %v2962, %v3189
        %v3349 = vadd.f32 %v2963, %v3191
        %v3350 = vadd.f32 %v2964, %v3193
        %v3351 = vadd.f32 %v2965, %v3195
        %v3352 = vadd.f32 %v2966, %v3197
        %v3353 = vadd.f32 %v2967, %v3199
        %v3354 = vadd.f32 %v2968, %v3201
        %v3355 = vadd.f32 %v2969, %v3203
        %v3356 = vadd.f32 %v2970, %v3205
        %v3357 = vadd.f32 %v2971, %v3207
        %v3358 = vadd.f32 %v2972, %v3209
        %v3359 = vadd.f32 %v2973, %v3211
        %v3360 = vadd.f32 %v2974, %v3213
        %v3361 = vadd.f32 %v2975, %v3215
        %v3362 = vadd.f32 %v2976, %v3217
        %v3363 = vadd.f32 %v2977, %v3219
        %v3364 = vadd.f32 %v2978, %v3221
        %v3365 = vadd.f32 %v2979, %v3223
        %v3366 = vadd.f32 %v2980, %v3225
        %v3367 = vadd.f32 %v2981, %v3227
        %v3368 = vadd.f32 %v2982, %v3229
        %v3369 = vadd.f32 %v2983, %v3231
        %v3370 = vadd.f32 %v2984, %v3233
        %v3371 = vadd.f32 %v2985, %v3235
        %v3372 = vadd.f32 %v2986, %v3237
        %v3373 = vadd.f32 %v2987, %v3239
        %v3374 = vadd.f32 %v2988, %v3241
        %v3375 = vadd.f32 %v2989, %v3243
        %v3376 = vadd.f32 %v2990, %v3245
        %v3377 = vadd.f32 %v2991, %v3247
        %v3378 = vadd.f32 %v2992, %v3249
        %v3379 = vadd.f32 %v2993, %v3251
        %v3380 = vtanh.pop %v3316
        %v3381 = vtanh.pop %v3317
        %v3382 = vtanh.pop %v3318
        %v3383 = vtanh.pop %v3319
        %v3384 = vtanh.pop %v3320
        %v3385 = vtanh.pop %v3321
        %v3386 = vtanh.pop %v3322
        %v3387 = vtanh.pop %v3323
        %v3388 = vtanh.pop %v3324
        %v3389 = vtanh.pop %v3325
        %v3390 = vtanh.pop %v3326
        %v3391 = vtanh.pop %v3327
        %v3392 = vtanh.pop %v3328
        %v3393 = vtanh.pop %v3329
        %v3394 = vtanh.pop %v3330
        %v3395 = vtanh.pop %v3331
        %v3396 = vtanh.pop %v3332
        %v3397 = vtanh.pop %v3333
        %v3398 = vtanh.pop %v3334
        %v3399 = vtanh.pop %v3335
        %v3400 = vtanh.pop %v3336
        %v3401 = vtanh.pop %v3337
        %v3402 = vtanh.pop %v3338
        %v3403 = vtanh.pop %v3339
        %v3404 = vtanh.pop %v3340
        %v3405 = vtanh.pop %v3341
        %v3406 = vtanh.pop %v3342
        %v3407 = vtanh.pop %v3343
        %v3408 = vtanh.pop %v3344
        %v3409 = vtanh.pop %v3345
        %v3410 = vtanh.pop %v3346
        %v3411 = vtanh.pop %v3347
        %v3412 = vtanh.pop %v3348
        %v3413 = vtanh.pop %v3349
        %v3414 = vtanh.pop %v3350
        %v3415 = vtanh.pop %v3351
        %v3416 = vtanh.pop %v3352
        %v3417 = vtanh.pop %v3353
        %v3418 = vtanh.pop %v3354
        %v3419 = vtanh.pop %v3355
        %v3420 = vtanh.pop %v3356
        %v3421 = vtanh.pop %v3357
        %v3422 = vtanh.pop %v3358
        %v3423 = vtanh.pop %v3359
        %v3424 = vtanh.pop %v3360
        %v3425 = vtanh.pop %v3361
        %v3426 = vtanh.pop %v3362
        %v3427 = vtanh.pop %v3363
        %v3428 = vtanh.pop %v3364
        %v3429 = vtanh.pop %v3365
        %v3430 = vtanh.pop %v3366
        %v3431 = vtanh.pop %v3367
        %v3432 = vtanh.pop %v3368
        %v3433 = vtanh.pop %v3369
        %v3434 = vtanh.pop %v3370
        %v3435 = vtanh.pop %v3371
        %v3436 = vtanh.pop %v3372
        %v3437 = vtanh.pop %v3373
        %v3438 = vtanh.pop %v3374
        %v3439 = vtanh.pop %v3375
        %v3440 = vtanh.pop %v3376
        %v3441 = vtanh.pop %v3377
        %v3442 = vtanh.pop %v3378
        %v3443 = vtanh.pop %v3379
        %v3444 = vadd.f32 %v3380, 1.0
        %v3445 = vadd.f32 %v3381, 1.0
        %v3446 = vadd.f32 %v3382, 1.0
        %v3447 = vadd.f32 %v3383, 1.0
        %v3448 = vadd.f32 %v3384, 1.0
        %v3449 = vadd.f32 %v3385, 1.0
        %v3450 = vadd.f32 %v3386, 1.0
        %v3451 = vadd.f32 %v3387, 1.0
        %v3452 = vadd.f32 %v3388, 1.0
        %v3453 = vadd.f32 %v3389, 1.0
        %v3454 = vadd.f32 %v3390, 1.0
        %v3455 = vadd.f32 %v3391, 1.0
        %v3456 = vadd.f32 %v3392, 1.0
        %v3457 = vadd.f32 %v3393, 1.0
        %v3458 = vadd.f32 %v3394, 1.0
        %v3459 = vadd.f32 %v3395, 1.0
        %v3460 = vadd.f32 %v3396, 1.0
        %v3461 = vadd.f32 %v3397, 1.0
        %v3462 = vadd.f32 %v3398, 1.0
        %v3463 = vadd.f32 %v3399, 1.0
        %v3464 = vadd.f32 %v3400, 1.0
        %v3465 = vadd.f32 %v3401, 1.0
        %v3466 = vadd.f32 %v3402, 1.0
        %v3467 = vadd.f32 %v3403, 1.0
        %v3468 = vadd.f32 %v3404, 1.0
        %v3469 = vadd.f32 %v3405, 1.0
        %v3470 = vadd.f32 %v3406, 1.0
        %v3471 = vadd.f32 %v3407, 1.0
        %v3472 = vadd.f32 %v3408, 1.0
        %v3473 = vadd.f32 %v3409, 1.0
        %v3474 = vadd.f32 %v3410, 1.0
        %v3475 = vadd.f32 %v3411, 1.0
        %v3476 = vadd.f32 %v3412, 1.0
        %v3477 = vadd.f32 %v3413, 1.0
        %v3478 = vadd.f32 %v3414, 1.0
        %v3479 = vadd.f32 %v3415, 1.0
        %v3480 = vadd.f32 %v3416, 1.0
        %v3481 = vadd.f32 %v3417, 1.0
        %v3482 = vadd.f32 %v3418, 1.0
        %v3483 = vadd.f32 %v3419, 1.0
        %v3484 = vadd.f32 %v3420, 1.0
        %v3485 = vadd.f32 %v3421, 1.0
        %v3486 = vadd.f32 %v3422, 1.0
        %v3487 = vadd.f32 %v3423, 1.0
        %v3488 = vadd.f32 %v3424, 1.0
        %v3489 = vadd.f32 %v3425, 1.0
        %v3490 = vadd.f32 %v3426, 1.0
        %v3491 = vadd.f32 %v3427, 1.0
        %v3492 = vadd.f32 %v3428, 1.0
        %v3493 = vadd.f32 %v3429, 1.0
        %v3494 = vadd.f32 %v3430, 1.0
        %v3495 = vadd.f32 %v3431, 1.0
        %v3496 = vadd.f32 %v3432, 1.0
        %v3497 = vadd.f32 %v3433, 1.0
        %v3498 = vadd.f32 %v3434, 1.0
        %v3499 = vadd.f32 %v3435, 1.0
        %v3500 = vadd.f32 %v3436, 1.0
        %v3501 = vadd.f32 %v3437, 1.0
        %v3502 = vadd.f32 %v3438, 1.0
        %v3503 = vadd.f32 %v3439, 1.0
        %v3504 = vadd.f32 %v3440, 1.0
        %v3505 = vadd.f32 %v3441, 1.0
        %v3506 = vadd.f32 %v3442, 1.0
        %v3507 = vadd.f32 %v3443, 1.0
        %3572 = vset.pattern.permute.xlu0 0
        %3573 = vperm.xlu0 %3572, %v3444
        %v3574 = vpop.permute.xlu0 %3573
        %3575 = vset.pattern.permute.xlu0 0
        %3576 = vperm.xlu0 %3575, %v3445
        %v3577 = vpop.permute.xlu0 %3576
        %3578 = vset.pattern.permute.xlu0 0
        %3579 = vperm.xlu0 %3578, %v3446
        %v3580 = vpop.permute.xlu0 %3579
        %3581 = vset.pattern.permute.xlu0 0
        %3582 = vperm.xlu0 %3581, %v3447
        %v3583 = vpop.permute.xlu0 %3582
        %3584 = vset.pattern.permute.xlu0 0
        %3585 = vperm.xlu0 %3584, %v3448
        %v3586 = vpop.permute.xlu0 %3585
        %3587 = vset.pattern.permute.xlu0 0
        %3588 = vperm.xlu0 %3587, %v3449
        %v3589 = vpop.permute.xlu0 %3588
        %3590 = vset.pattern.permute.xlu0 0
        %3591 = vperm.xlu0 %3590, %v3450
        %v3592 = vpop.permute.xlu0 %3591
        %3593 = vset.pattern.permute.xlu0 0
        %3594 = vperm.xlu0 %3593, %v3451
        %v3595 = vpop.permute.xlu0 %3594
        %3596 = vset.pattern.permute.xlu0 0
        %3597 = vperm.xlu0 %3596, %v3452
        %v3598 = vpop.permute.xlu0 %3597
        %3599 = vset.pattern.permute.xlu0 0
        %3600 = vperm.xlu0 %3599, %v3453
        %v3601 = vpop.permute.xlu0 %3600
        %3602 = vset.pattern.permute.xlu0 0
        %3603 = vperm.xlu0 %3602, %v3454
        %v3604 = vpop.permute.xlu0 %3603
        %3605 = vset.pattern.permute.xlu0 0
        %3606 = vperm.xlu0 %3605, %v3455
        %v3607 = vpop.permute.xlu0 %3606
        %3608 = vset.pattern.permute.xlu0 0
        %3609 = vperm.xlu0 %3608, %v3456
        %v3610 = vpop.permute.xlu0 %3609
        %3611 = vset.pattern.permute.xlu0 0
        %3612 = vperm.xlu0 %3611, %v3457
        %v3613 = vpop.permute.xlu0 %3612
        %3614 = vset.pattern.permute.xlu0 0
        %3615 = vperm.xlu0 %3614, %v3458
        %v3616 = vpop.permute.xlu0 %3615
        %3617 = vset.pattern.permute.xlu0 0
        %3618 = vperm.xlu0 %3617, %v3459
        %v3619 = vpop.permute.xlu0 %3618
        %3620 = vset.pattern.permute.xlu0 0
        %3621 = vperm.xlu0 %3620, %v3460
        %v3622 = vpop.permute.xlu0 %3621
        %3623 = vset.pattern.permute.xlu0 0
        %3624 = vperm.xlu0 %3623, %v3461
        %v3625 = vpop.permute.xlu0 %3624
        %3626 = vset.pattern.permute.xlu0 0
        %3627 = vperm.xlu0 %3626, %v3462
        %v3628 = vpop.permute.xlu0 %3627
        %3629 = vset.pattern.permute.xlu0 0
        %3630 = vperm.xlu0 %3629, %v3463
        %v3631 = vpop.permute.xlu0 %3630
        %3632 = vset.pattern.permute.xlu0 0
        %3633 = vperm.xlu0 %3632, %v3464
        %v3634 = vpop.permute.xlu0 %3633
        %3635 = vset.pattern.permute.xlu0 0
        %3636 = vperm.xlu0 %3635, %v3465
        %v3637 = vpop.permute.xlu0 %3636
        %3638 = vset.pattern.permute.xlu0 0
        %3639 = vperm.xlu0 %3638, %v3466
        %v3640 = vpop.permute.xlu0 %3639
        %3641 = vset.pattern.permute.xlu0 0
        %3642 = vperm.xlu0 %3641, %v3467
        %v3643 = vpop.permute.xlu0 %3642
        %3644 = vset.pattern.permute.xlu0 0
        %3645 = vperm.xlu0 %3644, %v3468
        %v3646 = vpop.permute.xlu0 %3645
        %3647 = vset.pattern.permute.xlu0 0
        %3648 = vperm.xlu0 %3647, %v3469
        %v3649 = vpop.permute.xlu0 %3648
        %3650 = vset.pattern.permute.xlu0 0
        %3651 = vperm.xlu0 %3650, %v3470
        %v3652 = vpop.permute.xlu0 %3651
        %3653 = vset.pattern.permute.xlu0 0
        %3654 = vperm.xlu0 %3653, %v3471
        %v3655 = vpop.permute.xlu0 %3654
        %3656 = vset.pattern.permute.xlu0 0
        %3657 = vperm.xlu0 %3656, %v3472
        %v3658 = vpop.permute.xlu0 %3657
        %3659 = vset.pattern.permute.xlu0 0
        %3660 = vperm.xlu0 %3659, %v3473
        %v3661 = vpop.permute.xlu0 %3660
        %3662 = vset.pattern.permute.xlu0 0
        %3663 = vperm.xlu0 %3662, %v3474
        %v3664 = vpop.permute.xlu0 %3663
        %3665 = vset.pattern.permute.xlu0 0
        %3666 = vperm.xlu0 %3665, %v3475
        %v3667 = vpop.permute.xlu0 %3666
        %3668 = vset.pattern.permute.xlu0 0
        %3669 = vperm.xlu0 %3668, %v3476
        %v3670 = vpop.permute.xlu0 %3669
        %3671 = vset.pattern.permute.xlu0 0
        %3672 = vperm.xlu0 %3671, %v3477
        %v3673 = vpop.permute.xlu0 %3672
        %3674 = vset.pattern.permute.xlu0 0
        %3675 = vperm.xlu0 %3674, %v3478
        %v3676 = vpop.permute.xlu0 %3675
        %3677 = vset.pattern.permute.xlu0 0
        %3678 = vperm.xlu0 %3677, %v3479
        %v3679 = vpop.permute.xlu0 %3678
        %3680 = vset.pattern.permute.xlu0 0
        %3681 = vperm.xlu0 %3680, %v3480
        %v3682 = vpop.permute.xlu0 %3681
        %3683 = vset.pattern.permute.xlu0 0
        %3684 = vperm.xlu0 %3683, %v3481
        %v3685 = vpop.permute.xlu0 %3684
        %3686 = vset.pattern.permute.xlu0 0
        %3687 = vperm.xlu0 %3686, %v3482
        %v3688 = vpop.permute.xlu0 %3687
        %3689 = vset.pattern.permute.xlu0 0
        %3690 = vperm.xlu0 %3689, %v3483
        %v3691 = vpop.permute.xlu0 %3690
        %3692 = vset.pattern.permute.xlu0 0
        %3693 = vperm.xlu0 %3692, %v3484
        %v3694 = vpop.permute.xlu0 %3693
        %3695 = vset.pattern.permute.xlu0 0
        %3696 = vperm.xlu0 %3695, %v3485
        %v3697 = vpop.permute.xlu0 %3696
        %3698 = vset.pattern.permute.xlu0 0
        %3699 = vperm.xlu0 %3698, %v3486
        %v3700 = vpop.permute.xlu0 %3699
        %3701 = vset.pattern.permute.xlu0 0
        %3702 = vperm.xlu0 %3701, %v3487
        %v3703 = vpop.permute.xlu0 %3702
        %3704 = vset.pattern.permute.xlu0 0
        %3705 = vperm.xlu0 %3704, %v3488
        %v3706 = vpop.permute.xlu0 %3705
        %3707 = vset.pattern.permute.xlu0 0
        %3708 = vperm.xlu0 %3707, %v3489
        %v3709 = vpop.permute.xlu0 %3708
        %3710 = vset.pattern.permute.xlu0 0
        %3711 = vperm.xlu0 %3710, %v3490
        %v3712 = vpop.permute.xlu0 %3711
        %3713 = vset.pattern.permute.xlu0 0
        %3714 = vperm.xlu0 %3713, %v3491
        %v3715 = vpop.permute.xlu0 %3714
        %3716 = vset.pattern.permute.xlu0 0
        %3717 = vperm.xlu0 %3716, %v3492
        %v3718 = vpop.permute.xlu0 %3717
        %3719 = vset.pattern.permute.xlu0 0
        %3720 = vperm.xlu0 %3719, %v3493
        %v3721 = vpop.permute.xlu0 %3720
        %3722 = vset.pattern.permute.xlu0 0
        %3723 = vperm.xlu0 %3722, %v3494
        %v3724 = vpop.permute.xlu0 %3723
        %3725 = vset.pattern.permute.xlu0 0
        %3726 = vperm.xlu0 %3725, %v3495
        %v3727 = vpop.permute.xlu0 %3726
        %3728 = vset.pattern.permute.xlu0 0
        %3729 = vperm.xlu0 %3728, %v3496
        %v3730 = vpop.permute.xlu0 %3729
        %3731 = vset.pattern.permute.xlu0 0
        %3732 = vperm.xlu0 %3731, %v3497
        %v3733 = vpop.permute.xlu0 %3732
        %3734 = vset.pattern.permute.xlu0 0
        %3735 = vperm.xlu0 %3734, %v3498
        %v3736 = vpop.permute.xlu0 %3735
        %3737 = vset.pattern.permute.xlu0 0
        %3738 = vperm.xlu0 %3737, %v3499
        %v3739 = vpop.permute.xlu0 %3738
        %3740 = vset.pattern.permute.xlu0 0
        %3741 = vperm.xlu0 %3740, %v3500
        %v3742 = vpop.permute.xlu0 %3741
        %3743 = vset.pattern.permute.xlu0 0
        %3744 = vperm.xlu0 %3743, %v3501
        %v3745 = vpop.permute.xlu0 %3744
        %3746 = vset.pattern.permute.xlu0 0
        %3747 = vperm.xlu0 %3746, %v3502
        %v3748 = vpop.permute.xlu0 %3747
        %3749 = vset.pattern.permute.xlu0 0
        %3750 = vperm.xlu0 %3749, %v3503
        %v3751 = vpop.permute.xlu0 %3750
        %3752 = vset.pattern.permute.xlu0 0
        %3753 = vperm.xlu0 %3752, %v3504
        %v3754 = vpop.permute.xlu0 %3753
        %3755 = vset.pattern.permute.xlu0 0
        %3756 = vperm.xlu0 %3755, %v3505
        %v3757 = vpop.permute.xlu0 %3756
        %3758 = vset.pattern.permute.xlu0 0
        %3759 = vperm.xlu0 %3758, %v3506
        %v3760 = vpop.permute.xlu0 %3759
        %3761 = vset.pattern.permute.xlu0 0
        %3762 = vperm.xlu0 %3761, %v3507
        %v3763 = vpop.permute.xlu0 %3762
        %v3764 = vlaneseq
        %v3765 = vand.u32 %v3764, 127
        %v3766 = vlaneseq
        %v3767 = vshrl.u32 %v3766, 7
        %v3768 = vsub.s32 %v3765, %v3767
        %v3769 = vrot.slane %v3574, %v3768
        %v3770 = vadd.s32 %v3765, 4294967288
        %v3771 = vlaneseq
        %v3772 = vshrl.u32 %v3771, 7
        %v3773 = vsub.s32 %v3770, %v3772
        %v3774 = vrot.slane %v3577, %v3773
        %vm3775 = vcmask 130112
        %v3776 = vsel %vm3775, %v3774, %v3769
        %v3777 = vadd.s32 %v3765, 4294967280
        %v3778 = vlaneseq
        %v3779 = vshrl.u32 %v3778, 7
        %v3780 = vsub.s32 %v3777, %v3779
        %v3781 = vrot.slane %v3580, %v3780
        %vm3782 = vcmask 195712
        %v3783 = vsel %vm3782, %v3781, %v3776
        %v3784 = vadd.s32 %v3765, 4294967272
        %v3785 = vlaneseq
        %v3786 = vshrl.u32 %v3785, 7
        %v3787 = vsub.s32 %v3784, %v3786
        %v3788 = vrot.slane %v3583, %v3787
        %vm3789 = vcmask 261312
        %v3790 = vsel %vm3789, %v3788, %v3783
        %v3791 = vadd.s32 %v3765, 4294967264
        %v3792 = vlaneseq
        %v3793 = vshrl.u32 %v3792, 7
        %v3794 = vsub.s32 %v3791, %v3793
        %v3795 = vrot.slane %v3586, %v3794
        %vm3796 = vcmask 326912
        %v3797 = vsel %vm3796, %v3795, %v3790
        %v3798 = vadd.s32 %v3765, 4294967256
        %v3799 = vlaneseq
        %v3800 = vshrl.u32 %v3799, 7
        %v3801 = vsub.s32 %v3798, %v3800
        %v3802 = vrot.slane %v3589, %v3801
        %vm3803 = vcmask 392512
        %v3804 = vsel %vm3803, %v3802, %v3797
        %v3805 = vadd.s32 %v3765, 4294967248
        %v3806 = vlaneseq
        %v3807 = vshrl.u32 %v3806, 7
        %v3808 = vsub.s32 %v3805, %v3807
        %v3809 = vrot.slane %v3592, %v3808
        %vm3810 = vcmask 458112
        %v3811 = vsel %vm3810, %v3809, %v3804
        %v3812 = vadd.s32 %v3765, 4294967240
        %v3813 = vlaneseq
        %v3814 = vshrl.u32 %v3813, 7
        %v3815 = vsub.s32 %v3812, %v3814
        %v3816 = vrot.slane %v3595, %v3815
        %vm3817 = vcmask 523712
        %v3818 = vsel %vm3817, %v3816, %v3811
        %v3819 = vadd.s32 %v3765, 4294967232
        %v3820 = vlaneseq
        %v3821 = vshrl.u32 %v3820, 7
        %v3822 = vsub.s32 %v3819, %v3821
        %v3823 = vrot.slane %v3598, %v3822
        %vm3824 = vcmask 589312
        %v3825 = vsel %vm3824, %v3823, %v3818
        %v3826 = vadd.s32 %v3765, 4294967224
        %v3827 = vlaneseq
        %v3828 = vshrl.u32 %v3827, 7
        %v3829 = vsub.s32 %v3826, %v3828
        %v3830 = vrot.slane %v3601, %v3829
        %vm3831 = vcmask 654912
        %v3832 = vsel %vm3831, %v3830, %v3825
        %v3833 = vadd.s32 %v3765, 4294967216
        %v3834 = vlaneseq
        %v3835 = vshrl.u32 %v3834, 7
        %v3836 = vsub.s32 %v3833, %v3835
        %v3837 = vrot.slane %v3604, %v3836
        %vm3838 = vcmask 720512
        %v3839 = vsel %vm3838, %v3837, %v3832
        %v3840 = vadd.s32 %v3765, 4294967208
        %v3841 = vlaneseq
        %v3842 = vshrl.u32 %v3841, 7
        %v3843 = vsub.s32 %v3840, %v3842
        %v3844 = vrot.slane %v3607, %v3843
        %vm3845 = vcmask 786112
        %v3846 = vsel %vm3845, %v3844, %v3839
        %v3847 = vadd.s32 %v3765, 4294967200
        %v3848 = vlaneseq
        %v3849 = vshrl.u32 %v3848, 7
        %v3850 = vsub.s32 %v3847, %v3849
        %v3851 = vrot.slane %v3610, %v3850
        %vm3852 = vcmask 851712
        %v3853 = vsel %vm3852, %v3851, %v3846
        %v3854 = vadd.s32 %v3765, 4294967192
        %v3855 = vlaneseq
        %v3856 = vshrl.u32 %v3855, 7
        %v3857 = vsub.s32 %v3854, %v3856
        %v3858 = vrot.slane %v3613, %v3857
        %vm3859 = vcmask 917312
        %v3860 = vsel %vm3859, %v3858, %v3853
        %v3861 = vadd.s32 %v3765, 4294967184
        %v3862 = vlaneseq
        %v3863 = vshrl.u32 %v3862, 7
        %v3864 = vsub.s32 %v3861, %v3863
        %v3865 = vrot.slane %v3616, %v3864
        %vm3866 = vcmask 982912
        %v3867 = vsel %vm3866, %v3865, %v3860
        %v3868 = vadd.s32 %v3765, 4294967176
        %v3869 = vlaneseq
        %v3870 = vshrl.u32 %v3869, 7
        %v3871 = vsub.s32 %v3868, %v3870
        %v3872 = vrot.slane %v3619, %v3871
        %vm3873 = vcmask 1048512
        %v3874 = vsel %vm3873, %v3872, %v3867
        %v3875 = vlaneseq
        %v3876 = vshrl.u32 %v3875, 7
        %v3877 = vsub.s32 %v3765, %v3876
        %v3878 = vrot.slane %v3622, %v3877
        %v3879 = vlaneseq
        %v3880 = vshrl.u32 %v3879, 7
        %v3881 = vsub.s32 %v3770, %v3880
        %v3882 = vrot.slane %v3625, %v3881
        %v3883 = vsel %vm3775, %v3882, %v3878
        %v3884 = vlaneseq
        %v3885 = vshrl.u32 %v3884, 7
        %v3886 = vsub.s32 %v3777, %v3885
        %v3887 = vrot.slane %v3628, %v3886
        %v3888 = vsel %vm3782, %v3887, %v3883
        %v3889 = vlaneseq
        %v3890 = vshrl.u32 %v3889, 7
        %v3891 = vsub.s32 %v3784, %v3890
        %v3892 = vrot.slane %v3631, %v3891
        %v3893 = vsel %vm3789, %v3892, %v3888
        %v3894 = vlaneseq
        %v3895 = vshrl.u32 %v3894, 7
        %v3896 = vsub.s32 %v3791, %v3895
        %v3897 = vrot.slane %v3634, %v3896
        %v3898 = vsel %vm3796, %v3897, %v3893
        %v3899 = vlaneseq
        %v3900 = vshrl.u32 %v3899, 7
        %v3901 = vsub.s32 %v3798, %v3900
        %v3902 = vrot.slane %v3637, %v3901
        %v3903 = vsel %vm3803, %v3902, %v3898
        %v3904 = vlaneseq
        %v3905 = vshrl.u32 %v3904, 7
        %v3906 = vsub.s32 %v3805, %v3905
        %v3907 = vrot.slane %v3640, %v3906
        %v3908 = vsel %vm3810, %v3907, %v3903
        %v3909 = vlaneseq
        %v3910 = vshrl.u32 %v3909, 7
        %v3911 = vsub.s32 %v3812, %v3910
        %v3912 = vrot.slane %v3643, %v3911
        %v3913 = vsel %vm3817, %v3912, %v3908
        %v3914 = vlaneseq
        %v3915 = vshrl.u32 %v3914, 7
        %v3916 = vsub.s32 %v3819, %v3915
        %v3917 = vrot.slane %v3646, %v3916
        %v3918 = vsel %vm3824, %v3917, %v3913
        %v3919 = vlaneseq
        %v3920 = vshrl.u32 %v3919, 7
        %v3921 = vsub.s32 %v3826, %v3920
        %v3922 = vrot.slane %v3649, %v3921
        %v3923 = vsel %vm3831, %v3922, %v3918
        %v3924 = vlaneseq
        %v3925 = vshrl.u32 %v3924, 7
        %v3926 = vsub.s32 %v3833, %v3925
        %v3927 = vrot.slane %v3652, %v3926
        %v3928 = vsel %vm3838, %v3927, %v3923
        %v3929 = vlaneseq
        %v3930 = vshrl.u32 %v3929, 7
        %v3931 = vsub.s32 %v3840, %v3930
        %v3932 = vrot.slane %v3655, %v3931
        %v3933 = vsel %vm3845, %v3932, %v3928
        %v3934 = vlaneseq
        %v3935 = vshrl.u32 %v3934, 7
        %v3936 = vsub.s32 %v3847, %v3935
        %v3937 = vrot.slane %v3658, %v3936
        %v3938 = vsel %vm3852, %v3937, %v3933
        %v3939 = vlaneseq
        %v3940 = vshrl.u32 %v3939, 7
        %v3941 = vsub.s32 %v3854, %v3940
        %v3942 = vrot.slane %v3661, %v3941
        %v3943 = vsel %vm3859, %v3942, %v3938
        %v3944 = vlaneseq
        %v3945 = vshrl.u32 %v3944, 7
        %v3946 = vsub.s32 %v3861, %v3945
        %v3947 = vrot.slane %v3664, %v3946
        %v3948 = vsel %vm3866, %v3947, %v3943
        %v3949 = vlaneseq
        %v3950 = vshrl.u32 %v3949, 7
        %v3951 = vsub.s32 %v3868, %v3950
        %v3952 = vrot.slane %v3667, %v3951
        %v3953 = vsel %vm3873, %v3952, %v3948
        %v3954 = vlaneseq
        %v3955 = vshrl.u32 %v3954, 7
        %v3956 = vsub.s32 %v3765, %v3955
        %v3957 = vrot.slane %v3670, %v3956
        %v3958 = vlaneseq
        %v3959 = vshrl.u32 %v3958, 7
        %v3960 = vsub.s32 %v3770, %v3959
        %v3961 = vrot.slane %v3673, %v3960
        %v3962 = vsel %vm3775, %v3961, %v3957
        %v3963 = vlaneseq
        %v3964 = vshrl.u32 %v3963, 7
        %v3965 = vsub.s32 %v3777, %v3964
        %v3966 = vrot.slane %v3676, %v3965
        %v3967 = vsel %vm3782, %v3966, %v3962
        %v3968 = vlaneseq
        %v3969 = vshrl.u32 %v3968, 7
        %v3970 = vsub.s32 %v3784, %v3969
        %v3971 = vrot.slane %v3679, %v3970
        %v3972 = vsel %vm3789, %v3971, %v3967
        %v3973 = vlaneseq
        %v3974 = vshrl.u32 %v3973, 7
        %v3975 = vsub.s32 %v3791, %v3974
        %v3976 = vrot.slane %v3682, %v3975
        %v3977 = vsel %vm3796, %v3976, %v3972
        %v3978 = vlaneseq
        %v3979 = vshrl.u32 %v3978, 7
        %v3980 = vsub.s32 %v3798, %v3979
        %v3981 = vrot.slane %v3685, %v3980
        %v3982 = vsel %vm3803, %v3981, %v3977
        %v3983 = vlaneseq
        %v3984 = vshrl.u32 %v3983, 7
        %v3985 = vsub.s32 %v3805, %v3984
        %v3986 = vrot.slane %v3688, %v3985
        %v3987 = vsel %vm3810, %v3986, %v3982
        %v3988 = vlaneseq
        %v3989 = vshrl.u32 %v3988, 7
        %v3990 = vsub.s32 %v3812, %v3989
        %v3991 = vrot.slane %v3691, %v3990
        %v3992 = vsel %vm3817, %v3991, %v3987
        %v3993 = vlaneseq
        %v3994 = vshrl.u32 %v3993, 7
        %v3995 = vsub.s32 %v3819, %v3994
        %v3996 = vrot.slane %v3694, %v3995
        %v3997 = vsel %vm3824, %v3996, %v3992
        %v3998 = vlaneseq
        %v3999 = vshrl.u32 %v3998, 7
        %v4000 = vsub.s32 %v3826, %v3999
        %v4001 = vrot.slane %v3697, %v4000
        %v4002 = vsel %vm3831, %v4001, %v3997
        %v4003 = vlaneseq
        %v4004 = vshrl.u32 %v4003, 7
        %v4005 = vsub.s32 %v3833, %v4004
        %v4006 = vrot.slane %v3700, %v4005
        %v4007 = vsel %vm3838, %v4006, %v4002
        %v4008 = vlaneseq
        %v4009 = vshrl.u32 %v4008, 7
        %v4010 = vsub.s32 %v3840, %v4009
        %v4011 = vrot.slane %v3703, %v4010
        %v4012 = vsel %vm3845, %v4011, %v4007
        %v4013 = vlaneseq
        %v4014 = vshrl.u32 %v4013, 7
        %v4015 = vsub.s32 %v3847, %v4014
        %v4016 = vrot.slane %v3706, %v4015
        %v4017 = vsel %vm3852, %v4016, %v4012
        %v4018 = vlaneseq
        %v4019 = vshrl.u32 %v4018, 7
        %v4020 = vsub.s32 %v3854, %v4019
        %v4021 = vrot.slane %v3709, %v4020
        %v4022 = vsel %vm3859, %v4021, %v4017
        %v4023 = vlaneseq
        %v4024 = vshrl.u32 %v4023, 7
        %v4025 = vsub.s32 %v3861, %v4024
        %v4026 = vrot.slane %v3712, %v4025
        %v4027 = vsel %vm3866, %v4026, %v4022
        %v4028 = vlaneseq
        %v4029 = vshrl.u32 %v4028, 7
        %v4030 = vsub.s32 %v3868, %v4029
        %v4031 = vrot.slane %v3715, %v4030
        %v4032 = vsel %vm3873, %v4031, %v4027
        %v4033 = vlaneseq
        %v4034 = vshrl.u32 %v4033, 7
        %v4035 = vsub.s32 %v3765, %v4034
        %v4036 = vrot.slane %v3718, %v4035
        %v4037 = vlaneseq
        %v4038 = vshrl.u32 %v4037, 7
        %v4039 = vsub.s32 %v3770, %v4038
        %v4040 = vrot.slane %v3721, %v4039
        %v4041 = vsel %vm3775, %v4040, %v4036
        %v4042 = vlaneseq
        %v4043 = vshrl.u32 %v4042, 7
        %v4044 = vsub.s32 %v3777, %v4043
        %v4045 = vrot.slane %v3724, %v4044
        %v4046 = vsel %vm3782, %v4045, %v4041
        %v4047 = vlaneseq
        %v4048 = vshrl.u32 %v4047, 7
        %v4049 = vsub.s32 %v3784, %v4048
        %v4050 = vrot.slane %v3727, %v4049
        %v4051 = vsel %vm3789, %v4050, %v4046
        %v4052 = vlaneseq
        %v4053 = vshrl.u32 %v4052, 7
        %v4054 = vsub.s32 %v3791, %v4053
        %v4055 = vrot.slane %v3730, %v4054
        %v4056 = vsel %vm3796, %v4055, %v4051
        %v4057 = vlaneseq
        %v4058 = vshrl.u32 %v4057, 7
        %v4059 = vsub.s32 %v3798, %v4058
        %v4060 = vrot.slane %v3733, %v4059
        %v4061 = vsel %vm3803, %v4060, %v4056
        %v4062 = vlaneseq
        %v4063 = vshrl.u32 %v4062, 7
        %v4064 = vsub.s32 %v3805, %v4063
        %v4065 = vrot.slane %v3736, %v4064
        %v4066 = vsel %vm3810, %v4065, %v4061
        %v4067 = vlaneseq
        %v4068 = vshrl.u32 %v4067, 7
        %v4069 = vsub.s32 %v3812, %v4068
        %v4070 = vrot.slane %v3739, %v4069
        %v4071 = vsel %vm3817, %v4070, %v4066
        %v4072 = vlaneseq
        %v4073 = vshrl.u32 %v4072, 7
        %v4074 = vsub.s32 %v3819, %v4073
        %v4075 = vrot.slane %v3742, %v4074
        %v4076 = vsel %vm3824, %v4075, %v4071
        %v4077 = vlaneseq
        %v4078 = vshrl.u32 %v4077, 7
        %v4079 = vsub.s32 %v3826, %v4078
        %v4080 = vrot.slane %v3745, %v4079
        %v4081 = vsel %vm3831, %v4080, %v4076
        %v4082 = vlaneseq
        %v4083 = vshrl.u32 %v4082, 7
        %v4084 = vsub.s32 %v3833, %v4083
        %v4085 = vrot.slane %v3748, %v4084
        %v4086 = vsel %vm3838, %v4085, %v4081
        %v4087 = vlaneseq
        %v4088 = vshrl.u32 %v4087, 7
        %v4089 = vsub.s32 %v3840, %v4088
        %v4090 = vrot.slane %v3751, %v4089
        %v4091 = vsel %vm3845, %v4090, %v4086
        %v4092 = vlaneseq
        %v4093 = vshrl.u32 %v4092, 7
        %v4094 = vsub.s32 %v3847, %v4093
        %v4095 = vrot.slane %v3754, %v4094
        %v4096 = vsel %vm3852, %v4095, %v4091
        %v4097 = vlaneseq
        %v4098 = vshrl.u32 %v4097, 7
        %v4099 = vsub.s32 %v3854, %v4098
        %v4100 = vrot.slane %v3757, %v4099
        %v4101 = vsel %vm3859, %v4100, %v4096
        %v4102 = vlaneseq
        %v4103 = vshrl.u32 %v4102, 7
        %v4104 = vsub.s32 %v3861, %v4103
        %v4105 = vrot.slane %v3760, %v4104
        %v4106 = vsel %vm3866, %v4105, %v4101
        %v4107 = vlaneseq
        %v4108 = vshrl.u32 %v4107, 7
        %v4109 = vsub.s32 %v3868, %v4108
        %v4110 = vrot.slane %v3763, %v4109
        %v4111 = vsel %vm3873, %v4110, %v4106
        %vm4112 = vcmask 1041409
        %v4113 = vsel %vm4112, %v3953, %v3874
        %vm4114 = vcmask 1042434
        %v4115 = vsel %vm4114, %v4032, %v4113
        %vm4116 = vcmask 1043459
        %v4117 = vsel %vm4116, %v4111, %v4115
        %4119 = vst [vmem:[%s447] sm:$0xf] %v4117
        %s4120 = sand.u32 %s298, 1
        %s4121 = scalar_lea.sflag [#allocation6], %s4120
        %s4122 = sand.u32 %s298, 1
        %s4123 = smul.addr %s4122, 4
        %s4124 = scalar_lea.vmem [#allocation9], %s4123
        // Predicated region
        $region77: #{tpu_custom_call.1} parent=67 // pred_check
          %p4125 = pneg %p308
        $region78: #{tpu_custom_call.1} parent=67 // pred_check_branch
          %4127 = sbr.rel (%p4125) target = $region80
        $region79: #{tpu_custom_call.1} parent=67 // pred_region
          %s4129 = ssub.s32 64, 64
          %4130 = vsyncadd %s4121, %s4129
          %s4131 = smul.addr %s33, 64
          %s4132 = scalar_lea.hbm %s12, %s4131
          %s4134 = sshll.u32 %s4124, 4
          %s4135 = int_to_ptr.vmem [resolvable:$true] %s4134
          %4137 = dma.vmem_to_hbm [thread:$0]  %s4135, 64, %s4132, %s4121
        $region80: #{tpu_custom_call.1} parent=67 // pred_fallthru
          _
      $region68: #{tpu_custom_call.1} parent=5 // pred_fallthru
        _
      %p4138 = scmp.le.s32.totalorder 2, %s28
      // Predicated region
      $region81: #{tpu_custom_call.1} parent=5 // pred_check
        %p4139 = pneg %p4138
      $region82: #{tpu_custom_call.1} parent=5 // pred_check_branch
        %4141 = sbr.rel (%p4139) target = $region84
      $region83: #{tpu_custom_call.1} parent=5 // pred_region
        %s4142 = ssub.s32 %s28, 2
        // Predicated region
        $region85: #{tpu_custom_call.1} parent=83 // pred_check
          %p4143 = pneg %p314
        $region86: #{tpu_custom_call.1} parent=83 // pred_check_branch
          %4145 = sbr.rel (%p4143) target = $region88
        $region87: #{tpu_custom_call.1} parent=83 // pred_region
          %s4146 = sand.u32 %s299, 1
          %s4147 = scalar_lea.sflag [#allocation6], %s4146
          %s4148 = sand.u32 %s299, 1
          %s4149 = smul.addr %s4148, 4
          %s4150 = scalar_lea.vmem [#allocation9], %s4149
          %4151 = dma.done %s4147, 64
        $region88: #{tpu_custom_call.1} parent=83 // pred_fallthru
          _
      $region84: #{tpu_custom_call.1} parent=5 // pred_fallthru
        _
    $region6: #{tpu_custom_call.1} parent=1 // loop_footer
      %s32 = sadd.s32 1, %s28
    $region7: #{tpu_custom_call.1} parent=1 // loop_footer_branch
      %27 = sbr.rel target = $region3
    $region8: #{tpu_custom_call.1} parent=1 // loop_exit
      _
    %4152 = vsyncpa [#allocation5], 1
    %s4153 = scalar_lea.sflag [#allocation5], 1
    %4154 = vsyncpa %s4153, 1
    %4155 = vsyncpa [#allocation8], 1
    %4156 = vsyncpa [#allocation6], 1
    %s4157 = scalar_lea.sflag [#allocation6], 1
    %4158 = vsyncpa %s4157, 1

</llo_original>
